<compile_context>
chip_gen: v7x
topology: tpu7x:2x2x1
jax: 0.10.0
libtpu: 0.0.40
codegen_flags: <defaults>
</compile_context>

<pallas_src>
import functools

import jax
import jax.numpy as jnp
import numpy as np
from jax.experimental import pallas as pl
from jax.experimental.pallas import tpu as pltpu

CIN = 4                       # cat([occ (1ch), unp*occ (3ch)])
KSIZE = 3
NTAPS2D = KSIZE * KSIZE       # 9 in-plane (ky, kx) taps per kd
KROWS = 48                    # CIN*9 = 36 rows padded to a multiple of 16 (bf16 sublane tile)
MAX_TZ = 32                   # cap on the z batch (bounds unrolled code size / f32 temporaries)


def _featnet_kernel(occ_ref, unp_ref, mask_ref, w1_ref, b1_ref, w2_ref, b2_ref,
                    out_ref, shift_ref, *, Z, Y, X, TZ):
    """Fused input prep + 3x3x3 conv (pad=1) + LeakyReLU + 1x1x1 conv + L2-normalize.

    Per grid step (one sample, one batch of TZ output z-slices):
      1. Build a bank of TZ+2 shifted/masked input slices in VMEM (bf16, lane-dense; one
         aligned 48-row store and 9 pltpu.roll's per input slice, each slice built once).
      2. conv1 = sum over kd of one (hidden,48)x(48,TZ*R) bf16 MXU matmul reading a
         lane-shifted column window of the bank (kd reuse without any re-copying).
      3. LeakyReLU, 1x1x1 conv, channelwise L2-normalize, one lane-dense output store.
    """
    R = Y * X
    zbase = pl.program_id(1) * TZ

    # Static lane shifts for the 9 in-plane (sy, sx) taps:
    #   shifted[r] = row[(r + sy*X + sx) mod R]  == voxel (y+sy, x+sx) for in-bounds taps.
    shifts = []
    for sy in (-1, 0, 1):
        for sx in (-1, 0, 1):
            shifts.append((-(sy * X + sx)) % R)

    zpad = jnp.zeros((KROWS - NTAPS2D * CIN, R), jnp.float32)

    # ---- 1. shifted-slice bank: slot s holds input z-slice gz = zbase + s - 1 ----------
    for s in range(TZ + 2):
        gz = zbase + s - 1
        valid_z = jnp.logical_and(gz >= 0, gz <= Z - 1)
        gzc = jnp.clip(gz, 0, Z - 1)
        # fused input prep: row4 = cat([occ, unp * occ]) for this input z-slice
        o = occ_ref[0, pl.ds(gzc, 1), :]                         # (1, R) f32
        o = jnp.where(valid_z, o, 0.0)                           # z zero-padding
        rows = [o]
        for c in range(3):
            rows.append(unp_ref[0, c, pl.ds(gzc, 1), :] * o)     # unp * occ (zeroed with occ)
        row4 = jnp.concatenate(rows, axis=0)                     # (4, R) f32
        # 9 in-plane taps via XLU lane rotations, one mask multiply, one aligned bank store.
        pieces = [row4 if sh == 0 else pltpu.roll(row4, sh, 1) for sh in shifts]
        block = jnp.concatenate(pieces + [zpad], axis=0)         # (KROWS, R) f32
        block = block * mask_ref[...]                            # y/x zero-pad + zero K-pad rows
        shift_ref[:, s * R:(s + 1) * R] = block.astype(shift_ref.dtype)

    # ---- 2. conv1 (3x3x3, pad=1): 3 bf16 MXU matmuls batched over all TZ output slices ----
    acc = None
    for dz in range(KSIZE):
        d = jnp.dot(w1_ref[dz], shift_ref[:, dz * R:(dz + TZ) * R],
                    preferred_element_type=jnp.float32)          # (hidden, TZ*R) f32
        acc = d if acc is None else acc + d
    h = acc + b1_ref[...]
    h = jnp.maximum(h, 0.01 * h)                                 # LeakyReLU(0.01)

    # ---- 3. conv2 (1x1x1) + channelwise L2-normalize + lane-dense output store ----------
    f = jnp.dot(w2_ref[...], h.astype(jnp.bfloat16),
                preferred_element_type=jnp.float32) + b2_ref[...]   # (feat, TZ*R) f32
    ssq = jnp.sum(f * f, axis=0, keepdims=True)
    f = f * jax.lax.rsqrt(ssq + 1e-12)                           # rsqrt -> EUP
    out_ref[0, :, :] = f.astype(out_ref.dtype)


def _make_tap_mask(Y, X):
    """(KROWS, Y*X) f32: rows 4t..4t+3 = validity of in-plane tap t; K-pad rows = 0."""
    R = Y * X
    ry, rx = np.arange(R) // X, np.arange(R) % X
    rows = []
    for sy in (-1, 0, 1):
        for sx in (-1, 0, 1):
            m = ((ry + sy >= 0) & (ry + sy < Y) & (rx + sx >= 0) & (rx + sx < X))
            rows.append(np.broadcast_to(m.astype(np.float32)[None, :], (CIN, R)))
    rows.append(np.zeros((KROWS - NTAPS2D * CIN, R), np.float32))
    return jnp.asarray(np.concatenate(rows, axis=0))


def _default_vmem_limit():
    """Scoped-VMEM request adapted to the chip (v5e/v6e: 128 MiB physical, v7x: 64 MiB)."""
    try:
        cap = int(pltpu.get_tpu_info().vmem_capacity_bytes)
    except Exception:
        cap = 64 * 1024 * 1024
    return int(min(cap * 3 // 4, 100 * 1024 * 1024))


def _vmem_estimate(Z, R, tz, hidden, feat, out_itemsize):
    """Rough per-grid-step VMEM footprint (double-buffered in/out blocks + scratch + temps)."""
    in_blk = (1 + 3) * Z * R * 4 * 2                 # whole-Z f32 occ+unp blocks, 2 buffers
    out_blk = feat * tz * R * out_itemsize * 2       # output block, 2 buffers
    shift = KROWS * (tz + 2) * R * 2                 # bf16 shifted-slice bank (scratch)
    mask = KROWS * R * 4 * 2
    temps = (hidden + feat) * tz * R * 4 * 2         # h / f f32 temporaries (+ headroom)
    weights = 2 * (KSIZE * hidden * KROWS * 2 + feat * hidden * 2 + (hidden + feat) * 4)
    return in_blk + out_blk + shift + mask + temps + weights


def _pick_tz(Z, R, hidden, feat, out_itemsize, budget):
    """Largest z batch (divisor of Z, <= MAX_TZ) whose VMEM estimate fits the budget."""
    cands = sorted((t for t in range(1, min(Z, MAX_TZ) + 1) if Z % t == 0), reverse=True)
    for t in cands:
        if _vmem_estimate(Z, R, t, hidden, feat, out_itemsize) <= budget:
            return t
    raise ValueError(
        f"no z-tile fits the VMEM budget ({budget} bytes) for Z={Z}, Y*X={R}; "
        "switch the occ/unp inputs to a halo'd manual-DMA path for grids this large")


def featnet3d_forward(occ, unp, params, *, tz=None, out_dtype=jnp.float32,
                      vmem_limit_bytes=None):
    """occ: (N,1,Z,Y,X) f32, unp: (N,3,Z,Y,X) f32 -> feat: (N, feat_dim, Z, Y, X) out_dtype."""
    N, c_occ, Z, Y, X = occ.shape
    assert c_occ == 1 and unp.shape == (N, 3, Z, Y, X)
    R = Y * X
    if R % 128 != 0:
        raise ValueError(f"Y*X={R} must be a multiple of 128 for the lane-dense layout")

    w1p, b1, w2, b2 = params["w1p"], params["b1"], params["w2"], params["b2"]
    ksize, hidden, krows = w1p.shape
    feat_dim = w2.shape[0]
    assert (ksize, krows) == (KSIZE, KROWS)

    if vmem_limit_bytes is None:
        vmem_limit_bytes = _default_vmem_limit()
    out_itemsize = jnp.dtype(out_dtype).itemsize
    if tz is None:
        tz = _pick_tz(Z, R, hidden, feat_dim, out_itemsize, int(vmem_limit_bytes * 0.85))
    if Z % tz != 0:
        raise ValueError(f"tz={tz} must divide Z={Z}")
    if _vmem_estimate(Z, R, tz, hidden, feat_dim, out_itemsize) > vmem_limit_bytes:
        raise ValueError(f"tz={tz} does not fit the VMEM limit ({vmem_limit_bytes} bytes)")
    nz = Z // tz

    # Free reshapes only (no im2col / padding / transpose passes over HBM).
    occ_r = occ.astype(jnp.float32).reshape(N, Z, R)
    unp_r = unp.astype(jnp.float32).reshape(N, 3, Z, R)
    mask = _make_tap_mask(Y, X)

    kernel = functools.partial(_featnet_kernel, Z=Z, Y=Y, X=X, TZ=tz)

    out = pl.pallas_call(
        kernel,
        out_shape=jax.ShapeDtypeStruct((N, feat_dim, Z * R), out_dtype),
        grid_spec=pltpu.PrefetchScalarGridSpec(
            num_scalar_prefetch=0,
            grid=(N, nz),
            in_specs=[
                # raw voxel volumes; constant block index along zi -> fetched once per sample
                pl.BlockSpec((1, Z, R), lambda n, zi: (n, 0, 0)),
                pl.BlockSpec((1, 3, Z, R), lambda n, zi: (n, 0, 0, 0)),
                # sublane-dense in-plane tap validity mask (shared by all grid steps)
                pl.BlockSpec((KROWS, R), lambda n, zi: (0, 0)),
                # weights (constant index maps)
                pl.BlockSpec((KSIZE, hidden, KROWS), lambda n, zi: (0, 0, 0)),
                pl.BlockSpec((hidden, 1), lambda n, zi: (0, 0)),
                pl.BlockSpec((feat_dim, hidden), lambda n, zi: (0, 0)),
                pl.BlockSpec((feat_dim, 1), lambda n, zi: (0, 0)),
            ],
            out_specs=pl.BlockSpec((1, feat_dim, tz * R), lambda n, zi: (n, 0, zi)),
            scratch_shapes=[
                pltpu.VMEM((KROWS, (tz + 2) * R), jnp.bfloat16),   # shifted-slice bank
            ],
        ),
        compiler_params=pltpu.CompilerParams(
            dimension_semantics=("parallel", "parallel"),
            vmem_limit_bytes=int(vmem_limit_bytes),
        ),
    )(occ_r, unp_r, mask, w1p, b1, w2, b2)

    return out.reshape(N, feat_dim, Z, Y, X)


def carla_ret_run_train(occ_memRs, unp_memRs, params, *, tz=None, out_dtype=jnp.float32):
    """CarlaRetModel.run_train, hyp.do_feat3D branch.

    occ_memRs: (B, S, 1, Z, Y, X), unp_memRs: (B, S, 3, Z, Y, X) -> (total_loss, results)
    """
    B, S = occ_memRs.shape[:2]
    Z, Y, X = occ_memRs.shape[3:]
    occ_ = occ_memRs.reshape(B * S, 1, Z, Y, X)       # pack seqdim
    unp_ = unp_memRs.reshape(B * S, 3, Z, Y, X)

    feat_ = featnet3d_forward(occ_, unp_, params, tz=tz, out_dtype=out_dtype)
    feat = feat_.reshape(B, S, *feat_.shape[1:])      # both s=0 and s=1 in one launch

    feat_memR_e = feat[:, 0]
    feat_memR_g = feat[:, 1]

    # TODO(synk): FeatNet3D smoothness/regularization loss is not in the provided source;
    #             the loss contribution is returned as 0.0.
    total_loss = jnp.float32(0.0)
    return total_loss, {"feat_memR_e": feat_memR_e, "feat_memR_g": feat_memR_g}


def init_params(key, in_dim=CIN, hidden=32, feat_dim=32, ksize=KSIZE):
    assert in_dim == CIN and ksize == KSIZE
    k1, k2, k3, k4 = jax.random.split(key, 4)
    fan1 = in_dim * ksize ** 3
    # logical PyTorch-style conv3d weight: (hidden, in_dim, kd, kh, kw)
    w1 = jax.random.normal(k1, (hidden, in_dim, ksize, ksize, ksize), jnp.float32)
    w1 = w1 / jnp.sqrt(fan1)
    # kernel packing: one (hidden, 36 -> 48) matrix per kd, rows ordered (kh, kw, cin)
    w1p = jnp.transpose(w1, (2, 0, 3, 4, 1)).reshape(ksize, hidden, ksize * ksize * in_dim)
    w1p = jnp.pad(w1p, ((0, 0), (0, 0), (0, KROWS - ksize * ksize * in_dim)))
    b1 = jax.random.normal(k2, (hidden, 1), jnp.float32) * 0.01
    w2 = jax.random.normal(k3, (feat_dim, hidden), jnp.float32) / jnp.sqrt(hidden)
    b2 = jax.random.normal(k4, (feat_dim, 1), jnp.float32) * 0.01
    return {"w1p": w1p.astype(jnp.bfloat16), "b1": b1,
            "w2": w2.astype(jnp.bfloat16), "b2": b2}


def _reference_forward(occ, unp, params):
    """Pure-JAX/XLA reference of the same placeholder FeatNet3D (matching bf16 rounding points)."""
    ksize, hidden, _ = params["w1p"].shape
    feat_dim = params["w2"].shape[0]
    x = jnp.concatenate([occ, unp * occ], axis=1)
    x = x.astype(jnp.bfloat16).astype(jnp.float32)          # kernel rounds at the bf16 bank store
    w1 = params["w1p"][:, :, :NTAPS2D * CIN].astype(jnp.float32)
    w1 = w1.reshape(ksize, hidden, ksize, ksize, CIN).transpose(1, 4, 0, 2, 3)  # OIDHW
    h = jax.lax.conv_general_dilated(
        x, w1, window_strides=(1, 1, 1), padding=((1, 1), (1, 1), (1, 1)),
        dimension_numbers=("NCDHW", "OIDHW", "NCDHW"))
    h = h + params["b1"].reshape(1, hidden, 1, 1, 1)
    h = jnp.maximum(h, 0.01 * h)
    h = h.astype(jnp.bfloat16).astype(jnp.float32)          # kernel feeds bf16 h to conv2
    f = jnp.einsum("fh,nhzyx->nfzyx", params["w2"].astype(jnp.float32), h)
    f = f + params["b2"].reshape(1, feat_dim, 1, 1, 1)
    f = f * jax.lax.rsqrt(jnp.sum(f * f, axis=1, keepdims=True) + 1e-12)
    return f


if __name__ == "__main__":
    key = jax.random.PRNGKey(0)
    kp, ko, ku = jax.random.split(key, 3)

    B, S, Z, Y, X = 2, 2, 16, 16, 16

    # synthetic voxelized inputs (stand-ins for vox_util.voxelize_xyz / unproject_rgb_to_mem)
    occ_memRs = jnp.round(jax.random.uniform(ko, (B, S, 1, Z, Y, X))).astype(jnp.float32)
    unp_memRs = (jax.random.uniform(ku, (B, S, 3, Z, Y, X)) - 0.5).astype(jnp.float32)

    params = init_params(kp)

    # tz=8 forces a multi-tile z grid (Z=16 -> 2 z batches per sample): exercises the tiling
    # path and gives the (N=4) x (nz=2) = 8-step grid enough parallel work for 2-TC chips.
    run = jax.jit(functools.partial(carla_ret_run_train, tz=8))
    total_loss, results = run(occ_memRs, unp_memRs, params)
    jax.block_until_ready((total_loss, results))

    assert results["feat_memR_e"].shape == (B, 32, Z, Y, X)
    assert results["feat_memR_g"].shape == (B, 32, Z, Y, X)

    # numerical check of the fused kernel against a pure-JAX reference
    occ_ = occ_memRs.reshape(B * S, 1, Z, Y, X)
    unp_ = unp_memRs.reshape(B * S, 3, Z, Y, X)
    ref = jax.jit(_reference_forward)(occ_, unp_, params)
    ref = ref.reshape(B, S, 32, Z, Y, X)
    np.testing.assert_allclose(np.asarray(results["feat_memR_e"]), np.asarray(ref[:, 0]),
                               atol=2e-2, rtol=2e-2)
    np.testing.assert_allclose(np.asarray(results["feat_memR_g"]), np.asarray(ref[:, 1]),
                               atol=2e-2, rtol=2e-2)

    print("KERNEL_OK")
</pallas_src>

<mosaic_0001>
module attributes {stable_mosaic.version = 11 : i64} {
  func.func @_featnet_kernel(%arg0: i32, %arg1: i32, %arg2: memref<1x16x256xf32, #tpu.memory_space<vmem>>, %arg3: memref<1x3x16x256xf32, #tpu.memory_space<vmem>>, %arg4: memref<48x256xf32, #tpu.memory_space<vmem>>, %arg5: memref<3x32x48xbf16, #tpu.memory_space<vmem>>, %arg6: memref<32x1xf32, #tpu.memory_space<vmem>>, %arg7: memref<32x32xbf16, #tpu.memory_space<vmem>>, %arg8: memref<32x1xf32, #tpu.memory_space<vmem>>, %arg9: memref<1x32x2048xf32, #tpu.memory_space<vmem>>, %arg10: memref<48x2560xbf16, #tpu.memory_space<vmem>>) attributes {dimension_semantics = [#tpu.dimension_semantics<parallel>, #tpu.dimension_semantics<parallel>], iteration_bounds = array<i64: 4, 2>, scalar_prefetch = 0 : i64, scratch_operands = 1 : i64, tpu.core_type = #tpu.core_type<tc>, window_params = [{transform_indices = @transform_0, window_bounds = array<i64: 1, 16, 256>}, {transform_indices = @transform_1, window_bounds = array<i64: 1, 3, 16, 256>}, {pipeline_mode = #tpu.pipeline_mode<synchronous>, transform_indices = @transform_2, window_bounds = array<i64: 48, 256>}, {pipeline_mode = #tpu.pipeline_mode<synchronous>, transform_indices = @transform_3, window_bounds = array<i64: 3, 32, 48>}, {pipeline_mode = #tpu.pipeline_mode<synchronous>, transform_indices = @transform_4, window_bounds = array<i64: 32, 1>}, {pipeline_mode = #tpu.pipeline_mode<synchronous>, transform_indices = @transform_5, window_bounds = array<i64: 32, 32>}, {pipeline_mode = #tpu.pipeline_mode<synchronous>, transform_indices = @transform_6, window_bounds = array<i64: 32, 1>}, {transform_indices = @transform_7, window_bounds = array<i64: 1, 32, 2048>}]} {
    %c8_i32 = arith.constant 8 : i32
    %0 = arith.muli %arg1, %c8_i32 : i32
    %cst = arith.constant 0.000000e+00 : f32
    %1 = vector.broadcast %cst : f32 to vector<12x256xf32>
    %c0_i32 = arith.constant 0 : i32
    %2 = arith.addi %0, %c0_i32 : i32
    %c1_i32 = arith.constant 1 : i32
    %3 = arith.subi %2, %c1_i32 : i32
    %c0_i32_0 = arith.constant 0 : i32
    %4 = arith.cmpi sge, %3, %c0_i32_0 : i32
    %c15_i32 = arith.constant 15 : i32
    %5 = arith.cmpi sle, %3, %c15_i32 : i32
    %6 = arith.andi %4, %5 : i1
    %c0_i32_1 = arith.constant 0 : i32
    %c15_i32_2 = arith.constant 15 : i32
    %7 = arith.maxsi %c0_i32_1, %3 : i32
    %8 = arith.minsi %c15_i32_2, %7 : i32
    %c0 = arith.constant 0 : index
    %9 = arith.index_cast %8 : i32 to index
    %c0_3 = arith.constant 0 : index
    %10 = vector.load %arg2[%c0, %9, %c0_3] : memref<1x16x256xf32, #tpu.memory_space<vmem>>, vector<1x1x256xf32>
    %11 = vector.shape_cast %10 : vector<1x1x256xf32> to vector<1x256xf32>
    %cst_4 = arith.constant 0.000000e+00 : f32
    %12 = vector.broadcast %cst_4 : f32 to vector<1x256xf32>
    %13 = arith.select %6, %11, %12 : vector<1x256xf32>
    %c0_5 = arith.constant 0 : index
    %c0_6 = arith.constant 0 : index
    %14 = arith.index_cast %8 : i32 to index
    %c0_7 = arith.constant 0 : index
    %15 = vector.load %arg3[%c0_5, %c0_6, %14, %c0_7] : memref<1x3x16x256xf32, #tpu.memory_space<vmem>>, vector<1x1x1x256xf32>
    %16 = vector.shape_cast %15 : vector<1x1x1x256xf32> to vector<1x256xf32>
    %17 = arith.mulf %16, %13 : vector<1x256xf32>
    %c0_8 = arith.constant 0 : index
    %c1 = arith.constant 1 : index
    %18 = arith.index_cast %8 : i32 to index
    %c0_9 = arith.constant 0 : index
    %19 = vector.load %arg3[%c0_8, %c1, %18, %c0_9] : memref<1x3x16x256xf32, #tpu.memory_space<vmem>>, vector<1x1x1x256xf32>
    %20 = vector.shape_cast %19 : vector<1x1x1x256xf32> to vector<1x256xf32>
    %21 = arith.mulf %20, %13 : vector<1x256xf32>
    %c0_10 = arith.constant 0 : index
    %c2 = arith.constant 2 : index
    %22 = arith.index_cast %8 : i32 to index
    %c0_11 = arith.constant 0 : index
    %23 = vector.load %arg3[%c0_10, %c2, %22, %c0_11] : memref<1x3x16x256xf32, #tpu.memory_space<vmem>>, vector<1x1x1x256xf32>
    %24 = vector.shape_cast %23 : vector<1x1x1x256xf32> to vector<1x256xf32>
    %25 = arith.mulf %24, %13 : vector<1x256xf32>
    %26 = tpu.concatenate %13, %17, %21, %25 in 0 : vector<1x256xf32>, vector<1x256xf32>, vector<1x256xf32>, vector<1x256xf32> -> vector<4x256xf32>
    %c17_i32 = arith.constant 17 : i32
    %27 = tpu.dynamic_rotate %26 by %c17_i32 dim 1 : vector<4x256xf32>, i32 -> vector<4x256xf32>
    %c16_i32 = arith.constant 16 : i32
    %28 = tpu.dynamic_rotate %26 by %c16_i32 dim 1 : vector<4x256xf32>, i32 -> vector<4x256xf32>
    %c15_i32_12 = arith.constant 15 : i32
    %29 = tpu.dynamic_rotate %26 by %c15_i32_12 dim 1 : vector<4x256xf32>, i32 -> vector<4x256xf32>
    %c1_i32_13 = arith.constant 1 : i32
    %30 = tpu.dynamic_rotate %26 by %c1_i32_13 dim 1 : vector<4x256xf32>, i32 -> vector<4x256xf32>
    %c255_i32 = arith.constant 255 : i32
    %31 = tpu.dynamic_rotate %26 by %c255_i32 dim 1 : vector<4x256xf32>, i32 -> vector<4x256xf32>
    %c241_i32 = arith.constant 241 : i32
    %32 = tpu.dynamic_rotate %26 by %c241_i32 dim 1 : vector<4x256xf32>, i32 -> vector<4x256xf32>
    %c240_i32 = arith.constant 240 : i32
    %33 = tpu.dynamic_rotate %26 by %c240_i32 dim 1 : vector<4x256xf32>, i32 -> vector<4x256xf32>
    %c239_i32 = arith.constant 239 : i32
    %34 = tpu.dynamic_rotate %26 by %c239_i32 dim 1 : vector<4x256xf32>, i32 -> vector<4x256xf32>
    %35 = tpu.concatenate %27, %28, %29, %30, %26, %31, %32, %33, %34, %1 in 0 : vector<4x256xf32>, vector<4x256xf32>, vector<4x256xf32>, vector<4x256xf32>, vector<4x256xf32>, vector<4x256xf32>, vector<4x256xf32>, vector<4x256xf32>, vector<4x256xf32>, vector<12x256xf32> -> vector<48x256xf32>
    %c0_14 = arith.constant 0 : index
    %c0_15 = arith.constant 0 : index
    %36 = vector.load %arg4[%c0_14, %c0_15] : memref<48x256xf32, #tpu.memory_space<vmem>>, vector<48x256xf32>
    %37 = arith.mulf %35, %36 : vector<48x256xf32>
    %38 = arith.truncf %37 : vector<48x256xf32> to vector<48x256xbf16>
    %c0_16 = arith.constant 0 : index
    %c0_17 = arith.constant 0 : index
    %39 = vector.load %arg10[%c0_16, %c0_17] : memref<48x2560xbf16, #tpu.memory_space<vmem>>, vector<48x256xbf16>
    tpu.vector_store %arg10[%c0_16, %c0_17], %38 {strides = array<i32>} : memref<48x2560xbf16, #tpu.memory_space<vmem>>, vector<48x256xbf16>,
    %c1_i32_18 = arith.constant 1 : i32
    %40 = arith.addi %0, %c1_i32_18 : i32
    %c1_i32_19 = arith.constant 1 : i32
    %41 = arith.subi %40, %c1_i32_19 : i32
    %c0_i32_20 = arith.constant 0 : i32
    %42 = arith.cmpi sge, %41, %c0_i32_20 : i32
    %c15_i32_21 = arith.constant 15 : i32
    %43 = arith.cmpi sle, %41, %c15_i32_21 : i32
    %44 = arith.andi %42, %43 : i1
    %c0_i32_22 = arith.constant 0 : i32
    %c15_i32_23 = arith.constant 15 : i32
    %45 = arith.maxsi %c0_i32_22, %41 : i32
    %46 = arith.minsi %c15_i32_23, %45 : i32
    %c0_24 = arith.constant 0 : index
    %47 = arith.index_cast %46 : i32 to index
    %c0_25 = arith.constant 0 : index
    %48 = vector.load %arg2[%c0_24, %47, %c0_25] : memref<1x16x256xf32, #tpu.memory_space<vmem>>, vector<1x1x256xf32>
    %49 = vector.shape_cast %48 : vector<1x1x256xf32> to vector<1x256xf32>
    %cst_26 = arith.constant 0.000000e+00 : f32
    %50 = vector.broadcast %cst_26 : f32 to vector<1x256xf32>
    %51 = arith.select %44, %49, %50 : vector<1x256xf32>
    %c0_27 = arith.constant 0 : index
    %c0_28 = arith.constant 0 : index
    %52 = arith.index_cast %46 : i32 to index
    %c0_29 = arith.constant 0 : index
    %53 = vector.load %arg3[%c0_27, %c0_28, %52, %c0_29] : memref<1x3x16x256xf32, #tpu.memory_space<vmem>>, vector<1x1x1x256xf32>
    %54 = vector.shape_cast %53 : vector<1x1x1x256xf32> to vector<1x256xf32>
    %55 = arith.mulf %54, %51 : vector<1x256xf32>
    %c0_30 = arith.constant 0 : index
    %c1_31 = arith.constant 1 : index
    %56 = arith.index_cast %46 : i32 to index
    %c0_32 = arith.constant 0 : index
    %57 = vector.load %arg3[%c0_30, %c1_31, %56, %c0_32] : memref<1x3x16x256xf32, #tpu.memory_space<vmem>>, vector<1x1x1x256xf32>
    %58 = vector.shape_cast %57 : vector<1x1x1x256xf32> to vector<1x256xf32>
    %59 = arith.mulf %58, %51 : vector<1x256xf32>
    %c0_33 = arith.constant 0 : index
    %c2_34 = arith.constant 2 : index
    %60 = arith.index_cast %46 : i32 to index
    %c0_35 = arith.constant 0 : index
    %61 = vector.load %arg3[%c0_33, %c2_34, %60, %c0_35] : memref<1x3x16x256xf32, #tpu.memory_space<vmem>>, vector<1x1x1x256xf32>
    %62 = vector.shape_cast %61 : vector<1x1x1x256xf32> to vector<1x256xf32>
    %63 = arith.mulf %62, %51 : vector<1x256xf32>
    %64 = tpu.concatenate %51, %55, %59, %63 in 0 : vector<1x256xf32>, vector<1x256xf32>, vector<1x256xf32>, vector<1x256xf32> -> vector<4x256xf32>
    %c17_i32_36 = arith.constant 17 : i32
    %65 = tpu.dynamic_rotate %64 by %c17_i32_36 dim 1 : vector<4x256xf32>, i32 -> vector<4x256xf32>
    %c16_i32_37 = arith.constant 16 : i32
    %66 = tpu.dynamic_rotate %64 by %c16_i32_37 dim 1 : vector<4x256xf32>, i32 -> vector<4x256xf32>
    %c15_i32_38 = arith.constant 15 : i32
    %67 = tpu.dynamic_rotate %64 by %c15_i32_38 dim 1 : vector<4x256xf32>, i32 -> vector<4x256xf32>
    %c1_i32_39 = arith.constant 1 : i32
    %68 = tpu.dynamic_rotate %64 by %c1_i32_39 dim 1 : vector<4x256xf32>, i32 -> vector<4x256xf32>
    %c255_i32_40 = arith.constant 255 : i32
    %69 = tpu.dynamic_rotate %64 by %c255_i32_40 dim 1 : vector<4x256xf32>, i32 -> vector<4x256xf32>
    %c241_i32_41 = arith.constant 241 : i32
    %70 = tpu.dynamic_rotate %64 by %c241_i32_41 dim 1 : vector<4x256xf32>, i32 -> vector<4x256xf32>
    %c240_i32_42 = arith.constant 240 : i32
    %71 = tpu.dynamic_rotate %64 by %c240_i32_42 dim 1 : vector<4x256xf32>, i32 -> vector<4x256xf32>
    %c239_i32_43 = arith.constant 239 : i32
    %72 = tpu.dynamic_rotate %64 by %c239_i32_43 dim 1 : vector<4x256xf32>, i32 -> vector<4x256xf32>
    %73 = tpu.concatenate %65, %66, %67, %68, %64, %69, %70, %71, %72, %1 in 0 : vector<4x256xf32>, vector<4x256xf32>, vector<4x256xf32>, vector<4x256xf32>, vector<4x256xf32>, vector<4x256xf32>, vector<4x256xf32>, vector<4x256xf32>, vector<4x256xf32>, vector<12x256xf32> -> vector<48x256xf32>
    %c0_44 = arith.constant 0 : index
    %c0_45 = arith.constant 0 : index
    %74 = vector.load %arg4[%c0_44, %c0_45] : memref<48x256xf32, #tpu.memory_space<vmem>>, vector<48x256xf32>
    %75 = arith.mulf %73, %74 : vector<48x256xf32>
    %76 = arith.truncf %75 : vector<48x256xf32> to vector<48x256xbf16>
    %c0_46 = arith.constant 0 : index
    %c256 = arith.constant 256 : index
    %77 = vector.load %arg10[%c0_46, %c256] : memref<48x2560xbf16, #tpu.memory_space<vmem>>, vector<48x256xbf16>
    tpu.vector_store %arg10[%c0_46, %c256], %76 {strides = array<i32>} : memref<48x2560xbf16, #tpu.memory_space<vmem>>, vector<48x256xbf16>,
    %c2_i32 = arith.constant 2 : i32
    %78 = arith.addi %0, %c2_i32 : i32
    %c1_i32_47 = arith.constant 1 : i32
    %79 = arith.subi %78, %c1_i32_47 : i32
    %c0_i32_48 = arith.constant 0 : i32
    %80 = arith.cmpi sge, %79, %c0_i32_48 : i32
    %c15_i32_49 = arith.constant 15 : i32
    %81 = arith.cmpi sle, %79, %c15_i32_49 : i32
    %82 = arith.andi %80, %81 : i1
    %c0_i32_50 = arith.constant 0 : i32
    %c15_i32_51 = arith.constant 15 : i32
    %83 = arith.maxsi %c0_i32_50, %79 : i32
    %84 = arith.minsi %c15_i32_51, %83 : i32
    %c0_52 = arith.constant 0 : index
    %85 = arith.index_cast %84 : i32 to index
    %c0_53 = arith.constant 0 : index
    %86 = vector.load %arg2[%c0_52, %85, %c0_53] : memref<1x16x256xf32, #tpu.memory_space<vmem>>, vector<1x1x256xf32>
    %87 = vector.shape_cast %86 : vector<1x1x256xf32> to vector<1x256xf32>
    %cst_54 = arith.constant 0.000000e+00 : f32
    %88 = vector.broadcast %cst_54 : f32 to vector<1x256xf32>
    %89 = arith.select %82, %87, %88 : vector<1x256xf32>
    %c0_55 = arith.constant 0 : index
    %c0_56 = arith.constant 0 : index
    %90 = arith.index_cast %84 : i32 to index
    %c0_57 = arith.constant 0 : index
    %91 = vector.load %arg3[%c0_55, %c0_56, %90, %c0_57] : memref<1x3x16x256xf32, #tpu.memory_space<vmem>>, vector<1x1x1x256xf32>
    %92 = vector.shape_cast %91 : vector<1x1x1x256xf32> to vector<1x256xf32>
    %93 = arith.mulf %92, %89 : vector<1x256xf32>
    %c0_58 = arith.constant 0 : index
    %c1_59 = arith.constant 1 : index
    %94 = arith.index_cast %84 : i32 to index
    %c0_60 = arith.constant 0 : index
    %95 = vector.load %arg3[%c0_58, %c1_59, %94, %c0_60] : memref<1x3x16x256xf32, #tpu.memory_space<vmem>>, vector<1x1x1x256xf32>
    %96 = vector.shape_cast %95 : vector<1x1x1x256xf32> to vector<1x256xf32>
    %97 = arith.mulf %96, %89 : vector<1x256xf32>
    %c0_61 = arith.constant 0 : index
    %c2_62 = arith.constant 2 : index
    %98 = arith.index_cast %84 : i32 to index
    %c0_63 = arith.constant 0 : index
    %99 = vector.load %arg3[%c0_61, %c2_62, %98, %c0_63] : memref<1x3x16x256xf32, #tpu.memory_space<vmem>>, vector<1x1x1x256xf32>
    %100 = vector.shape_cast %99 : vector<1x1x1x256xf32> to vector<1x256xf32>
    %101 = arith.mulf %100, %89 : vector<1x256xf32>
    %102 = tpu.concatenate %89, %93, %97, %101 in 0 : vector<1x256xf32>, vector<1x256xf32>, vector<1x256xf32>, vector<1x256xf32> -> vector<4x256xf32>
    %c17_i32_64 = arith.constant 17 : i32
    %103 = tpu.dynamic_rotate %102 by %c17_i32_64 dim 1 : vector<4x256xf32>, i32 -> vector<4x256xf32>
    %c16_i32_65 = arith.constant 16 : i32
    %104 = tpu.dynamic_rotate %102 by %c16_i32_65 dim 1 : vector<4x256xf32>, i32 -> vector<4x256xf32>
    %c15_i32_66 = arith.constant 15 : i32
    %105 = tpu.dynamic_rotate %102 by %c15_i32_66 dim 1 : vector<4x256xf32>, i32 -> vector<4x256xf32>
    %c1_i32_67 = arith.constant 1 : i32
    %106 = tpu.dynamic_rotate %102 by %c1_i32_67 dim 1 : vector<4x256xf32>, i32 -> vector<4x256xf32>
    %c255_i32_68 = arith.constant 255 : i32
    %107 = tpu.dynamic_rotate %102 by %c255_i32_68 dim 1 : vector<4x256xf32>, i32 -> vector<4x256xf32>
    %c241_i32_69 = arith.constant 241 : i32
    %108 = tpu.dynamic_rotate %102 by %c241_i32_69 dim 1 : vector<4x256xf32>, i32 -> vector<4x256xf32>
    %c240_i32_70 = arith.constant 240 : i32
    %109 = tpu.dynamic_rotate %102 by %c240_i32_70 dim 1 : vector<4x256xf32>, i32 -> vector<4x256xf32>
    %c239_i32_71 = arith.constant 239 : i32
    %110 = tpu.dynamic_rotate %102 by %c239_i32_71 dim 1 : vector<4x256xf32>, i32 -> vector<4x256xf32>
    %111 = tpu.concatenate %103, %104, %105, %106, %102, %107, %108, %109, %110, %1 in 0 : vector<4x256xf32>, vector<4x256xf32>, vector<4x256xf32>, vector<4x256xf32>, vector<4x256xf32>, vector<4x256xf32>, vector<4x256xf32>, vector<4x256xf32>, vector<4x256xf32>, vector<12x256xf32> -> vector<48x256xf32>
    %c0_72 = arith.constant 0 : index
    %c0_73 = arith.constant 0 : index
    %112 = vector.load %arg4[%c0_72, %c0_73] : memref<48x256xf32, #tpu.memory_space<vmem>>, vector<48x256xf32>
    %113 = arith.mulf %111, %112 : vector<48x256xf32>
    %114 = arith.truncf %113 : vector<48x256xf32> to vector<48x256xbf16>
    %c0_74 = arith.constant 0 : index
    %c512 = arith.constant 512 : index
    %115 = vector.load %arg10[%c0_74, %c512] : memref<48x2560xbf16, #tpu.memory_space<vmem>>, vector<48x256xbf16>
    tpu.vector_store %arg10[%c0_74, %c512], %114 {strides = array<i32>} : memref<48x2560xbf16, #tpu.memory_space<vmem>>, vector<48x256xbf16>,
    %c3_i32 = arith.constant 3 : i32
    %116 = arith.addi %0, %c3_i32 : i32
    %c1_i32_75 = arith.constant 1 : i32
    %117 = arith.subi %116, %c1_i32_75 : i32
    %c0_i32_76 = arith.constant 0 : i32
    %118 = arith.cmpi sge, %117, %c0_i32_76 : i32
    %c15_i32_77 = arith.constant 15 : i32
    %119 = arith.cmpi sle, %117, %c15_i32_77 : i32
    %120 = arith.andi %118, %119 : i1
    %c0_i32_78 = arith.constant 0 : i32
    %c15_i32_79 = arith.constant 15 : i32
    %121 = arith.maxsi %c0_i32_78, %117 : i32
    %122 = arith.minsi %c15_i32_79, %121 : i32
    %c0_80 = arith.constant 0 : index
    %123 = arith.index_cast %122 : i32 to index
    %c0_81 = arith.constant 0 : index
    %124 = vector.load %arg2[%c0_80, %123, %c0_81] : memref<1x16x256xf32, #tpu.memory_space<vmem>>, vector<1x1x256xf32>
    %125 = vector.shape_cast %124 : vector<1x1x256xf32> to vector<1x256xf32>
    %cst_82 = arith.constant 0.000000e+00 : f32
    %126 = vector.broadcast %cst_82 : f32 to vector<1x256xf32>
    %127 = arith.select %120, %125, %126 : vector<1x256xf32>
    %c0_83 = arith.constant 0 : index
    %c0_84 = arith.constant 0 : index
    %128 = arith.index_cast %122 : i32 to index
    %c0_85 = arith.constant 0 : index
    %129 = vector.load %arg3[%c0_83, %c0_84, %128, %c0_85] : memref<1x3x16x256xf32, #tpu.memory_space<vmem>>, vector<1x1x1x256xf32>
    %130 = vector.shape_cast %129 : vector<1x1x1x256xf32> to vector<1x256xf32>
    %131 = arith.mulf %130, %127 : vector<1x256xf32>
    %c0_86 = arith.constant 0 : index
    %c1_87 = arith.constant 1 : index
    %132 = arith.index_cast %122 : i32 to index
    %c0_88 = arith.constant 0 : index
    %133 = vector.load %arg3[%c0_86, %c1_87, %132, %c0_88] : memref<1x3x16x256xf32, #tpu.memory_space<vmem>>, vector<1x1x1x256xf32>
    %134 = vector.shape_cast %133 : vector<1x1x1x256xf32> to vector<1x256xf32>
    %135 = arith.mulf %134, %127 : vector<1x256xf32>
    %c0_89 = arith.constant 0 : index
    %c2_90 = arith.constant 2 : index
    %136 = arith.index_cast %122 : i32 to index
    %c0_91 = arith.constant 0 : index
    %137 = vector.load %arg3[%c0_89, %c2_90, %136, %c0_91] : memref<1x3x16x256xf32, #tpu.memory_space<vmem>>, vector<1x1x1x256xf32>
    %138 = vector.shape_cast %137 : vector<1x1x1x256xf32> to vector<1x256xf32>
    %139 = arith.mulf %138, %127 : vector<1x256xf32>
    %140 = tpu.concatenate %127, %131, %135, %139 in 0 : vector<1x256xf32>, vector<1x256xf32>, vector<1x256xf32>, vector<1x256xf32> -> vector<4x256xf32>
    %c17_i32_92 = arith.constant 17 : i32
    %141 = tpu.dynamic_rotate %140 by %c17_i32_92 dim 1 : vector<4x256xf32>, i32 -> vector<4x256xf32>
    %c16_i32_93 = arith.constant 16 : i32
    %142 = tpu.dynamic_rotate %140 by %c16_i32_93 dim 1 : vector<4x256xf32>, i32 -> vector<4x256xf32>
    %c15_i32_94 = arith.constant 15 : i32
    %143 = tpu.dynamic_rotate %140 by %c15_i32_94 dim 1 : vector<4x256xf32>, i32 -> vector<4x256xf32>
    %c1_i32_95 = arith.constant 1 : i32
    %144 = tpu.dynamic_rotate %140 by %c1_i32_95 dim 1 : vector<4x256xf32>, i32 -> vector<4x256xf32>
    %c255_i32_96 = arith.constant 255 : i32
    %145 = tpu.dynamic_rotate %140 by %c255_i32_96 dim 1 : vector<4x256xf32>, i32 -> vector<4x256xf32>
    %c241_i32_97 = arith.constant 241 : i32
    %146 = tpu.dynamic_rotate %140 by %c241_i32_97 dim 1 : vector<4x256xf32>, i32 -> vector<4x256xf32>
    %c240_i32_98 = arith.constant 240 : i32
    %147 = tpu.dynamic_rotate %140 by %c240_i32_98 dim 1 : vector<4x256xf32>, i32 -> vector<4x256xf32>
    %c239_i32_99 = arith.constant 239 : i32
    %148 = tpu.dynamic_rotate %140 by %c239_i32_99 dim 1 : vector<4x256xf32>, i32 -> vector<4x256xf32>
    %149 = tpu.concatenate %141, %142, %143, %144, %140, %145, %146, %147, %148, %1 in 0 : vector<4x256xf32>, vector<4x256xf32>, vector<4x256xf32>, vector<4x256xf32>, vector<4x256xf32>, vector<4x256xf32>, vector<4x256xf32>, vector<4x256xf32>, vector<4x256xf32>, vector<12x256xf32> -> vector<48x256xf32>
    %c0_100 = arith.constant 0 : index
    %c0_101 = arith.constant 0 : index
    %150 = vector.load %arg4[%c0_100, %c0_101] : memref<48x256xf32, #tpu.memory_space<vmem>>, vector<48x256xf32>
    %151 = arith.mulf %149, %150 : vector<48x256xf32>
    %152 = arith.truncf %151 : vector<48x256xf32> to vector<48x256xbf16>
    %c0_102 = arith.constant 0 : index
    %c768 = arith.constant 768 : index
    %153 = vector.load %arg10[%c0_102, %c768] : memref<48x2560xbf16, #tpu.memory_space<vmem>>, vector<48x256xbf16>
    tpu.vector_store %arg10[%c0_102, %c768], %152 {strides = array<i32>} : memref<48x2560xbf16, #tpu.memory_space<vmem>>, vector<48x256xbf16>,
    %c4_i32 = arith.constant 4 : i32
    %154 = arith.addi %0, %c4_i32 : i32
    %c1_i32_103 = arith.constant 1 : i32
    %155 = arith.subi %154, %c1_i32_103 : i32
    %c0_i32_104 = arith.constant 0 : i32
    %156 = arith.cmpi sge, %155, %c0_i32_104 : i32
    %c15_i32_105 = arith.constant 15 : i32
    %157 = arith.cmpi sle, %155, %c15_i32_105 : i32
    %158 = arith.andi %156, %157 : i1
    %c0_i32_106 = arith.constant 0 : i32
    %c15_i32_107 = arith.constant 15 : i32
    %159 = arith.maxsi %c0_i32_106, %155 : i32
    %160 = arith.minsi %c15_i32_107, %159 : i32
    %c0_108 = arith.constant 0 : index
    %161 = arith.index_cast %160 : i32 to index
    %c0_109 = arith.constant 0 : index
    %162 = vector.load %arg2[%c0_108, %161, %c0_109] : memref<1x16x256xf32, #tpu.memory_space<vmem>>, vector<1x1x256xf32>
    %163 = vector.shape_cast %162 : vector<1x1x256xf32> to vector<1x256xf32>
    %cst_110 = arith.constant 0.000000e+00 : f32
    %164 = vector.broadcast %cst_110 : f32 to vector<1x256xf32>
    %165 = arith.select %158, %163, %164 : vector<1x256xf32>
    %c0_111 = arith.constant 0 : index
    %c0_112 = arith.constant 0 : index
    %166 = arith.index_cast %160 : i32 to index
    %c0_113 = arith.constant 0 : index
    %167 = vector.load %arg3[%c0_111, %c0_112, %166, %c0_113] : memref<1x3x16x256xf32, #tpu.memory_space<vmem>>, vector<1x1x1x256xf32>
    %168 = vector.shape_cast %167 : vector<1x1x1x256xf32> to vector<1x256xf32>
    %169 = arith.mulf %168, %165 : vector<1x256xf32>
    %c0_114 = arith.constant 0 : index
    %c1_115 = arith.constant 1 : index
    %170 = arith.index_cast %160 : i32 to index
    %c0_116 = arith.constant 0 : index
    %171 = vector.load %arg3[%c0_114, %c1_115, %170, %c0_116] : memref<1x3x16x256xf32, #tpu.memory_space<vmem>>, vector<1x1x1x256xf32>
    %172 = vector.shape_cast %171 : vector<1x1x1x256xf32> to vector<1x256xf32>
    %173 = arith.mulf %172, %165 : vector<1x256xf32>
    %c0_117 = arith.constant 0 : index
    %c2_118 = arith.constant 2 : index
    %174 = arith.index_cast %160 : i32 to index
    %c0_119 = arith.constant 0 : index
    %175 = vector.load %arg3[%c0_117, %c2_118, %174, %c0_119] : memref<1x3x16x256xf32, #tpu.memory_space<vmem>>, vector<1x1x1x256xf32>
    %176 = vector.shape_cast %175 : vector<1x1x1x256xf32> to vector<1x256xf32>
    %177 = arith.mulf %176, %165 : vector<1x256xf32>
    %178 = tpu.concatenate %165, %169, %173, %177 in 0 : vector<1x256xf32>, vector<1x256xf32>, vector<1x256xf32>, vector<1x256xf32> -> vector<4x256xf32>
    %c17_i32_120 = arith.constant 17 : i32
    %179 = tpu.dynamic_rotate %178 by %c17_i32_120 dim 1 : vector<4x256xf32>, i32 -> vector<4x256xf32>
    %c16_i32_121 = arith.constant 16 : i32
    %180 = tpu.dynamic_rotate %178 by %c16_i32_121 dim 1 : vector<4x256xf32>, i32 -> vector<4x256xf32>
    %c15_i32_122 = arith.constant 15 : i32
    %181 = tpu.dynamic_rotate %178 by %c15_i32_122 dim 1 : vector<4x256xf32>, i32 -> vector<4x256xf32>
    %c1_i32_123 = arith.constant 1 : i32
    %182 = tpu.dynamic_rotate %178 by %c1_i32_123 dim 1 : vector<4x256xf32>, i32 -> vector<4x256xf32>
    %c255_i32_124 = arith.constant 255 : i32
    %183 = tpu.dynamic_rotate %178 by %c255_i32_124 dim 1 : vector<4x256xf32>, i32 -> vector<4x256xf32>
    %c241_i32_125 = arith.constant 241 : i32
    %184 = tpu.dynamic_rotate %178 by %c241_i32_125 dim 1 : vector<4x256xf32>, i32 -> vector<4x256xf32>
    %c240_i32_126 = arith.constant 240 : i32
    %185 = tpu.dynamic_rotate %178 by %c240_i32_126 dim 1 : vector<4x256xf32>, i32 -> vector<4x256xf32>
    %c239_i32_127 = arith.constant 239 : i32
    %186 = tpu.dynamic_rotate %178 by %c239_i32_127 dim 1 : vector<4x256xf32>, i32 -> vector<4x256xf32>
    %187 = tpu.concatenate %179, %180, %181, %182, %178, %183, %184, %185, %186, %1 in 0 : vector<4x256xf32>, vector<4x256xf32>, vector<4x256xf32>, vector<4x256xf32>, vector<4x256xf32>, vector<4x256xf32>, vector<4x256xf32>, vector<4x256xf32>, vector<4x256xf32>, vector<12x256xf32> -> vector<48x256xf32>
    %c0_128 = arith.constant 0 : index
    %c0_129 = arith.constant 0 : index
    %188 = vector.load %arg4[%c0_128, %c0_129] : memref<48x256xf32, #tpu.memory_space<vmem>>, vector<48x256xf32>
    %189 = arith.mulf %187, %188 : vector<48x256xf32>
    %190 = arith.truncf %189 : vector<48x256xf32> to vector<48x256xbf16>
    %c0_130 = arith.constant 0 : index
    %c1024 = arith.constant 1024 : index
    %191 = vector.load %arg10[%c0_130, %c1024] : memref<48x2560xbf16, #tpu.memory_space<vmem>>, vector<48x256xbf16>
    tpu.vector_store %arg10[%c0_130, %c1024], %190 {strides = array<i32>} : memref<48x2560xbf16, #tpu.memory_space<vmem>>, vector<48x256xbf16>,
    %c5_i32 = arith.constant 5 : i32
    %192 = arith.addi %0, %c5_i32 : i32
    %c1_i32_131 = arith.constant 1 : i32
    %193 = arith.subi %192, %c1_i32_131 : i32
    %c0_i32_132 = arith.constant 0 : i32
    %194 = arith.cmpi sge, %193, %c0_i32_132 : i32
    %c15_i32_133 = arith.constant 15 : i32
    %195 = arith.cmpi sle, %193, %c15_i32_133 : i32
    %196 = arith.andi %194, %195 : i1
    %c0_i32_134 = arith.constant 0 : i32
    %c15_i32_135 = arith.constant 15 : i32
    %197 = arith.maxsi %c0_i32_134, %193 : i32
    %198 = arith.minsi %c15_i32_135, %197 : i32
    %c0_136 = arith.constant 0 : index
    %199 = arith.index_cast %198 : i32 to index
    %c0_137 = arith.constant 0 : index
    %200 = vector.load %arg2[%c0_136, %199, %c0_137] : memref<1x16x256xf32, #tpu.memory_space<vmem>>, vector<1x1x256xf32>
    %201 = vector.shape_cast %200 : vector<1x1x256xf32> to vector<1x256xf32>
    %cst_138 = arith.constant 0.000000e+00 : f32
    %202 = vector.broadcast %cst_138 : f32 to vector<1x256xf32>
    %203 = arith.select %196, %201, %202 : vector<1x256xf32>
    %c0_139 = arith.constant 0 : index
    %c0_140 = arith.constant 0 : index
    %204 = arith.index_cast %198 : i32 to index
    %c0_141 = arith.constant 0 : index
    %205 = vector.load %arg3[%c0_139, %c0_140, %204, %c0_141] : memref<1x3x16x256xf32, #tpu.memory_space<vmem>>, vector<1x1x1x256xf32>
    %206 = vector.shape_cast %205 : vector<1x1x1x256xf32> to vector<1x256xf32>
    %207 = arith.mulf %206, %203 : vector<1x256xf32>
    %c0_142 = arith.constant 0 : index
    %c1_143 = arith.constant 1 : index
    %208 = arith.index_cast %198 : i32 to index
    %c0_144 = arith.constant 0 : index
    %209 = vector.load %arg3[%c0_142, %c1_143, %208, %c0_144] : memref<1x3x16x256xf32, #tpu.memory_space<vmem>>, vector<1x1x1x256xf32>
    %210 = vector.shape_cast %209 : vector<1x1x1x256xf32> to vector<1x256xf32>
    %211 = arith.mulf %210, %203 : vector<1x256xf32>
    %c0_145 = arith.constant 0 : index
    %c2_146 = arith.constant 2 : index
    %212 = arith.index_cast %198 : i32 to index
    %c0_147 = arith.constant 0 : index
    %213 = vector.load %arg3[%c0_145, %c2_146, %212, %c0_147] : memref<1x3x16x256xf32, #tpu.memory_space<vmem>>, vector<1x1x1x256xf32>
    %214 = vector.shape_cast %213 : vector<1x1x1x256xf32> to vector<1x256xf32>
    %215 = arith.mulf %214, %203 : vector<1x256xf32>
    %216 = tpu.concatenate %203, %207, %211, %215 in 0 : vector<1x256xf32>, vector<1x256xf32>, vector<1x256xf32>, vector<1x256xf32> -> vector<4x256xf32>
    %c17_i32_148 = arith.constant 17 : i32
    %217 = tpu.dynamic_rotate %216 by %c17_i32_148 dim 1 : vector<4x256xf32>, i32 -> vector<4x256xf32>
    %c16_i32_149 = arith.constant 16 : i32
    %218 = tpu.dynamic_rotate %216 by %c16_i32_149 dim 1 : vector<4x256xf32>, i32 -> vector<4x256xf32>
    %c15_i32_150 = arith.constant 15 : i32
    %219 = tpu.dynamic_rotate %216 by %c15_i32_150 dim 1 : vector<4x256xf32>, i32 -> vector<4x256xf32>
    %c1_i32_151 = arith.constant 1 : i32
    %220 = tpu.dynamic_rotate %216 by %c1_i32_151 dim 1 : vector<4x256xf32>, i32 -> vector<4x256xf32>
    %c255_i32_152 = arith.constant 255 : i32
    %221 = tpu.dynamic_rotate %216 by %c255_i32_152 dim 1 : vector<4x256xf32>, i32 -> vector<4x256xf32>
    %c241_i32_153 = arith.constant 241 : i32
    %222 = tpu.dynamic_rotate %216 by %c241_i32_153 dim 1 : vector<4x256xf32>, i32 -> vector<4x256xf32>
    %c240_i32_154 = arith.constant 240 : i32
    %223 = tpu.dynamic_rotate %216 by %c240_i32_154 dim 1 : vector<4x256xf32>, i32 -> vector<4x256xf32>
    %c239_i32_155 = arith.constant 239 : i32
    %224 = tpu.dynamic_rotate %216 by %c239_i32_155 dim 1 : vector<4x256xf32>, i32 -> vector<4x256xf32>
    %225 = tpu.concatenate %217, %218, %219, %220, %216, %221, %222, %223, %224, %1 in 0 : vector<4x256xf32>, vector<4x256xf32>, vector<4x256xf32>, vector<4x256xf32>, vector<4x256xf32>, vector<4x256xf32>, vector<4x256xf32>, vector<4x256xf32>, vector<4x256xf32>, vector<12x256xf32> -> vector<48x256xf32>
    %c0_156 = arith.constant 0 : index
    %c0_157 = arith.constant 0 : index
    %226 = vector.load %arg4[%c0_156, %c0_157] : memref<48x256xf32, #tpu.memory_space<vmem>>, vector<48x256xf32>
    %227 = arith.mulf %225, %226 : vector<48x256xf32>
    %228 = arith.truncf %227 : vector<48x256xf32> to vector<48x256xbf16>
    %c0_158 = arith.constant 0 : index
    %c1280 = arith.constant 1280 : index
    %229 = vector.load %arg10[%c0_158, %c1280] : memref<48x2560xbf16, #tpu.memory_space<vmem>>, vector<48x256xbf16>
    tpu.vector_store %arg10[%c0_158, %c1280], %228 {strides = array<i32>} : memref<48x2560xbf16, #tpu.memory_space<vmem>>, vector<48x256xbf16>,
    %c6_i32 = arith.constant 6 : i32
    %230 = arith.addi %0, %c6_i32 : i32
    %c1_i32_159 = arith.constant 1 : i32
    %231 = arith.subi %230, %c1_i32_159 : i32
    %c0_i32_160 = arith.constant 0 : i32
    %232 = arith.cmpi sge, %231, %c0_i32_160 : i32
    %c15_i32_161 = arith.constant 15 : i32
    %233 = arith.cmpi sle, %231, %c15_i32_161 : i32
    %234 = arith.andi %232, %233 : i1
    %c0_i32_162 = arith.constant 0 : i32
    %c15_i32_163 = arith.constant 15 : i32
    %235 = arith.maxsi %c0_i32_162, %231 : i32
    %236 = arith.minsi %c15_i32_163, %235 : i32
    %c0_164 = arith.constant 0 : index
    %237 = arith.index_cast %236 : i32 to index
    %c0_165 = arith.constant 0 : index
    %238 = vector.load %arg2[%c0_164, %237, %c0_165] : memref<1x16x256xf32, #tpu.memory_space<vmem>>, vector<1x1x256xf32>
    %239 = vector.shape_cast %238 : vector<1x1x256xf32> to vector<1x256xf32>
    %cst_166 = arith.constant 0.000000e+00 : f32
    %240 = vector.broadcast %cst_166 : f32 to vector<1x256xf32>
    %241 = arith.select %234, %239, %240 : vector<1x256xf32>
    %c0_167 = arith.constant 0 : index
    %c0_168 = arith.constant 0 : index
    %242 = arith.index_cast %236 : i32 to index
    %c0_169 = arith.constant 0 : index
    %243 = vector.load %arg3[%c0_167, %c0_168, %242, %c0_169] : memref<1x3x16x256xf32, #tpu.memory_space<vmem>>, vector<1x1x1x256xf32>
    %244 = vector.shape_cast %243 : vector<1x1x1x256xf32> to vector<1x256xf32>
    %245 = arith.mulf %244, %241 : vector<1x256xf32>
    %c0_170 = arith.constant 0 : index
    %c1_171 = arith.constant 1 : index
    %246 = arith.index_cast %236 : i32 to index
    %c0_172 = arith.constant 0 : index
    %247 = vector.load %arg3[%c0_170, %c1_171, %246, %c0_172] : memref<1x3x16x256xf32, #tpu.memory_space<vmem>>, vector<1x1x1x256xf32>
    %248 = vector.shape_cast %247 : vector<1x1x1x256xf32> to vector<1x256xf32>
    %249 = arith.mulf %248, %241 : vector<1x256xf32>
    %c0_173 = arith.constant 0 : index
    %c2_174 = arith.constant 2 : index
    %250 = arith.index_cast %236 : i32 to index
    %c0_175 = arith.constant 0 : index
    %251 = vector.load %arg3[%c0_173, %c2_174, %250, %c0_175] : memref<1x3x16x256xf32, #tpu.memory_space<vmem>>, vector<1x1x1x256xf32>
    %252 = vector.shape_cast %251 : vector<1x1x1x256xf32> to vector<1x256xf32>
    %253 = arith.mulf %252, %241 : vector<1x256xf32>
    %254 = tpu.concatenate %241, %245, %249, %253 in 0 : vector<1x256xf32>, vector<1x256xf32>, vector<1x256xf32>, vector<1x256xf32> -> vector<4x256xf32>
    %c17_i32_176 = arith.constant 17 : i32
    %255 = tpu.dynamic_rotate %254 by %c17_i32_176 dim 1 : vector<4x256xf32>, i32 -> vector<4x256xf32>
    %c16_i32_177 = arith.constant 16 : i32
    %256 = tpu.dynamic_rotate %254 by %c16_i32_177 dim 1 : vector<4x256xf32>, i32 -> vector<4x256xf32>
    %c15_i32_178 = arith.constant 15 : i32
    %257 = tpu.dynamic_rotate %254 by %c15_i32_178 dim 1 : vector<4x256xf32>, i32 -> vector<4x256xf32>
    %c1_i32_179 = arith.constant 1 : i32
    %258 = tpu.dynamic_rotate %254 by %c1_i32_179 dim 1 : vector<4x256xf32>, i32 -> vector<4x256xf32>
    %c255_i32_180 = arith.constant 255 : i32
    %259 = tpu.dynamic_rotate %254 by %c255_i32_180 dim 1 : vector<4x256xf32>, i32 -> vector<4x256xf32>
    %c241_i32_181 = arith.constant 241 : i32
    %260 = tpu.dynamic_rotate %254 by %c241_i32_181 dim 1 : vector<4x256xf32>, i32 -> vector<4x256xf32>
    %c240_i32_182 = arith.constant 240 : i32
    %261 = tpu.dynamic_rotate %254 by %c240_i32_182 dim 1 : vector<4x256xf32>, i32 -> vector<4x256xf32>
    %c239_i32_183 = arith.constant 239 : i32
    %262 = tpu.dynamic_rotate %254 by %c239_i32_183 dim 1 : vector<4x256xf32>, i32 -> vector<4x256xf32>
    %263 = tpu.concatenate %255, %256, %257, %258, %254, %259, %260, %261, %262, %1 in 0 : vector<4x256xf32>, vector<4x256xf32>, vector<4x256xf32>, vector<4x256xf32>, vector<4x256xf32>, vector<4x256xf32>, vector<4x256xf32>, vector<4x256xf32>, vector<4x256xf32>, vector<12x256xf32> -> vector<48x256xf32>
    %c0_184 = arith.constant 0 : index
    %c0_185 = arith.constant 0 : index
    %264 = vector.load %arg4[%c0_184, %c0_185] : memref<48x256xf32, #tpu.memory_space<vmem>>, vector<48x256xf32>
    %265 = arith.mulf %263, %264 : vector<48x256xf32>
    %266 = arith.truncf %265 : vector<48x256xf32> to vector<48x256xbf16>
    %c0_186 = arith.constant 0 : index
    %c1536 = arith.constant 1536 : index
    %267 = vector.load %arg10[%c0_186, %c1536] : memref<48x2560xbf16, #tpu.memory_space<vmem>>, vector<48x256xbf16>
    tpu.vector_store %arg10[%c0_186, %c1536], %266 {strides = array<i32>} : memref<48x2560xbf16, #tpu.memory_space<vmem>>, vector<48x256xbf16>,
    %c7_i32 = arith.constant 7 : i32
    %268 = arith.addi %0, %c7_i32 : i32
    %c1_i32_187 = arith.constant 1 : i32
    %269 = arith.subi %268, %c1_i32_187 : i32
    %c0_i32_188 = arith.constant 0 : i32
    %270 = arith.cmpi sge, %269, %c0_i32_188 : i32
    %c15_i32_189 = arith.constant 15 : i32
    %271 = arith.cmpi sle, %269, %c15_i32_189 : i32
    %272 = arith.andi %270, %271 : i1
    %c0_i32_190 = arith.constant 0 : i32
    %c15_i32_191 = arith.constant 15 : i32
    %273 = arith.maxsi %c0_i32_190, %269 : i32
    %274 = arith.minsi %c15_i32_191, %273 : i32
    %c0_192 = arith.constant 0 : index
    %275 = arith.index_cast %274 : i32 to index
    %c0_193 = arith.constant 0 : index
    %276 = vector.load %arg2[%c0_192, %275, %c0_193] : memref<1x16x256xf32, #tpu.memory_space<vmem>>, vector<1x1x256xf32>
    %277 = vector.shape_cast %276 : vector<1x1x256xf32> to vector<1x256xf32>
    %cst_194 = arith.constant 0.000000e+00 : f32
    %278 = vector.broadcast %cst_194 : f32 to vector<1x256xf32>
    %279 = arith.select %272, %277, %278 : vector<1x256xf32>
    %c0_195 = arith.constant 0 : index
    %c0_196 = arith.constant 0 : index
    %280 = arith.index_cast %274 : i32 to index
    %c0_197 = arith.constant 0 : index
    %281 = vector.load %arg3[%c0_195, %c0_196, %280, %c0_197] : memref<1x3x16x256xf32, #tpu.memory_space<vmem>>, vector<1x1x1x256xf32>
    %282 = vector.shape_cast %281 : vector<1x1x1x256xf32> to vector<1x256xf32>
    %283 = arith.mulf %282, %279 : vector<1x256xf32>
    %c0_198 = arith.constant 0 : index
    %c1_199 = arith.constant 1 : index
    %284 = arith.index_cast %274 : i32 to index
    %c0_200 = arith.constant 0 : index
    %285 = vector.load %arg3[%c0_198, %c1_199, %284, %c0_200] : memref<1x3x16x256xf32, #tpu.memory_space<vmem>>, vector<1x1x1x256xf32>
    %286 = vector.shape_cast %285 : vector<1x1x1x256xf32> to vector<1x256xf32>
    %287 = arith.mulf %286, %279 : vector<1x256xf32>
    %c0_201 = arith.constant 0 : index
    %c2_202 = arith.constant 2 : index
    %288 = arith.index_cast %274 : i32 to index
    %c0_203 = arith.constant 0 : index
    %289 = vector.load %arg3[%c0_201, %c2_202, %288, %c0_203] : memref<1x3x16x256xf32, #tpu.memory_space<vmem>>, vector<1x1x1x256xf32>
    %290 = vector.shape_cast %289 : vector<1x1x1x256xf32> to vector<1x256xf32>
    %291 = arith.mulf %290, %279 : vector<1x256xf32>
    %292 = tpu.concatenate %279, %283, %287, %291 in 0 : vector<1x256xf32>, vector<1x256xf32>, vector<1x256xf32>, vector<1x256xf32> -> vector<4x256xf32>
    %c17_i32_204 = arith.constant 17 : i32
    %293 = tpu.dynamic_rotate %292 by %c17_i32_204 dim 1 : vector<4x256xf32>, i32 -> vector<4x256xf32>
    %c16_i32_205 = arith.constant 16 : i32
    %294 = tpu.dynamic_rotate %292 by %c16_i32_205 dim 1 : vector<4x256xf32>, i32 -> vector<4x256xf32>
    %c15_i32_206 = arith.constant 15 : i32
    %295 = tpu.dynamic_rotate %292 by %c15_i32_206 dim 1 : vector<4x256xf32>, i32 -> vector<4x256xf32>
    %c1_i32_207 = arith.constant 1 : i32
    %296 = tpu.dynamic_rotate %292 by %c1_i32_207 dim 1 : vector<4x256xf32>, i32 -> vector<4x256xf32>
    %c255_i32_208 = arith.constant 255 : i32
    %297 = tpu.dynamic_rotate %292 by %c255_i32_208 dim 1 : vector<4x256xf32>, i32 -> vector<4x256xf32>
    %c241_i32_209 = arith.constant 241 : i32
    %298 = tpu.dynamic_rotate %292 by %c241_i32_209 dim 1 : vector<4x256xf32>, i32 -> vector<4x256xf32>
    %c240_i32_210 = arith.constant 240 : i32
    %299 = tpu.dynamic_rotate %292 by %c240_i32_210 dim 1 : vector<4x256xf32>, i32 -> vector<4x256xf32>
    %c239_i32_211 = arith.constant 239 : i32
    %300 = tpu.dynamic_rotate %292 by %c239_i32_211 dim 1 : vector<4x256xf32>, i32 -> vector<4x256xf32>
    %301 = tpu.concatenate %293, %294, %295, %296, %292, %297, %298, %299, %300, %1 in 0 : vector<4x256xf32>, vector<4x256xf32>, vector<4x256xf32>, vector<4x256xf32>, vector<4x256xf32>, vector<4x256xf32>, vector<4x256xf32>, vector<4x256xf32>, vector<4x256xf32>, vector<12x256xf32> -> vector<48x256xf32>
    %c0_212 = arith.constant 0 : index
    %c0_213 = arith.constant 0 : index
    %302 = vector.load %arg4[%c0_212, %c0_213] : memref<48x256xf32, #tpu.memory_space<vmem>>, vector<48x256xf32>
    %303 = arith.mulf %301, %302 : vector<48x256xf32>
    %304 = arith.truncf %303 : vector<48x256xf32> to vector<48x256xbf16>
    %c0_214 = arith.constant 0 : index
    %c1792 = arith.constant 1792 : index
    %305 = vector.load %arg10[%c0_214, %c1792] : memref<48x2560xbf16, #tpu.memory_space<vmem>>, vector<48x256xbf16>
    tpu.vector_store %arg10[%c0_214, %c1792], %304 {strides = array<i32>} : memref<48x2560xbf16, #tpu.memory_space<vmem>>, vector<48x256xbf16>,
    %c8_i32_215 = arith.constant 8 : i32
    %306 = arith.addi %0, %c8_i32_215 : i32
    %c1_i32_216 = arith.constant 1 : i32
    %307 = arith.subi %306, %c1_i32_216 : i32
    %c0_i32_217 = arith.constant 0 : i32
    %308 = arith.cmpi sge, %307, %c0_i32_217 : i32
    %c15_i32_218 = arith.constant 15 : i32
    %309 = arith.cmpi sle, %307, %c15_i32_218 : i32
    %310 = arith.andi %308, %309 : i1
    %c0_i32_219 = arith.constant 0 : i32
    %c15_i32_220 = arith.constant 15 : i32
    %311 = arith.maxsi %c0_i32_219, %307 : i32
    %312 = arith.minsi %c15_i32_220, %311 : i32
    %c0_221 = arith.constant 0 : index
    %313 = arith.index_cast %312 : i32 to index
    %c0_222 = arith.constant 0 : index
    %314 = vector.load %arg2[%c0_221, %313, %c0_222] : memref<1x16x256xf32, #tpu.memory_space<vmem>>, vector<1x1x256xf32>
    %315 = vector.shape_cast %314 : vector<1x1x256xf32> to vector<1x256xf32>
    %cst_223 = arith.constant 0.000000e+00 : f32
    %316 = vector.broadcast %cst_223 : f32 to vector<1x256xf32>
    %317 = arith.select %310, %315, %316 : vector<1x256xf32>
    %c0_224 = arith.constant 0 : index
    %c0_225 = arith.constant 0 : index
    %318 = arith.index_cast %312 : i32 to index
    %c0_226 = arith.constant 0 : index
    %319 = vector.load %arg3[%c0_224, %c0_225, %318, %c0_226] : memref<1x3x16x256xf32, #tpu.memory_space<vmem>>, vector<1x1x1x256xf32>
    %320 = vector.shape_cast %319 : vector<1x1x1x256xf32> to vector<1x256xf32>
    %321 = arith.mulf %320, %317 : vector<1x256xf32>
    %c0_227 = arith.constant 0 : index
    %c1_228 = arith.constant 1 : index
    %322 = arith.index_cast %312 : i32 to index
    %c0_229 = arith.constant 0 : index
    %323 = vector.load %arg3[%c0_227, %c1_228, %322, %c0_229] : memref<1x3x16x256xf32, #tpu.memory_space<vmem>>, vector<1x1x1x256xf32>
    %324 = vector.shape_cast %323 : vector<1x1x1x256xf32> to vector<1x256xf32>
    %325 = arith.mulf %324, %317 : vector<1x256xf32>
    %c0_230 = arith.constant 0 : index
    %c2_231 = arith.constant 2 : index
    %326 = arith.index_cast %312 : i32 to index
    %c0_232 = arith.constant 0 : index
    %327 = vector.load %arg3[%c0_230, %c2_231, %326, %c0_232] : memref<1x3x16x256xf32, #tpu.memory_space<vmem>>, vector<1x1x1x256xf32>
    %328 = vector.shape_cast %327 : vector<1x1x1x256xf32> to vector<1x256xf32>
    %329 = arith.mulf %328, %317 : vector<1x256xf32>
    %330 = tpu.concatenate %317, %321, %325, %329 in 0 : vector<1x256xf32>, vector<1x256xf32>, vector<1x256xf32>, vector<1x256xf32> -> vector<4x256xf32>
    %c17_i32_233 = arith.constant 17 : i32
    %331 = tpu.dynamic_rotate %330 by %c17_i32_233 dim 1 : vector<4x256xf32>, i32 -> vector<4x256xf32>
    %c16_i32_234 = arith.constant 16 : i32
    %332 = tpu.dynamic_rotate %330 by %c16_i32_234 dim 1 : vector<4x256xf32>, i32 -> vector<4x256xf32>
    %c15_i32_235 = arith.constant 15 : i32
    %333 = tpu.dynamic_rotate %330 by %c15_i32_235 dim 1 : vector<4x256xf32>, i32 -> vector<4x256xf32>
    %c1_i32_236 = arith.constant 1 : i32
    %334 = tpu.dynamic_rotate %330 by %c1_i32_236 dim 1 : vector<4x256xf32>, i32 -> vector<4x256xf32>
    %c255_i32_237 = arith.constant 255 : i32
    %335 = tpu.dynamic_rotate %330 by %c255_i32_237 dim 1 : vector<4x256xf32>, i32 -> vector<4x256xf32>
    %c241_i32_238 = arith.constant 241 : i32
    %336 = tpu.dynamic_rotate %330 by %c241_i32_238 dim 1 : vector<4x256xf32>, i32 -> vector<4x256xf32>
    %c240_i32_239 = arith.constant 240 : i32
    %337 = tpu.dynamic_rotate %330 by %c240_i32_239 dim 1 : vector<4x256xf32>, i32 -> vector<4x256xf32>
    %c239_i32_240 = arith.constant 239 : i32
    %338 = tpu.dynamic_rotate %330 by %c239_i32_240 dim 1 : vector<4x256xf32>, i32 -> vector<4x256xf32>
    %339 = tpu.concatenate %331, %332, %333, %334, %330, %335, %336, %337, %338, %1 in 0 : vector<4x256xf32>, vector<4x256xf32>, vector<4x256xf32>, vector<4x256xf32>, vector<4x256xf32>, vector<4x256xf32>, vector<4x256xf32>, vector<4x256xf32>, vector<4x256xf32>, vector<12x256xf32> -> vector<48x256xf32>
    %c0_241 = arith.constant 0 : index
    %c0_242 = arith.constant 0 : index
    %340 = vector.load %arg4[%c0_241, %c0_242] : memref<48x256xf32, #tpu.memory_space<vmem>>, vector<48x256xf32>
    %341 = arith.mulf %339, %340 : vector<48x256xf32>
    %342 = arith.truncf %341 : vector<48x256xf32> to vector<48x256xbf16>
    %c0_243 = arith.constant 0 : index
    %c2048 = arith.constant 2048 : index
    %343 = vector.load %arg10[%c0_243, %c2048] : memref<48x2560xbf16, #tpu.memory_space<vmem>>, vector<48x256xbf16>
    tpu.vector_store %arg10[%c0_243, %c2048], %342 {strides = array<i32>} : memref<48x2560xbf16, #tpu.memory_space<vmem>>, vector<48x256xbf16>,
    %c9_i32 = arith.constant 9 : i32
    %344 = arith.addi %0, %c9_i32 : i32
    %c1_i32_244 = arith.constant 1 : i32
    %345 = arith.subi %344, %c1_i32_244 : i32
    %c0_i32_245 = arith.constant 0 : i32
    %346 = arith.cmpi sge, %345, %c0_i32_245 : i32
    %c15_i32_246 = arith.constant 15 : i32
    %347 = arith.cmpi sle, %345, %c15_i32_246 : i32
    %348 = arith.andi %346, %347 : i1
    %c0_i32_247 = arith.constant 0 : i32
    %c15_i32_248 = arith.constant 15 : i32
    %349 = arith.maxsi %c0_i32_247, %345 : i32
    %350 = arith.minsi %c15_i32_248, %349 : i32
    %c0_249 = arith.constant 0 : index
    %351 = arith.index_cast %350 : i32 to index
    %c0_250 = arith.constant 0 : index
    %352 = vector.load %arg2[%c0_249, %351, %c0_250] : memref<1x16x256xf32, #tpu.memory_space<vmem>>, vector<1x1x256xf32>
    %353 = vector.shape_cast %352 : vector<1x1x256xf32> to vector<1x256xf32>
    %cst_251 = arith.constant 0.000000e+00 : f32
    %354 = vector.broadcast %cst_251 : f32 to vector<1x256xf32>
    %355 = arith.select %348, %353, %354 : vector<1x256xf32>
    %c0_252 = arith.constant 0 : index
    %c0_253 = arith.constant 0 : index
    %356 = arith.index_cast %350 : i32 to index
    %c0_254 = arith.constant 0 : index
    %357 = vector.load %arg3[%c0_252, %c0_253, %356, %c0_254] : memref<1x3x16x256xf32, #tpu.memory_space<vmem>>, vector<1x1x1x256xf32>
    %358 = vector.shape_cast %357 : vector<1x1x1x256xf32> to vector<1x256xf32>
    %359 = arith.mulf %358, %355 : vector<1x256xf32>
    %c0_255 = arith.constant 0 : index
    %c1_256 = arith.constant 1 : index
    %360 = arith.index_cast %350 : i32 to index
    %c0_257 = arith.constant 0 : index
    %361 = vector.load %arg3[%c0_255, %c1_256, %360, %c0_257] : memref<1x3x16x256xf32, #tpu.memory_space<vmem>>, vector<1x1x1x256xf32>
    %362 = vector.shape_cast %361 : vector<1x1x1x256xf32> to vector<1x256xf32>
    %363 = arith.mulf %362, %355 : vector<1x256xf32>
    %c0_258 = arith.constant 0 : index
    %c2_259 = arith.constant 2 : index
    %364 = arith.index_cast %350 : i32 to index
    %c0_260 = arith.constant 0 : index
    %365 = vector.load %arg3[%c0_258, %c2_259, %364, %c0_260] : memref<1x3x16x256xf32, #tpu.memory_space<vmem>>, vector<1x1x1x256xf32>
    %366 = vector.shape_cast %365 : vector<1x1x1x256xf32> to vector<1x256xf32>
    %367 = arith.mulf %366, %355 : vector<1x256xf32>
    %368 = tpu.concatenate %355, %359, %363, %367 in 0 : vector<1x256xf32>, vector<1x256xf32>, vector<1x256xf32>, vector<1x256xf32> -> vector<4x256xf32>
    %c17_i32_261 = arith.constant 17 : i32
    %369 = tpu.dynamic_rotate %368 by %c17_i32_261 dim 1 : vector<4x256xf32>, i32 -> vector<4x256xf32>
    %c16_i32_262 = arith.constant 16 : i32
    %370 = tpu.dynamic_rotate %368 by %c16_i32_262 dim 1 : vector<4x256xf32>, i32 -> vector<4x256xf32>
    %c15_i32_263 = arith.constant 15 : i32
    %371 = tpu.dynamic_rotate %368 by %c15_i32_263 dim 1 : vector<4x256xf32>, i32 -> vector<4x256xf32>
    %c1_i32_264 = arith.constant 1 : i32
    %372 = tpu.dynamic_rotate %368 by %c1_i32_264 dim 1 : vector<4x256xf32>, i32 -> vector<4x256xf32>
    %c255_i32_265 = arith.constant 255 : i32
    %373 = tpu.dynamic_rotate %368 by %c255_i32_265 dim 1 : vector<4x256xf32>, i32 -> vector<4x256xf32>
    %c241_i32_266 = arith.constant 241 : i32
    %374 = tpu.dynamic_rotate %368 by %c241_i32_266 dim 1 : vector<4x256xf32>, i32 -> vector<4x256xf32>
    %c240_i32_267 = arith.constant 240 : i32
    %375 = tpu.dynamic_rotate %368 by %c240_i32_267 dim 1 : vector<4x256xf32>, i32 -> vector<4x256xf32>
    %c239_i32_268 = arith.constant 239 : i32
    %376 = tpu.dynamic_rotate %368 by %c239_i32_268 dim 1 : vector<4x256xf32>, i32 -> vector<4x256xf32>
    %377 = tpu.concatenate %369, %370, %371, %372, %368, %373, %374, %375, %376, %1 in 0 : vector<4x256xf32>, vector<4x256xf32>, vector<4x256xf32>, vector<4x256xf32>, vector<4x256xf32>, vector<4x256xf32>, vector<4x256xf32>, vector<4x256xf32>, vector<4x256xf32>, vector<12x256xf32> -> vector<48x256xf32>
    %c0_269 = arith.constant 0 : index
    %c0_270 = arith.constant 0 : index
    %378 = vector.load %arg4[%c0_269, %c0_270] : memref<48x256xf32, #tpu.memory_space<vmem>>, vector<48x256xf32>
    %379 = arith.mulf %377, %378 : vector<48x256xf32>
    %380 = arith.truncf %379 : vector<48x256xf32> to vector<48x256xbf16>
    %c0_271 = arith.constant 0 : index
    %c2304 = arith.constant 2304 : index
    %381 = vector.load %arg10[%c0_271, %c2304] : memref<48x2560xbf16, #tpu.memory_space<vmem>>, vector<48x256xbf16>
    tpu.vector_store %arg10[%c0_271, %c2304], %380 {strides = array<i32>} : memref<48x2560xbf16, #tpu.memory_space<vmem>>, vector<48x256xbf16>,
    %c0_272 = arith.constant 0 : index
    %c0_273 = arith.constant 0 : index
    %c0_274 = arith.constant 0 : index
    %382 = vector.load %arg5[%c0_272, %c0_273, %c0_274] : memref<3x32x48xbf16, #tpu.memory_space<vmem>>, vector<1x32x48xbf16>
    %383 = vector.shape_cast %382 : vector<1x32x48xbf16> to vector<32x48xbf16>
    %c0_275 = arith.constant 0 : index
    %c0_276 = arith.constant 0 : index
    %384 = vector.load %arg10[%c0_275, %c0_276] : memref<48x2560xbf16, #tpu.memory_space<vmem>>, vector<48x2048xbf16>
    %cst_277 = arith.constant dense<0.000000e+00> : vector<32x2048xf32>
    %385 = tpu.matmul %383, %384, %cst_277 {dimension_numbers = #tpu.dot_dimension_numbers<[1], [0], [0], [1], [0, 0, 1, 1], [], []>} : vector<32x48xbf16>, vector<48x2048xbf16>, vector<32x2048xf32> -> vector<32x2048xf32>
    %c1_278 = arith.constant 1 : index
    %c0_279 = arith.constant 0 : index
    %c0_280 = arith.constant 0 : index
    %386 = vector.load %arg5[%c1_278, %c0_279, %c0_280] : memref<3x32x48xbf16, #tpu.memory_space<vmem>>, vector<1x32x48xbf16>
    %387 = vector.shape_cast %386 : vector<1x32x48xbf16> to vector<32x48xbf16>
    %c0_281 = arith.constant 0 : index
    %c256_282 = arith.constant 256 : index
    %388 = vector.load %arg10[%c0_281, %c256_282] : memref<48x2560xbf16, #tpu.memory_space<vmem>>, vector<48x2048xbf16>
    %cst_283 = arith.constant dense<0.000000e+00> : vector<32x2048xf32>
    %389 = tpu.matmul %387, %388, %cst_283 {dimension_numbers = #tpu.dot_dimension_numbers<[1], [0], [0], [1], [0, 0, 1, 1], [], []>} : vector<32x48xbf16>, vector<48x2048xbf16>, vector<32x2048xf32> -> vector<32x2048xf32>
    %390 = arith.addf %385, %389 : vector<32x2048xf32>
    %c2_284 = arith.constant 2 : index
    %c0_285 = arith.constant 0 : index
    %c0_286 = arith.constant 0 : index
    %391 = vector.load %arg5[%c2_284, %c0_285, %c0_286] : memref<3x32x48xbf16, #tpu.memory_space<vmem>>, vector<1x32x48xbf16>
    %392 = vector.shape_cast %391 : vector<1x32x48xbf16> to vector<32x48xbf16>
    %c0_287 = arith.constant 0 : index
    %c512_288 = arith.constant 512 : index
    %393 = vector.load %arg10[%c0_287, %c512_288] : memref<48x2560xbf16, #tpu.memory_space<vmem>>, vector<48x2048xbf16>
    %cst_289 = arith.constant dense<0.000000e+00> : vector<32x2048xf32>
    %394 = tpu.matmul %392, %393, %cst_289 {dimension_numbers = #tpu.dot_dimension_numbers<[1], [0], [0], [1], [0, 0, 1, 1], [], []>} : vector<32x48xbf16>, vector<48x2048xbf16>, vector<32x2048xf32> -> vector<32x2048xf32>
    %395 = arith.addf %390, %394 : vector<32x2048xf32>
    %c0_290 = arith.constant 0 : index
    %c0_291 = arith.constant 0 : index
    %396 = vector.load %arg6[%c0_290, %c0_291] : memref<32x1xf32, #tpu.memory_space<vmem>>, vector<32x1xf32>
    %397 = vector.broadcast %396 : vector<32x1xf32> to vector<32x2048xf32>
    %398 = arith.addf %395, %397 : vector<32x2048xf32>
    %cst_292 = arith.constant 0.00999999977 : f32
    %399 = vector.broadcast %cst_292 : f32 to vector<32x2048xf32>
    %400 = arith.mulf %399, %398 : vector<32x2048xf32>
    %401 = arith.maximumf %398, %400 : vector<32x2048xf32>
    %c0_293 = arith.constant 0 : index
    %c0_294 = arith.constant 0 : index
    %402 = vector.load %arg7[%c0_293, %c0_294] : memref<32x32xbf16, #tpu.memory_space<vmem>>, vector<32x32xbf16>
    %403 = arith.truncf %401 : vector<32x2048xf32> to vector<32x2048xbf16>
    %cst_295 = arith.constant dense<0.000000e+00> : vector<32x2048xf32>
    %404 = tpu.matmul %402, %403, %cst_295 {dimension_numbers = #tpu.dot_dimension_numbers<[1], [0], [0], [1], [0, 0, 1, 1], [], []>} : vector<32x32xbf16>, vector<32x2048xbf16>, vector<32x2048xf32> -> vector<32x2048xf32>
    %c0_296 = arith.constant 0 : index
    %c0_297 = arith.constant 0 : index
    %405 = vector.load %arg8[%c0_296, %c0_297] : memref<32x1xf32, #tpu.memory_space<vmem>>, vector<32x1xf32>
    %406 = vector.broadcast %405 : vector<32x1xf32> to vector<32x2048xf32>
    %407 = arith.addf %404, %406 : vector<32x2048xf32>
    %408 = arith.mulf %407, %407 : vector<32x2048xf32>
    %cst_298 = arith.constant dense<0.000000e+00> : vector<2048xf32>
    %409 = vector.multi_reduction <add>, %408, %cst_298 [0] : vector<32x2048xf32> to vector<2048xf32>
    %410 = vector.shape_cast %409 : vector<2048xf32> to vector<1x2048xf32>
    %cst_299 = arith.constant 9.99999996E-13 : f32
    %411 = vector.broadcast %cst_299 : f32 to vector<1x2048xf32>
    %412 = arith.addf %410, %411 : vector<1x2048xf32>
    %413 = math.rsqrt %412 : vector<1x2048xf32>
    %414 = vector.broadcast %413 : vector<1x2048xf32> to vector<32x2048xf32>
    %415 = arith.mulf %407, %414 : vector<32x2048xf32>
    %c0_300 = arith.constant 0 : index
    %c0_301 = arith.constant 0 : index
    %c0_302 = arith.constant 0 : index
    %416 = vector.load %arg9[%c0_300, %c0_301, %c0_302] : memref<1x32x2048xf32, #tpu.memory_space<vmem>>, vector<1x32x2048xf32>
    %417 = vector.shape_cast %416 : vector<1x32x2048xf32> to vector<32x2048xf32>
    %418 = vector.shape_cast %415 : vector<32x2048xf32> to vector<1x32x2048xf32>
    tpu.vector_store %arg9[%c0_300, %c0_301, %c0_302], %418 {strides = array<i32>} : memref<1x32x2048xf32, #tpu.memory_space<vmem>>, vector<1x32x2048xf32>,
    return
  }
  func.func @transform_0(%arg0: i32, %arg1: i32) -> (i32, i32, i32) {
    %c0_i32 = arith.constant 0 : i32
    %c0_i32_0 = arith.constant 0 : i32
    %c0_i32_1 = arith.constant 0 : i32
    return %arg0, %c0_i32, %c0_i32_0 : i32, i32, i32
  }
  func.func @transform_1(%arg0: i32, %arg1: i32) -> (i32, i32, i32, i32) {
    %c0_i32 = arith.constant 0 : i32
    %c0_i32_0 = arith.constant 0 : i32
    %c0_i32_1 = arith.constant 0 : i32
    %c0_i32_2 = arith.constant 0 : i32
    return %arg0, %c0_i32, %c0_i32_0, %c0_i32_1 : i32, i32, i32, i32
  }
  func.func @transform_2(%arg0: i32, %arg1: i32) -> (i32, i32) {
    %c0_i32 = arith.constant 0 : i32
    %c0_i32_0 = arith.constant 0 : i32
    %c0_i32_1 = arith.constant 0 : i32
    return %c0_i32, %c0_i32_0 : i32, i32
  }
  func.func @transform_3(%arg0: i32, %arg1: i32) -> (i32, i32, i32) {
    %c0_i32 = arith.constant 0 : i32
    %c0_i32_0 = arith.constant 0 : i32
    %c0_i32_1 = arith.constant 0 : i32
    %c0_i32_2 = arith.constant 0 : i32
    return %c0_i32, %c0_i32_0, %c0_i32_1 : i32, i32, i32
  }
  func.func @transform_4(%arg0: i32, %arg1: i32) -> (i32, i32) {
    %c0_i32 = arith.constant 0 : i32
    %c0_i32_0 = arith.constant 0 : i32
    %c0_i32_1 = arith.constant 0 : i32
    return %c0_i32, %c0_i32_0 : i32, i32
  }
  func.func @transform_5(%arg0: i32, %arg1: i32) -> (i32, i32) {
    %c0_i32 = arith.constant 0 : i32
    %c0_i32_0 = arith.constant 0 : i32
    %c0_i32_1 = arith.constant 0 : i32
    return %c0_i32, %c0_i32_0 : i32, i32
  }
  func.func @transform_6(%arg0: i32, %arg1: i32) -> (i32, i32) {
    %c0_i32 = arith.constant 0 : i32
    %c0_i32_0 = arith.constant 0 : i32
    %c0_i32_1 = arith.constant 0 : i32
    return %c0_i32, %c0_i32_0 : i32, i32
  }
  func.func @transform_7(%arg0: i32, %arg1: i32) -> (i32, i32, i32) {
    %c0_i32 = arith.constant 0 : i32
    %c0_i32_0 = arith.constant 0 : i32
    return %arg0, %c0_i32, %arg1 : i32, i32, i32
  }
}

</mosaic_0001>

<llo_original>
// kernel: carla_ret_run_train.1
$region0: #{carla_ret_run_train.1}
  #allocation0 [shape = 'u32[]', space=smem, size = 0x4, offset = 0x4, fixed_abs, tag = 'smem constant byte address 0x4 - core index']
  #allocation1 [shape = 'u32[144,128]{1,0:T(1,128)}', space=vmem, size = 0x12000, scoped, tag = 'internal scratch']
  #allocation2 [shape = 'bf16[48,2560]{1,0:T(16,128)(2,1)}', space=vmem, size = 0x3c000, scoped, tag = 'scratch operand']
  %s0 = inlined_call_operand.vmem [shape: f32[4,16,256], index: 0, kind: input, shape index: {}]
  %s1 = inlined_call_operand.vmem [shape: f32[4,3,16,256], index: 1, kind: input, shape index: {}]
  %s2 = inlined_call_operand.hbm [shape: f32[48,256], index: 2, kind: input, shape index: {}]
  %s3 = inlined_call_operand.hbm [shape: bf16[3,32,48], index: 3, kind: input, shape index: {}]
  %s4 = inlined_call_operand.vmem [shape: f32[32,1], index: 4, kind: input, shape index: {}]
  %s5 = inlined_call_operand.hbm [shape: bf16[32,32], index: 5, kind: input, shape index: {}]
  %s6 = inlined_call_operand.vmem [shape: f32[32,1], index: 6, kind: input, shape index: {}]
  %s7 = inlined_call_operand.vmem [shape: f32[4,32,4096], index: 7, kind: output, shape index: {}]
  %s8 = sld [smem:[#allocation0]]
  $region92: #{carla_ret_run_train.1} parent=0
    _
  %s10 = ssub.s32 1, %s8
  %s11 = scalar_select 0, %s10, %s8
  $region1: #{carla_ret_run_train.1} parent=0
    #allocation3 [shape = 'u8[49152]{0}', space=vmem, size = 0xc000, scoped, tag = 'input window, operand 2, single buffered']
    #allocation4 [shape = 's32[2]{0}', space=sflag, size = 0x8, scoped, tag = 'scoped memory for carla_ret_run_train.1']
    #allocation5 [shape = 'u8[24576]{0}', space=vmem, size = 0x6000, scoped, tag = 'input window, operand 3, single buffered']
    #allocation6 [shape = 's32[1]{0}', space=sflag, size = 0x4, scoped, tag = 'scoped memory for carla_ret_run_train.1']
    #allocation7 [shape = 'u8[8192]{0}', space=vmem, size = 0x2000, scoped, tag = 'input window, operand 5, single buffered']
    #allocation8 [shape = 'u8[524288]{0}', space=vmem, size = 0x80000, scoped, tag = 'output window, operand 0']
    %12 = vsyncpa [#allocation4], 0
    %13 = vsyncpa [#allocation6], 0
    loop: start=0, step=1, limit=10
    $region2: #{carla_ret_run_train.1} parent=1 // loop_pre_header
      _
    $region3: #{carla_ret_run_train.1} parent=1 // loop_header
      %s15 = sphi 0, %s19
      %p16 = scmp.ge.s32.totalorder %s15, 10
      %s22 = sphi 0, %s34
      %s23 = sphi 0, %s30
      %s24 = sphi 0, %s22
      %s25 = sphi 0, %s23
      %s26 = sphi 0, %s24
      %s27 = sphi 0, %s25
      %s37 = sphi 0, %s39
      %s40 = sphi 0, %s37
      %s41 = sphi 0, %s40
      %s57 = sphi 0, %s41
      %s63 = sphi 0, %s65
      %s66 = sphi 0, %s63
      %s67 = sphi 0, %s66
      %s83 = sphi 0, %s67
      %s87 = sphi 0, %s87
      %s89 = sphi 0, %s87
      %s90 = sphi 0, %s89
      %s104 = sphi 0, %s90
      %s108 = sphi 0, %s108
      %s110 = sphi 0, %s108
      %s111 = sphi 0, %s110
      %s125 = sphi 0, %s111
      %s129 = sphi 0, %s129
      %s131 = sphi 0, %s129
      %s132 = sphi 0, %s131
      %s146 = sphi 0, %s132
      %s150 = sphi 0, %s150
      %s152 = sphi 0, %s150
      %s153 = sphi 0, %s152
      %s167 = sphi 0, %s153
      %s171 = sphi 0, %s171
      %s173 = sphi 0, %s171
      %s174 = sphi 0, %s173
      %s188 = sphi 0, %s174
      %s196 = sphi 0, %s198
      %s199 = sphi 0, %s196
      %s200 = sphi 0, %s199
      %s216 = sphi 0, %s200
    $region4: #{carla_ret_run_train.1} parent=1 // loop_header_branch
      %18 = sbr.rel (%p16) target = $region8
    $region5: #{carla_ret_run_train.1} parent=1 // loop_body
      %s20 = ssub.s32 %s15, 1
      %s21 = ssub.s32 %s15, 2
      %s28 = sadd.s32 1, %s23
      %p29 = scmp.ge.s32.totalorder %s28, 2
      %s30 = scalar_select %p29, 0, %s28
      %s31 = sadd.s32 1, %s22
      %s32 = scalar_select %p29, %s31, %s22
      %p33 = scmp.ge.s32.totalorder %s32, 4
      %s34 = scalar_select %p33, 0, %s32
      %s35 = ssub.s32 %s22, %s34
      %p36 = scmp.eq.s32.totalorder %s35, 0
      %s38 = sadd.s32 %s37, 1
      %s39 = scalar_select %p36, %s37, %s38
      %p42 = pneg %p36
      %p43 = scmp.eq.s32.totalorder %s15, 7
      %p44 = por %p42, %p43
      %p45 = scmp.ne.s32.totalorder %s37, %s40
      %p46 = scmp.eq.s32.totalorder %s15, 0
      %p47 = por %p45, %p46
      %p48 = scmp.ne.s32.totalorder %s37, %s40
      %p49 = scmp.eq.s32.totalorder %s20, 7
      %p50 = por %p48, %p49
      %p51 = scmp.ne.s32.totalorder %s40, %s41
      %p52 = scmp.eq.s32.totalorder %s20, 0
      %p53 = por %p51, %p52
      %p54 = scmp.ne.s32.totalorder %s40, %s41
      %p55 = scmp.eq.s32.totalorder %s21, 7
      %p56 = por %p54, %p55
      %p58 = scmp.ne.s32.totalorder %s41, %s57
      %p59 = scmp.eq.s32.totalorder %s21, 0
      %p60 = por %p58, %p59
      %s61 = ssub.s32 %s22, %s34
      %p62 = scmp.eq.s32.totalorder %s61, 0
      %s64 = sadd.s32 %s63, 1
      %s65 = scalar_select %p62, %s63, %s64
      %p68 = pneg %p62
      %p69 = scmp.eq.s32.totalorder %s15, 7
      %p70 = por %p68, %p69
      %p71 = scmp.ne.s32.totalorder %s63, %s66
      %p72 = scmp.eq.s32.totalorder %s15, 0
      %p73 = por %p71, %p72
      %p74 = scmp.ne.s32.totalorder %s63, %s66
      %p75 = scmp.eq.s32.totalorder %s20, 7
      %p76 = por %p74, %p75
      %p77 = scmp.ne.s32.totalorder %s66, %s67
      %p78 = scmp.eq.s32.totalorder %s20, 0
      %p79 = por %p77, %p78
      %p80 = scmp.ne.s32.totalorder %s66, %s67
      %p81 = scmp.eq.s32.totalorder %s21, 7
      %p82 = por %p80, %p81
      %p84 = scmp.ne.s32.totalorder %s67, %s83
      %p85 = scmp.eq.s32.totalorder %s21, 0
      %p86 = por %p84, %p85
      %s88 = sadd.s32 %s87, 1
      %p91 = scmp.eq.s32.totalorder %s15, 7
      %p92 = scmp.ne.s32.totalorder %s87, %s89
      %p93 = scmp.eq.s32.totalorder %s15, 0
      %p94 = por %p92, %p93
      %p95 = scmp.ne.s32.totalorder %s87, %s89
      %p96 = scmp.eq.s32.totalorder %s20, 7
      %p97 = por %p95, %p96
      %p98 = scmp.ne.s32.totalorder %s89, %s90
      %p99 = scmp.eq.s32.totalorder %s20, 0
      %p100 = por %p98, %p99
      %p101 = scmp.ne.s32.totalorder %s89, %s90
      %p102 = scmp.eq.s32.totalorder %s21, 7
      %p103 = por %p101, %p102
      %p105 = scmp.ne.s32.totalorder %s90, %s104
      %p106 = scmp.eq.s32.totalorder %s21, 0
      %p107 = por %p105, %p106
      %s109 = sadd.s32 %s108, 1
      %p112 = scmp.eq.s32.totalorder %s15, 7
      %p113 = scmp.ne.s32.totalorder %s108, %s110
      %p114 = scmp.eq.s32.totalorder %s15, 0
      %p115 = por %p113, %p114
      %p116 = scmp.ne.s32.totalorder %s108, %s110
      %p117 = scmp.eq.s32.totalorder %s20, 7
      %p118 = por %p116, %p117
      %p119 = scmp.ne.s32.totalorder %s110, %s111
      %p120 = scmp.eq.s32.totalorder %s20, 0
      %p121 = por %p119, %p120
      %p122 = scmp.ne.s32.totalorder %s110, %s111
      %p123 = scmp.eq.s32.totalorder %s21, 7
      %p124 = por %p122, %p123
      %p126 = scmp.ne.s32.totalorder %s111, %s125
      %p127 = scmp.eq.s32.totalorder %s21, 0
      %p128 = por %p126, %p127
      %s130 = sadd.s32 %s129, 1
      %p133 = scmp.eq.s32.totalorder %s15, 7
      %p134 = scmp.ne.s32.totalorder %s129, %s131
      %p135 = scmp.eq.s32.totalorder %s15, 0
      %p136 = por %p134, %p135
      %p137 = scmp.ne.s32.totalorder %s129, %s131
      %p138 = scmp.eq.s32.totalorder %s20, 7
      %p139 = por %p137, %p138
      %p140 = scmp.ne.s32.totalorder %s131, %s132
      %p141 = scmp.eq.s32.totalorder %s20, 0
      %p142 = por %p140, %p141
      %p143 = scmp.ne.s32.totalorder %s131, %s132
      %p144 = scmp.eq.s32.totalorder %s21, 7
      %p145 = por %p143, %p144
      %p147 = scmp.ne.s32.totalorder %s132, %s146
      %p148 = scmp.eq.s32.totalorder %s21, 0
      %p149 = por %p147, %p148
      %s151 = sadd.s32 %s150, 1
      %p154 = scmp.eq.s32.totalorder %s15, 7
      %p155 = scmp.ne.s32.totalorder %s150, %s152
      %p156 = scmp.eq.s32.totalorder %s15, 0
      %p157 = por %p155, %p156
      %p158 = scmp.ne.s32.totalorder %s150, %s152
      %p159 = scmp.eq.s32.totalorder %s20, 7
      %p160 = por %p158, %p159
      %p161 = scmp.ne.s32.totalorder %s152, %s153
      %p162 = scmp.eq.s32.totalorder %s20, 0
      %p163 = por %p161, %p162
      %p164 = scmp.ne.s32.totalorder %s152, %s153
      %p165 = scmp.eq.s32.totalorder %s21, 7
      %p166 = por %p164, %p165
      %p168 = scmp.ne.s32.totalorder %s153, %s167
      %p169 = scmp.eq.s32.totalorder %s21, 0
      %p170 = por %p168, %p169
      %s172 = sadd.s32 %s171, 1
      %p175 = scmp.eq.s32.totalorder %s15, 7
      %p176 = scmp.ne.s32.totalorder %s171, %s173
      %p177 = scmp.eq.s32.totalorder %s15, 0
      %p178 = por %p176, %p177
      %p179 = scmp.ne.s32.totalorder %s171, %s173
      %p180 = scmp.eq.s32.totalorder %s20, 7
      %p181 = por %p179, %p180
      %p182 = scmp.ne.s32.totalorder %s173, %s174
      %p183 = scmp.eq.s32.totalorder %s20, 0
      %p184 = por %p182, %p183
      %p185 = scmp.ne.s32.totalorder %s173, %s174
      %p186 = scmp.eq.s32.totalorder %s21, 7
      %p187 = por %p185, %p186
      %p189 = scmp.ne.s32.totalorder %s174, %s188
      %p190 = scmp.eq.s32.totalorder %s21, 0
      %p191 = por %p189, %p190
      %s192 = ssub.s32 %s22, %s34
      %s193 = ssub.s32 %s23, %s30
      %s194 = sor.u32 %s192, %s193
      %p195 = scmp.eq.s32.totalorder %s194, 0
      %s197 = sadd.s32 %s196, 1
      %s198 = scalar_select %p195, %s196, %s197
      %p201 = pneg %p195
      %p202 = scmp.eq.s32.totalorder %s15, 7
      %p203 = por %p201, %p202
      %p204 = scmp.ne.s32.totalorder %s196, %s199
      %p205 = scmp.eq.s32.totalorder %s15, 0
      %p206 = por %p204, %p205
      %p207 = scmp.ne.s32.totalorder %s196, %s199
      %p208 = scmp.eq.s32.totalorder %s20, 7
      %p209 = por %p207, %p208
      %p210 = scmp.ne.s32.totalorder %s199, %s200
      %p211 = scmp.eq.s32.totalorder %s20, 0
      %p212 = por %p210, %p211
      %p213 = scmp.ne.s32.totalorder %s199, %s200
      %p214 = scmp.eq.s32.totalorder %s21, 7
      %p215 = por %p213, %p214
      %p217 = scmp.ne.s32.totalorder %s200, %s216
      %p218 = scmp.eq.s32.totalorder %s21, 0
      %p219 = por %p217, %p218
      %p220 = scmp.le.s32.totalorder 1, %s15
      %p221 = scmp.lt.s32.totalorder %s15, 9
      %p222 = pnand %p220, %p221
      %p223 = pneg %p222
      // Predicated region
      $region9: #{carla_ret_run_train.1} parent=5 // pred_check
        _
      $region10: #{carla_ret_run_train.1} parent=5 // pred_check_branch
        %225 = sbr.rel (%p222) target = $region12
      $region11: #{carla_ret_run_train.1} parent=5 // pred_region
        %s226 = ssub.s32 %s15, 1
        // Predicated region
        $region13: #{carla_ret_run_train.1} parent=11 // pred_check
          %p227 = pneg %p100
        $region14: #{carla_ret_run_train.1} parent=11 // pred_check_branch
          %229 = sbr.rel (%p227) target = $region16
        $region15: #{carla_ret_run_train.1} parent=11 // pred_region
          %s231 = ssub.s32 1536, 1536
          %232 = vsyncadd [#allocation4], %s231
          %s233 = sshll.u32 [#allocation3], 4
          %s234 = int_to_ptr.vmem [resolvable:$true] %s233
          %239 = dma.hbm_to_vmem [thread:$0]  %s2, 1536, %s234, [#allocation4], 256, 256, 16
        $region16: #{carla_ret_run_train.1} parent=11 // pred_fallthru
          _
        // Predicated region
        $region17: #{carla_ret_run_train.1} parent=11 // pred_check
          %p240 = pneg %p121
        $region18: #{carla_ret_run_train.1} parent=11 // pred_check_branch
          %242 = sbr.rel (%p240) target = $region20
        $region19: #{carla_ret_run_train.1} parent=11 // pred_region
          %s244 = ssub.s32 768, 768
          %245 = vsyncadd [#allocation6], %s244
          %s246 = sshll.u32 [#allocation5], 4
          %s247 = int_to_ptr.vmem [resolvable:$true] %s246
          %252 = dma.hbm_to_vmem [thread:$0]  %s3, 768, %s247, [#allocation6], 64, 64, 4
        $region20: #{carla_ret_run_train.1} parent=11 // pred_fallthru
          _
        // Predicated region
        $region21: #{carla_ret_run_train.1} parent=11 // pred_check
          %p253 = pneg %p142
        $region22: #{carla_ret_run_train.1} parent=11 // pred_check_branch
          %255 = sbr.rel (%p253) target = $region24
        $region23: #{carla_ret_run_train.1} parent=11 // pred_region
          _
        $region24: #{carla_ret_run_train.1} parent=11 // pred_fallthru
          _
        // Predicated region
        $region25: #{carla_ret_run_train.1} parent=11 // pred_check
          %p256 = pneg %p163
        $region26: #{carla_ret_run_train.1} parent=11 // pred_check_branch
          %258 = sbr.rel (%p256) target = $region28
        $region27: #{carla_ret_run_train.1} parent=11 // pred_region
          %s260 = ssub.s32 256, 256
          %261 = vsyncadd [#allocation6], %s260
          %s262 = sshll.u32 [#allocation7], 4
          %s263 = int_to_ptr.vmem [resolvable:$true] %s262
          %268 = dma.hbm_to_vmem [thread:$0]  %s5, 256, %s263, [#allocation6], 64, 64, 4
        $region28: #{carla_ret_run_train.1} parent=11 // pred_fallthru
          _
        // Predicated region
        $region29: #{carla_ret_run_train.1} parent=11 // pred_check
          %p269 = pneg %p184
        $region30: #{carla_ret_run_train.1} parent=11 // pred_check_branch
          %271 = sbr.rel (%p269) target = $region32
        $region31: #{carla_ret_run_train.1} parent=11 // pred_region
          _
        $region32: #{carla_ret_run_train.1} parent=11 // pred_fallthru
          _
      $region12: #{carla_ret_run_train.1} parent=5 // pred_fallthru
        _
      %p272 = scmp.lt.s32.totalorder %s15, 8
      // Predicated region
      $region33: #{carla_ret_run_train.1} parent=5 // pred_check
        %p273 = pneg %p272
      $region34: #{carla_ret_run_train.1} parent=5 // pred_check_branch
        %275 = sbr.rel (%p273) target = $region36
      $region35: #{carla_ret_run_train.1} parent=5 // pred_region
        // Predicated region
        $region37: #{carla_ret_run_train.1} parent=35 // pred_check
          %p276 = pneg %p47
        $region38: #{carla_ret_run_train.1} parent=35 // pred_check_branch
          %278 = sbr.rel (%p276) target = $region40
        $region39: #{carla_ret_run_train.1} parent=35 // pred_region
          %p279 = scmp.lt.s32.totalorder %s22, 3
          %s280 = scalar_select %p279, %s22, 3
          %s281 = smul.addr %s280, 4
          %s282 = smul.addr %s281, 8
          %s283 = scalar_lea.vmem %s0, %s282
        $region40: #{carla_ret_run_train.1} parent=35 // pred_fallthru
          _
        // Predicated region
        $region41: #{carla_ret_run_train.1} parent=35 // pred_check
          %p284 = pneg %p73
        $region42: #{carla_ret_run_train.1} parent=35 // pred_check_branch
          %286 = sbr.rel (%p284) target = $region44
        $region43: #{carla_ret_run_train.1} parent=35 // pred_region
          %p287 = scmp.lt.s32.totalorder %s22, 3
          %s288 = scalar_select %p287, %s22, 3
          %s289 = smul.addr %s288, 12
          %s290 = smul.addr %s289, 8
          %s291 = scalar_lea.vmem %s1, %s290
        $region44: #{carla_ret_run_train.1} parent=35 // pred_fallthru
          _
      $region36: #{carla_ret_run_train.1} parent=5 // pred_fallthru
        _
      %p292 = scmp.le.s32.totalorder 1, %s15
      %p293 = scmp.lt.s32.totalorder %s15, 9
      %p294 = pnand %p292, %p293
      %p295 = pneg %p294
      // Predicated region
      $region45: #{carla_ret_run_train.1} parent=5 // pred_check
        _
      $region46: #{carla_ret_run_train.1} parent=5 // pred_check_branch
        %297 = sbr.rel (%p294) target = $region48
      $region47: #{carla_ret_run_train.1} parent=5 // pred_region
        %s298 = ssub.s32 %s15, 1
        // Predicated region
        $region49: #{carla_ret_run_train.1} parent=47 // pred_check
          %p299 = pneg %p100
        $region50: #{carla_ret_run_train.1} parent=47 // pred_check_branch
          %301 = sbr.rel (%p299) target = $region52
        $region51: #{carla_ret_run_train.1} parent=47 // pred_region
          %302 = dma.done [#allocation4], 1536
        $region52: #{carla_ret_run_train.1} parent=47 // pred_fallthru
          _
        // Predicated region
        $region53: #{carla_ret_run_train.1} parent=47 // pred_check
          %p303 = pneg %p121
        $region54: #{carla_ret_run_train.1} parent=47 // pred_check_branch
          %305 = sbr.rel (%p303) target = $region56
        $region55: #{carla_ret_run_train.1} parent=47 // pred_region
          %306 = dma.done [#allocation6], 768
        $region56: #{carla_ret_run_train.1} parent=47 // pred_fallthru
          _
        // Predicated region
        $region57: #{carla_ret_run_train.1} parent=47 // pred_check
          %p307 = pneg %p163
        $region58: #{carla_ret_run_train.1} parent=47 // pred_check_branch
          %309 = sbr.rel (%p307) target = $region60
        $region59: #{carla_ret_run_train.1} parent=47 // pred_region
          %310 = dma.done [#allocation6], 256
        $region60: #{carla_ret_run_train.1} parent=47 // pred_fallthru
          _
        %p311 = scmp.lt.s32.totalorder %s24, 3
        %s312 = scalar_select %p311, %s24, 3
        %s313 = smul.addr %s312, 4
        %s314 = smul.addr %s313, 8
        %s315 = scalar_lea.vmem %s0, %s314
        %p316 = pneg %p53
        %p317 = pneg %p50
        %p318 = scmp.lt.s32.totalorder %s24, 3
        %s319 = scalar_select %p318, %s24, 3
        %s320 = smul.addr %s319, 12
        %s321 = smul.addr %s320, 8
        %s322 = scalar_lea.vmem %s1, %s321
        %p323 = pneg %p79
        %p324 = pneg %p76
        %p325 = pneg %p100
        %p326 = pneg %p97
        %p327 = pneg %p121
        %p328 = pneg %p118
        %p329 = pneg %p142
        %p330 = pneg %p139
        %p331 = pneg %p163
        %p332 = pneg %p160
        %p333 = pneg %p184
        %p334 = pneg %p181
        %p335 = pneg %p212
        %p336 = pneg %p209
        %s337 = sand.u32 %s199, 1
        %s338 = sand.u32 %s199, 1
        %s339 = smul.addr %s338, 512
        %s340 = scalar_lea.vmem [#allocation8], %s339
        %p341 = scmp.lt.s32.totalorder %s24, 3
        %s342 = scalar_select %p341, %s24, 3
        %s343 = smul.addr %s342, 4
        %s344 = smul.addr %s343, 8
        %s345 = scalar_lea.vmem %s0, %s344
        %p346 = scmp.lt.s32.totalorder %s24, 3
        %s347 = scalar_select %p346, %s24, 3
        %s348 = smul.addr %s347, 12
        %s349 = smul.addr %s348, 8
        %s350 = scalar_lea.vmem %s1, %s349
        %s351 = smul.u32 16, %s25
        %s353 = smul.u32 %s25, 8
        %s354 = sadd.s32 %s353, 4294967295
        %p355 = scmp.ge.s32.totalorder %s354, 0
        %p356 = scmp.le.s32.totalorder %s354, 15
        %p357 = pnand %p355, %p356
        %p358 = pneg %p357
        %p359 = scmp.gt.s32.totalorder %s354, 0
        %s360 = scalar_select %p359, %s354, 0
        %p361 = scmp.lt.s32.totalorder %s360, 15
        %s362 = scalar_select %p361, %s360, 15
        %s363 = sshra.s32 %s362, 3
        %s364 = sand.u32 %s362, 7
        %s365 = sshra.s32 %s362, 3
        %s366 = sand.u32 %s362, 7
        %s367 = smul.u32 %s363, 2
        %s368 = smul.u32 %s367, 8
        %s369 = sadd.s32 %s368, %s366
        %s370 = scalar_lea.vmem %s345, %s369
        %v371 = vld [vmem:[%s370] ss:$8 sm:$0x3]
        %s372 = scalar_select %p358, 1, 0
        %v373 = vstv %s372
        %vm374 = vcmp.eq.s32.totalorder %v373, 1
        %v375 = vsel %vm374, %v371, 0.0
        %s376 = scalar_lea.vmem %s350, %s369
        %v377 = vld [vmem:[%s376] ss:$8 sm:$0x3]
        %v378 = vmul.f32 %v377, %v375
        %s379 = sadd.s32 32, %s369
        %s380 = scalar_lea.vmem %s350, %s379
        %v381 = vld [vmem:[%s380] ss:$8 sm:$0x3]
        %v382 = vmul.f32 %v381, %v375
        %s383 = sadd.s32 64, %s369
        %s384 = scalar_lea.vmem %s350, %s383
        %v385 = vld [vmem:[%s384] ss:$8 sm:$0x3]
        %v386 = vmul.f32 %v385, %v375
        %v388 = vlaneseq
        %v389 = vshrl.u32 %v388, 7
        %v390 = vsub.s32 0, %v389
        %v391 = vrot.slane %v375, %v390
        %v392 = vlaneseq
        %v393 = vshrl.u32 %v392, 7
        %v394 = vsub.s32 1, %v393
        %v395 = vrot.slane %v375, %v394
        %v399 = vlaneseq
        %v400 = vshrl.u32 %v399, 7
        %v401 = vsub.s32 0, %v400
        %v402 = vrot.slane %v378, %v401
        %v403 = vlaneseq
        %v404 = vshrl.u32 %v403, 7
        %v405 = vsub.s32 1, %v404
        %v406 = vrot.slane %v378, %v405
        %v410 = vlaneseq
        %v411 = vshrl.u32 %v410, 7
        %v412 = vsub.s32 0, %v411
        %v413 = vrot.slane %v382, %v412
        %v414 = vlaneseq
        %v415 = vshrl.u32 %v414, 7
        %v416 = vsub.s32 1, %v415
        %v417 = vrot.slane %v382, %v416
        %v421 = vlaneseq
        %v422 = vshrl.u32 %v421, 7
        %v423 = vsub.s32 0, %v422
        %v424 = vrot.slane %v386, %v423
        %v425 = vlaneseq
        %v426 = vshrl.u32 %v425, 7
        %v427 = vsub.s32 1, %v426
        %v428 = vrot.slane %v386, %v427
        %vm431 = vcmask 1040384
        %v432 = vsel %vm431, %v391, %v402
        %v433 = vsel %vm431, %v395, %v406
        %vm434 = vcmask 1041408
        %v435 = vsel %vm434, %v432, %v413
        %v436 = vsel %vm434, %v433, %v417
        %vm437 = vcmask 1042432
        %v438 = vsel %vm437, %v435, %v424
        %v439 = vsel %vm437, %v436, %v428
        %440 = vrot.lane.b32.xlu0 %v438, 17
        %v441 = vpop.permute.xlu0 %440
        %442 = vrot.lane.b32.xlu0 %v439, 17
        %v443 = vpop.permute.xlu0 %442
        %v444 = vlaneseq
        %v445 = vand.u32 %v444, 127
        %vm446 = vcmp.lt.s32.totalorder %v445, 17
        %v447 = vsel %vm446, %v441, %v443
        %v448 = vsel %vm446, %v443, %v441
        %449 = vrot.lane.b32.xlu0 %v438, 16
        %v450 = vpop.permute.xlu0 %449
        %451 = vrot.lane.b32.xlu0 %v439, 16
        %v452 = vpop.permute.xlu0 %451
        %vm453 = vcmp.lt.s32.totalorder %v445, 16
        %v454 = vsel %vm453, %v450, %v452
        %v455 = vsel %vm453, %v452, %v450
        %456 = vrot.lane.b32.xlu0 %v438, 15
        %v457 = vpop.permute.xlu0 %456
        %458 = vrot.lane.b32.xlu0 %v439, 15
        %v459 = vpop.permute.xlu0 %458
        %vm460 = vcmp.lt.s32.totalorder %v445, 15
        %v461 = vsel %vm460, %v457, %v459
        %v462 = vsel %vm460, %v459, %v457
        %463 = vrot.lane.b32.xlu0 %v438, 1
        %v464 = vpop.permute.xlu0 %463
        %465 = vrot.lane.b32.xlu0 %v439, 1
        %v466 = vpop.permute.xlu0 %465
        %vm467 = vcmp.lt.s32.totalorder %v445, 1
        %v468 = vsel %vm467, %v464, %v466
        %v469 = vsel %vm467, %v466, %v464
        %470 = vrot.lane.b32.xlu0 %v438, 127
        %v471 = vpop.permute.xlu0 %470
        %472 = vrot.lane.b32.xlu0 %v439, 127
        %v473 = vpop.permute.xlu0 %472
        %vm474 = vcmp.lt.s32.totalorder %v445, 127
        %v475 = vsel %vm474, %v471, %v473
        %v476 = vsel %vm474, %v473, %v471
        %477 = vrot.lane.b32.xlu0 %v438, 113
        %v478 = vpop.permute.xlu0 %477
        %479 = vrot.lane.b32.xlu0 %v439, 113
        %v480 = vpop.permute.xlu0 %479
        %vm481 = vcmp.lt.s32.totalorder %v445, 113
        %v482 = vsel %vm481, %v478, %v480
        %v483 = vsel %vm481, %v480, %v478
        %484 = vrot.lane.b32.xlu0 %v438, 112
        %v485 = vpop.permute.xlu0 %484
        %486 = vrot.lane.b32.xlu0 %v439, 112
        %v487 = vpop.permute.xlu0 %486
        %vm488 = vcmp.lt.s32.totalorder %v445, 112
        %v489 = vsel %vm488, %v485, %v487
        %v490 = vsel %vm488, %v487, %v485
        %491 = vrot.lane.b32.xlu0 %v438, 111
        %v492 = vpop.permute.xlu0 %491
        %493 = vrot.lane.b32.xlu0 %v439, 111
        %v494 = vpop.permute.xlu0 %493
        %vm495 = vcmp.lt.s32.totalorder %v445, 111
        %v496 = vsel %vm495, %v492, %v494
        %v497 = vsel %vm495, %v494, %v492
        %v500 = vrot.slane %v455, 4
        %v501 = vrot.slane %v454, 4
        %v506 = vrot.slane %v469, 4
        %v507 = vrot.slane %v468, 4
        %v512 = vrot.slane %v475, 4
        %v513 = vrot.slane %v476, 4
        %v518 = vrot.slane %v489, 4
        %v519 = vrot.slane %v490, 4
        %vm522 = vcmask 1043456
        %v523 = vsel %vm522, %v448, %v500
        %v524 = vsel %vm522, %v447, %v501
        %v525 = vsel %vm522, %v462, %v506
        %v526 = vsel %vm522, %v461, %v507
        %v527 = vsel %vm522, %v438, %v512
        %v528 = vsel %vm522, %v439, %v513
        %v529 = vsel %vm522, %v482, %v518
        %v530 = vsel %vm522, %v483, %v519
        %v531 = vsel %vm522, %v496, 0.0
        %v532 = vsel %vm522, %v497, 0.0
        %v533 = vld [vmem:[#allocation3] sm:$0xff]
        %v534 = vld [vmem:[#allocation3 + $0x8] sm:$0xff]
        %v535 = vld [vmem:[#allocation3 + $0x10] sm:$0xff]
        %v536 = vld [vmem:[#allocation3 + $0x18] sm:$0xff]
        %v537 = vld [vmem:[#allocation3 + $0x20] sm:$0xff]
        %v538 = vld [vmem:[#allocation3 + $0x28] sm:$0xff]
        %v539 = vld [vmem:[#allocation3 + $0x30] sm:$0xff]
        %v540 = vld [vmem:[#allocation3 + $0x38] sm:$0xff]
        %v541 = vld [vmem:[#allocation3 + $0x40] sm:$0xff]
        %v542 = vld [vmem:[#allocation3 + $0x48] sm:$0xff]
        %v543 = vld [vmem:[#allocation3 + $0x50] sm:$0xff]
        %v544 = vld [vmem:[#allocation3 + $0x58] sm:$0xff]
        %v545 = vmul.f32 %v523, %v533
        %v546 = vmul.f32 %v524, %v534
        %v547 = vmul.f32 %v525, %v535
        %v548 = vmul.f32 %v526, %v536
        %v549 = vmul.f32 %v527, %v537
        %v550 = vmul.f32 %v528, %v538
        %v551 = vmul.f32 %v529, %v539
        %v552 = vmul.f32 %v530, %v540
        %v553 = vmul.f32 %v531, %v541
        %v554 = vmul.f32 %v532, %v542
        %v555 = vmul.f32 %v543, 0.0
        %v556 = vmul.f32 %v544, 0.0
        %v557 = vpack.c.bf16 %v547, %v545
        %v558 = vpack.c.bf16 %v548, %v546
        %v559 = vpack.c.bf16 %v551, %v549
        %v560 = vpack.c.bf16 %v552, %v550
        %v561 = vpack.c.bf16 %v555, %v553
        %v562 = vpack.c.bf16 %v556, %v554
        %563 = vst [vmem:[#allocation2] sm:$0xff] %v557
        %564 = vst [vmem:[#allocation2 + $0x8] sm:$0xff] %v558
        %565 = vst [vmem:[#allocation2 + $0xa0] sm:$0xff] %v559
        %566 = vst [vmem:[#allocation2 + $0xa8] sm:$0xff] %v560
        %567 = vst [vmem:[#allocation2 + $0x140] sm:$0xff] %v561
        %568 = vst [vmem:[#allocation2 + $0x148] sm:$0xff] %v562
        %p569 = scmp.ge.s32.totalorder %s353, 0
        %p570 = scmp.le.s32.totalorder %s353, 15
        %p571 = pnand %p569, %p570
        %p572 = pneg %p571
        %p573 = scmp.gt.s32.totalorder %s353, 0
        %s574 = scalar_select %p573, %s353, 0
        %p575 = scmp.lt.s32.totalorder %s574, 15
        %s576 = scalar_select %p575, %s574, 15
        %s577 = sshra.s32 %s576, 3
        %s578 = sand.u32 %s576, 7
        %s579 = sshra.s32 %s576, 3
        %s580 = sand.u32 %s576, 7
        %s581 = smul.u32 %s577, 2
        %s582 = smul.u32 %s581, 8
        %s583 = sadd.s32 %s582, %s580
        %s584 = scalar_lea.vmem %s345, %s583
        %v585 = vld [vmem:[%s584] ss:$8 sm:$0x3]
        %s586 = scalar_select %p572, 1, 0
        %v587 = vstv %s586
        %vm588 = vcmp.eq.s32.totalorder %v587, 1
        %v589 = vsel %vm588, %v585, 0.0
        %s590 = scalar_lea.vmem %s350, %s583
        %v591 = vld [vmem:[%s590] ss:$8 sm:$0x3]
        %v592 = vmul.f32 %v591, %v589
        %s593 = sadd.s32 32, %s583
        %s594 = scalar_lea.vmem %s350, %s593
        %v595 = vld [vmem:[%s594] ss:$8 sm:$0x3]
        %v596 = vmul.f32 %v595, %v589
        %s597 = sadd.s32 64, %s583
        %s598 = scalar_lea.vmem %s350, %s597
        %v599 = vld [vmem:[%s598] ss:$8 sm:$0x3]
        %v600 = vmul.f32 %v599, %v589
        %v602 = vlaneseq
        %v603 = vshrl.u32 %v602, 7
        %v604 = vsub.s32 0, %v603
        %v605 = vrot.slane %v589, %v604
        %v606 = vlaneseq
        %v607 = vshrl.u32 %v606, 7
        %v608 = vsub.s32 1, %v607
        %v609 = vrot.slane %v589, %v608
        %v613 = vlaneseq
        %v614 = vshrl.u32 %v613, 7
        %v615 = vsub.s32 0, %v614
        %v616 = vrot.slane %v592, %v615
        %v617 = vlaneseq
        %v618 = vshrl.u32 %v617, 7
        %v619 = vsub.s32 1, %v618
        %v620 = vrot.slane %v592, %v619
        %v624 = vlaneseq
        %v625 = vshrl.u32 %v624, 7
        %v626 = vsub.s32 0, %v625
        %v627 = vrot.slane %v596, %v626
        %v628 = vlaneseq
        %v629 = vshrl.u32 %v628, 7
        %v630 = vsub.s32 1, %v629
        %v631 = vrot.slane %v596, %v630
        %v635 = vlaneseq
        %v636 = vshrl.u32 %v635, 7
        %v637 = vsub.s32 0, %v636
        %v638 = vrot.slane %v600, %v637
        %v639 = vlaneseq
        %v640 = vshrl.u32 %v639, 7
        %v641 = vsub.s32 1, %v640
        %v642 = vrot.slane %v600, %v641
        %v645 = vsel %vm431, %v605, %v616
        %v646 = vsel %vm431, %v609, %v620
        %v647 = vsel %vm434, %v645, %v627
        %v648 = vsel %vm434, %v646, %v631
        %v649 = vsel %vm437, %v647, %v638
        %v650 = vsel %vm437, %v648, %v642
        %651 = vrot.lane.b32.xlu0 %v649, 17
        %v652 = vpop.permute.xlu0 %651
        %653 = vrot.lane.b32.xlu0 %v650, 17
        %v654 = vpop.permute.xlu0 %653
        %v655 = vsel %vm446, %v652, %v654
        %v656 = vsel %vm446, %v654, %v652
        %657 = vrot.lane.b32.xlu0 %v649, 16
        %v658 = vpop.permute.xlu0 %657
        %659 = vrot.lane.b32.xlu0 %v650, 16
        %v660 = vpop.permute.xlu0 %659
        %v661 = vsel %vm453, %v658, %v660
        %v662 = vsel %vm453, %v660, %v658
        %663 = vrot.lane.b32.xlu0 %v649, 15
        %v664 = vpop.permute.xlu0 %663
        %665 = vrot.lane.b32.xlu0 %v650, 15
        %v666 = vpop.permute.xlu0 %665
        %v667 = vsel %vm460, %v664, %v666
        %v668 = vsel %vm460, %v666, %v664
        %669 = vrot.lane.b32.xlu0 %v649, 1
        %v670 = vpop.permute.xlu0 %669
        %671 = vrot.lane.b32.xlu0 %v650, 1
        %v672 = vpop.permute.xlu0 %671
        %v673 = vsel %vm467, %v670, %v672
        %v674 = vsel %vm467, %v672, %v670
        %675 = vrot.lane.b32.xlu0 %v649, 127
        %v676 = vpop.permute.xlu0 %675
        %677 = vrot.lane.b32.xlu0 %v650, 127
        %v678 = vpop.permute.xlu0 %677
        %v679 = vsel %vm474, %v676, %v678
        %v680 = vsel %vm474, %v678, %v676
        %681 = vrot.lane.b32.xlu0 %v649, 113
        %v682 = vpop.permute.xlu0 %681
        %683 = vrot.lane.b32.xlu0 %v650, 113
        %v684 = vpop.permute.xlu0 %683
        %v685 = vsel %vm481, %v682, %v684
        %v686 = vsel %vm481, %v684, %v682
        %687 = vrot.lane.b32.xlu0 %v649, 112
        %v688 = vpop.permute.xlu0 %687
        %689 = vrot.lane.b32.xlu0 %v650, 112
        %v690 = vpop.permute.xlu0 %689
        %v691 = vsel %vm488, %v688, %v690
        %v692 = vsel %vm488, %v690, %v688
        %693 = vrot.lane.b32.xlu0 %v649, 111
        %v694 = vpop.permute.xlu0 %693
        %695 = vrot.lane.b32.xlu0 %v650, 111
        %v696 = vpop.permute.xlu0 %695
        %v697 = vsel %vm495, %v694, %v696
        %v698 = vsel %vm495, %v696, %v694
        %v701 = vrot.slane %v662, 4
        %v702 = vrot.slane %v661, 4
        %v707 = vrot.slane %v674, 4
        %v708 = vrot.slane %v673, 4
        %v713 = vrot.slane %v679, 4
        %v714 = vrot.slane %v680, 4
        %v719 = vrot.slane %v691, 4
        %v720 = vrot.slane %v692, 4
        %v723 = vsel %vm522, %v656, %v701
        %v724 = vsel %vm522, %v655, %v702
        %v725 = vsel %vm522, %v668, %v707
        %v726 = vsel %vm522, %v667, %v708
        %v727 = vsel %vm522, %v649, %v713
        %v728 = vsel %vm522, %v650, %v714
        %v729 = vsel %vm522, %v685, %v719
        %v730 = vsel %vm522, %v686, %v720
        %v731 = vsel %vm522, %v697, 0.0
        %v732 = vsel %vm522, %v698, 0.0
        %v733 = vld [vmem:[#allocation3] sm:$0xff]
        %v734 = vld [vmem:[#allocation3 + $0x8] sm:$0xff]
        %v735 = vld [vmem:[#allocation3 + $0x10] sm:$0xff]
        %v736 = vld [vmem:[#allocation3 + $0x18] sm:$0xff]
        %v737 = vld [vmem:[#allocation3 + $0x20] sm:$0xff]
        %v738 = vld [vmem:[#allocation3 + $0x28] sm:$0xff]
        %v739 = vld [vmem:[#allocation3 + $0x30] sm:$0xff]
        %v740 = vld [vmem:[#allocation3 + $0x38] sm:$0xff]
        %v741 = vld [vmem:[#allocation3 + $0x40] sm:$0xff]
        %v742 = vld [vmem:[#allocation3 + $0x48] sm:$0xff]
        %v743 = vld [vmem:[#allocation3 + $0x50] sm:$0xff]
        %v744 = vld [vmem:[#allocation3 + $0x58] sm:$0xff]
        %v745 = vmul.f32 %v723, %v733
        %v746 = vmul.f32 %v724, %v734
        %v747 = vmul.f32 %v725, %v735
        %v748 = vmul.f32 %v726, %v736
        %v749 = vmul.f32 %v727, %v737
        %v750 = vmul.f32 %v728, %v738
        %v751 = vmul.f32 %v729, %v739
        %v752 = vmul.f32 %v730, %v740
        %v753 = vmul.f32 %v731, %v741
        %v754 = vmul.f32 %v732, %v742
        %v755 = vmul.f32 %v743, 0.0
        %v756 = vmul.f32 %v744, 0.0
        %v757 = vpack.c.bf16 %v747, %v745
        %v758 = vpack.c.bf16 %v748, %v746
        %v759 = vpack.c.bf16 %v751, %v749
        %v760 = vpack.c.bf16 %v752, %v750
        %v761 = vpack.c.bf16 %v755, %v753
        %v762 = vpack.c.bf16 %v756, %v754
        %763 = vst [vmem:[#allocation2 + $0x10] sm:$0xff] %v757
        %764 = vst [vmem:[#allocation2 + $0x18] sm:$0xff] %v758
        %765 = vst [vmem:[#allocation2 + $0xb0] sm:$0xff] %v759
        %766 = vst [vmem:[#allocation2 + $0xb8] sm:$0xff] %v760
        %767 = vst [vmem:[#allocation2 + $0x150] sm:$0xff] %v761
        %768 = vst [vmem:[#allocation2 + $0x158] sm:$0xff] %v762
        %s769 = sadd.s32 %s353, 1
        %p770 = scmp.ge.s32.totalorder %s769, 0
        %p771 = scmp.le.s32.totalorder %s769, 15
        %p772 = pnand %p770, %p771
        %p773 = pneg %p772
        %p774 = scmp.gt.s32.totalorder %s769, 0
        %s775 = scalar_select %p774, %s769, 0
        %p776 = scmp.lt.s32.totalorder %s775, 15
        %s777 = scalar_select %p776, %s775, 15
        %s778 = sshra.s32 %s777, 3
        %s779 = sand.u32 %s777, 7
        %s780 = sshra.s32 %s777, 3
        %s781 = sand.u32 %s777, 7
        %s782 = smul.u32 %s778, 2
        %s783 = smul.u32 %s782, 8
        %s784 = sadd.s32 %s783, %s781
        %s785 = scalar_lea.vmem %s345, %s784
        %v786 = vld [vmem:[%s785] ss:$8 sm:$0x3]
        %s787 = scalar_select %p773, 1, 0
        %v788 = vstv %s787
        %vm789 = vcmp.eq.s32.totalorder %v788, 1
        %v790 = vsel %vm789, %v786, 0.0
        %s791 = scalar_lea.vmem %s350, %s784
        %v792 = vld [vmem:[%s791] ss:$8 sm:$0x3]
        %v793 = vmul.f32 %v792, %v790
        %s794 = sadd.s32 32, %s784
        %s795 = scalar_lea.vmem %s350, %s794
        %v796 = vld [vmem:[%s795] ss:$8 sm:$0x3]
        %v797 = vmul.f32 %v796, %v790
        %s798 = sadd.s32 64, %s784
        %s799 = scalar_lea.vmem %s350, %s798
        %v800 = vld [vmem:[%s799] ss:$8 sm:$0x3]
        %v801 = vmul.f32 %v800, %v790
        %v803 = vlaneseq
        %v804 = vshrl.u32 %v803, 7
        %v805 = vsub.s32 0, %v804
        %v806 = vrot.slane %v790, %v805
        %v807 = vlaneseq
        %v808 = vshrl.u32 %v807, 7
        %v809 = vsub.s32 1, %v808
        %v810 = vrot.slane %v790, %v809
        %v814 = vlaneseq
        %v815 = vshrl.u32 %v814, 7
        %v816 = vsub.s32 0, %v815
        %v817 = vrot.slane %v793, %v816
        %v818 = vlaneseq
        %v819 = vshrl.u32 %v818, 7
        %v820 = vsub.s32 1, %v819
        %v821 = vrot.slane %v793, %v820
        %v825 = vlaneseq
        %v826 = vshrl.u32 %v825, 7
        %v827 = vsub.s32 0, %v826
        %v828 = vrot.slane %v797, %v827
        %v829 = vlaneseq
        %v830 = vshrl.u32 %v829, 7
        %v831 = vsub.s32 1, %v830
        %v832 = vrot.slane %v797, %v831
        %v836 = vlaneseq
        %v837 = vshrl.u32 %v836, 7
        %v838 = vsub.s32 0, %v837
        %v839 = vrot.slane %v801, %v838
        %v840 = vlaneseq
        %v841 = vshrl.u32 %v840, 7
        %v842 = vsub.s32 1, %v841
        %v843 = vrot.slane %v801, %v842
        %v846 = vsel %vm431, %v806, %v817
        %v847 = vsel %vm431, %v810, %v821
        %v848 = vsel %vm434, %v846, %v828
        %v849 = vsel %vm434, %v847, %v832
        %v850 = vsel %vm437, %v848, %v839
        %v851 = vsel %vm437, %v849, %v843
        %852 = vrot.lane.b32.xlu0 %v850, 17
        %v853 = vpop.permute.xlu0 %852
        %854 = vrot.lane.b32.xlu0 %v851, 17
        %v855 = vpop.permute.xlu0 %854
        %v856 = vsel %vm446, %v853, %v855
        %v857 = vsel %vm446, %v855, %v853
        %858 = vrot.lane.b32.xlu0 %v850, 16
        %v859 = vpop.permute.xlu0 %858
        %860 = vrot.lane.b32.xlu0 %v851, 16
        %v861 = vpop.permute.xlu0 %860
        %v862 = vsel %vm453, %v859, %v861
        %v863 = vsel %vm453, %v861, %v859
        %864 = vrot.lane.b32.xlu0 %v850, 15
        %v865 = vpop.permute.xlu0 %864
        %866 = vrot.lane.b32.xlu0 %v851, 15
        %v867 = vpop.permute.xlu0 %866
        %v868 = vsel %vm460, %v865, %v867
        %v869 = vsel %vm460, %v867, %v865
        %870 = vrot.lane.b32.xlu0 %v850, 1
        %v871 = vpop.permute.xlu0 %870
        %872 = vrot.lane.b32.xlu0 %v851, 1
        %v873 = vpop.permute.xlu0 %872
        %v874 = vsel %vm467, %v871, %v873
        %v875 = vsel %vm467, %v873, %v871
        %876 = vrot.lane.b32.xlu0 %v850, 127
        %v877 = vpop.permute.xlu0 %876
        %878 = vrot.lane.b32.xlu0 %v851, 127
        %v879 = vpop.permute.xlu0 %878
        %v880 = vsel %vm474, %v877, %v879
        %v881 = vsel %vm474, %v879, %v877
        %882 = vrot.lane.b32.xlu0 %v850, 113
        %v883 = vpop.permute.xlu0 %882
        %884 = vrot.lane.b32.xlu0 %v851, 113
        %v885 = vpop.permute.xlu0 %884
        %v886 = vsel %vm481, %v883, %v885
        %v887 = vsel %vm481, %v885, %v883
        %888 = vrot.lane.b32.xlu0 %v850, 112
        %v889 = vpop.permute.xlu0 %888
        %890 = vrot.lane.b32.xlu0 %v851, 112
        %v891 = vpop.permute.xlu0 %890
        %v892 = vsel %vm488, %v889, %v891
        %v893 = vsel %vm488, %v891, %v889
        %894 = vrot.lane.b32.xlu0 %v850, 111
        %v895 = vpop.permute.xlu0 %894
        %896 = vrot.lane.b32.xlu0 %v851, 111
        %v897 = vpop.permute.xlu0 %896
        %v898 = vsel %vm495, %v895, %v897
        %v899 = vsel %vm495, %v897, %v895
        %v902 = vrot.slane %v863, 4
        %v903 = vrot.slane %v862, 4
        %v908 = vrot.slane %v875, 4
        %v909 = vrot.slane %v874, 4
        %v914 = vrot.slane %v880, 4
        %v915 = vrot.slane %v881, 4
        %v920 = vrot.slane %v892, 4
        %v921 = vrot.slane %v893, 4
        %v924 = vsel %vm522, %v857, %v902
        %v925 = vsel %vm522, %v856, %v903
        %v926 = vsel %vm522, %v869, %v908
        %v927 = vsel %vm522, %v868, %v909
        %v928 = vsel %vm522, %v850, %v914
        %v929 = vsel %vm522, %v851, %v915
        %v930 = vsel %vm522, %v886, %v920
        %v931 = vsel %vm522, %v887, %v921
        %v932 = vsel %vm522, %v898, 0.0
        %v933 = vsel %vm522, %v899, 0.0
        %v934 = vld [vmem:[#allocation3] sm:$0xff]
        %v935 = vld [vmem:[#allocation3 + $0x8] sm:$0xff]
        %v936 = vld [vmem:[#allocation3 + $0x10] sm:$0xff]
        %v937 = vld [vmem:[#allocation3 + $0x18] sm:$0xff]
        %v938 = vld [vmem:[#allocation3 + $0x20] sm:$0xff]
        %v939 = vld [vmem:[#allocation3 + $0x28] sm:$0xff]
        %v940 = vld [vmem:[#allocation3 + $0x30] sm:$0xff]
        %v941 = vld [vmem:[#allocation3 + $0x38] sm:$0xff]
        %v942 = vld [vmem:[#allocation3 + $0x40] sm:$0xff]
        %v943 = vld [vmem:[#allocation3 + $0x48] sm:$0xff]
        %v944 = vld [vmem:[#allocation3 + $0x50] sm:$0xff]
        %v945 = vld [vmem:[#allocation3 + $0x58] sm:$0xff]
        %v946 = vmul.f32 %v924, %v934
        %v947 = vmul.f32 %v925, %v935
        %v948 = vmul.f32 %v926, %v936
        %v949 = vmul.f32 %v927, %v937
        %v950 = vmul.f32 %v928, %v938
        %v951 = vmul.f32 %v929, %v939
        %v952 = vmul.f32 %v930, %v940
        %v953 = vmul.f32 %v931, %v941
        %v954 = vmul.f32 %v932, %v942
        %v955 = vmul.f32 %v933, %v943
        %v956 = vmul.f32 %v944, 0.0
        %v957 = vmul.f32 %v945, 0.0
        %v958 = vpack.c.bf16 %v948, %v946
        %v959 = vpack.c.bf16 %v949, %v947
        %v960 = vpack.c.bf16 %v952, %v950
        %v961 = vpack.c.bf16 %v953, %v951
        %v962 = vpack.c.bf16 %v956, %v954
        %v963 = vpack.c.bf16 %v957, %v955
        %964 = vst [vmem:[#allocation2 + $0x20] sm:$0xff] %v958
        %965 = vst [vmem:[#allocation2 + $0x28] sm:$0xff] %v959
        %966 = vst [vmem:[#allocation2 + $0xc0] sm:$0xff] %v960
        %967 = vst [vmem:[#allocation2 + $0xc8] sm:$0xff] %v961
        %968 = vst [vmem:[#allocation2 + $0x160] sm:$0xff] %v962
        %969 = vst [vmem:[#allocation2 + $0x168] sm:$0xff] %v963
        %s970 = sadd.s32 %s353, 2
        %p971 = scmp.ge.s32.totalorder %s970, 0
        %p972 = scmp.le.s32.totalorder %s970, 15
        %p973 = pnand %p971, %p972
        %p974 = pneg %p973
        %p975 = scmp.gt.s32.totalorder %s970, 0
        %s976 = scalar_select %p975, %s970, 0
        %p977 = scmp.lt.s32.totalorder %s976, 15
        %s978 = scalar_select %p977, %s976, 15
        %s979 = sshra.s32 %s978, 3
        %s980 = sand.u32 %s978, 7
        %s981 = sshra.s32 %s978, 3
        %s982 = sand.u32 %s978, 7
        %s983 = smul.u32 %s979, 2
        %s984 = smul.u32 %s983, 8
        %s985 = sadd.s32 %s984, %s982
        %s986 = scalar_lea.vmem %s345, %s985
        %v987 = vld [vmem:[%s986] ss:$8 sm:$0x3]
        %s988 = scalar_select %p974, 1, 0
        %v989 = vstv %s988
        %vm990 = vcmp.eq.s32.totalorder %v989, 1
        %v991 = vsel %vm990, %v987, 0.0
        %s992 = scalar_lea.vmem %s350, %s985
        %v993 = vld [vmem:[%s992] ss:$8 sm:$0x3]
        %v994 = vmul.f32 %v993, %v991
        %s995 = sadd.s32 32, %s985
        %s996 = scalar_lea.vmem %s350, %s995
        %v997 = vld [vmem:[%s996] ss:$8 sm:$0x3]
        %v998 = vmul.f32 %v997, %v991
        %s999 = sadd.s32 64, %s985
        %s1000 = scalar_lea.vmem %s350, %s999
        %v1001 = vld [vmem:[%s1000] ss:$8 sm:$0x3]
        %v1002 = vmul.f32 %v1001, %v991
        %v1004 = vlaneseq
        %v1005 = vshrl.u32 %v1004, 7
        %v1006 = vsub.s32 0, %v1005
        %v1007 = vrot.slane %v991, %v1006
        %v1008 = vlaneseq
        %v1009 = vshrl.u32 %v1008, 7
        %v1010 = vsub.s32 1, %v1009
        %v1011 = vrot.slane %v991, %v1010
        %v1015 = vlaneseq
        %v1016 = vshrl.u32 %v1015, 7
        %v1017 = vsub.s32 0, %v1016
        %v1018 = vrot.slane %v994, %v1017
        %v1019 = vlaneseq
        %v1020 = vshrl.u32 %v1019, 7
        %v1021 = vsub.s32 1, %v1020
        %v1022 = vrot.slane %v994, %v1021
        %v1026 = vlaneseq
        %v1027 = vshrl.u32 %v1026, 7
        %v1028 = vsub.s32 0, %v1027
        %v1029 = vrot.slane %v998, %v1028
        %v1030 = vlaneseq
        %v1031 = vshrl.u32 %v1030, 7
        %v1032 = vsub.s32 1, %v1031
        %v1033 = vrot.slane %v998, %v1032
        %v1037 = vlaneseq
        %v1038 = vshrl.u32 %v1037, 7
        %v1039 = vsub.s32 0, %v1038
        %v1040 = vrot.slane %v1002, %v1039
        %v1041 = vlaneseq
        %v1042 = vshrl.u32 %v1041, 7
        %v1043 = vsub.s32 1, %v1042
        %v1044 = vrot.slane %v1002, %v1043
        %v1047 = vsel %vm431, %v1007, %v1018
        %v1048 = vsel %vm431, %v1011, %v1022
        %v1049 = vsel %vm434, %v1047, %v1029
        %v1050 = vsel %vm434, %v1048, %v1033
        %v1051 = vsel %vm437, %v1049, %v1040
        %v1052 = vsel %vm437, %v1050, %v1044
        %1053 = vrot.lane.b32.xlu0 %v1051, 17
        %v1054 = vpop.permute.xlu0 %1053
        %1055 = vrot.lane.b32.xlu0 %v1052, 17
        %v1056 = vpop.permute.xlu0 %1055
        %v1057 = vsel %vm446, %v1054, %v1056
        %v1058 = vsel %vm446, %v1056, %v1054
        %1059 = vrot.lane.b32.xlu0 %v1051, 16
        %v1060 = vpop.permute.xlu0 %1059
        %1061 = vrot.lane.b32.xlu0 %v1052, 16
        %v1062 = vpop.permute.xlu0 %1061
        %v1063 = vsel %vm453, %v1060, %v1062
        %v1064 = vsel %vm453, %v1062, %v1060
        %1065 = vrot.lane.b32.xlu0 %v1051, 15
        %v1066 = vpop.permute.xlu0 %1065
        %1067 = vrot.lane.b32.xlu0 %v1052, 15
        %v1068 = vpop.permute.xlu0 %1067
        %v1069 = vsel %vm460, %v1066, %v1068
        %v1070 = vsel %vm460, %v1068, %v1066
        %1071 = vrot.lane.b32.xlu0 %v1051, 1
        %v1072 = vpop.permute.xlu0 %1071
        %1073 = vrot.lane.b32.xlu0 %v1052, 1
        %v1074 = vpop.permute.xlu0 %1073
        %v1075 = vsel %vm467, %v1072, %v1074
        %v1076 = vsel %vm467, %v1074, %v1072
        %1077 = vrot.lane.b32.xlu0 %v1051, 127
        %v1078 = vpop.permute.xlu0 %1077
        %1079 = vrot.lane.b32.xlu0 %v1052, 127
        %v1080 = vpop.permute.xlu0 %1079
        %v1081 = vsel %vm474, %v1078, %v1080
        %v1082 = vsel %vm474, %v1080, %v1078
        %1083 = vrot.lane.b32.xlu0 %v1051, 113
        %v1084 = vpop.permute.xlu0 %1083
        %1085 = vrot.lane.b32.xlu0 %v1052, 113
        %v1086 = vpop.permute.xlu0 %1085
        %v1087 = vsel %vm481, %v1084, %v1086
        %v1088 = vsel %vm481, %v1086, %v1084
        %1089 = vrot.lane.b32.xlu0 %v1051, 112
        %v1090 = vpop.permute.xlu0 %1089
        %1091 = vrot.lane.b32.xlu0 %v1052, 112
        %v1092 = vpop.permute.xlu0 %1091
        %v1093 = vsel %vm488, %v1090, %v1092
        %v1094 = vsel %vm488, %v1092, %v1090
        %1095 = vrot.lane.b32.xlu0 %v1051, 111
        %v1096 = vpop.permute.xlu0 %1095
        %1097 = vrot.lane.b32.xlu0 %v1052, 111
        %v1098 = vpop.permute.xlu0 %1097
        %v1099 = vsel %vm495, %v1096, %v1098
        %v1100 = vsel %vm495, %v1098, %v1096
        %v1103 = vrot.slane %v1064, 4
        %v1104 = vrot.slane %v1063, 4
        %v1109 = vrot.slane %v1076, 4
        %v1110 = vrot.slane %v1075, 4
        %v1115 = vrot.slane %v1081, 4
        %v1116 = vrot.slane %v1082, 4
        %v1121 = vrot.slane %v1093, 4
        %v1122 = vrot.slane %v1094, 4
        %v1125 = vsel %vm522, %v1058, %v1103
        %v1126 = vsel %vm522, %v1057, %v1104
        %v1127 = vsel %vm522, %v1070, %v1109
        %v1128 = vsel %vm522, %v1069, %v1110
        %v1129 = vsel %vm522, %v1051, %v1115
        %v1130 = vsel %vm522, %v1052, %v1116
        %v1131 = vsel %vm522, %v1087, %v1121
        %v1132 = vsel %vm522, %v1088, %v1122
        %v1133 = vsel %vm522, %v1099, 0.0
        %v1134 = vsel %vm522, %v1100, 0.0
        %v1135 = vld [vmem:[#allocation3] sm:$0xff]
        %v1136 = vld [vmem:[#allocation3 + $0x8] sm:$0xff]
        %v1137 = vld [vmem:[#allocation3 + $0x10] sm:$0xff]
        %v1138 = vld [vmem:[#allocation3 + $0x18] sm:$0xff]
        %v1139 = vld [vmem:[#allocation3 + $0x20] sm:$0xff]
        %v1140 = vld [vmem:[#allocation3 + $0x28] sm:$0xff]
        %v1141 = vld [vmem:[#allocation3 + $0x30] sm:$0xff]
        %v1142 = vld [vmem:[#allocation3 + $0x38] sm:$0xff]
        %v1143 = vld [vmem:[#allocation3 + $0x40] sm:$0xff]
        %v1144 = vld [vmem:[#allocation3 + $0x48] sm:$0xff]
        %v1145 = vld [vmem:[#allocation3 + $0x50] sm:$0xff]
        %v1146 = vld [vmem:[#allocation3 + $0x58] sm:$0xff]
        %v1147 = vmul.f32 %v1125, %v1135
        %v1148 = vmul.f32 %v1126, %v1136
        %v1149 = vmul.f32 %v1127, %v1137
        %v1150 = vmul.f32 %v1128, %v1138
        %v1151 = vmul.f32 %v1129, %v1139
        %v1152 = vmul.f32 %v1130, %v1140
        %v1153 = vmul.f32 %v1131, %v1141
        %v1154 = vmul.f32 %v1132, %v1142
        %v1155 = vmul.f32 %v1133, %v1143
        %v1156 = vmul.f32 %v1134, %v1144
        %v1157 = vmul.f32 %v1145, 0.0
        %v1158 = vmul.f32 %v1146, 0.0
        %v1159 = vpack.c.bf16 %v1149, %v1147
        %v1160 = vpack.c.bf16 %v1150, %v1148
        %v1161 = vpack.c.bf16 %v1153, %v1151
        %v1162 = vpack.c.bf16 %v1154, %v1152
        %v1163 = vpack.c.bf16 %v1157, %v1155
        %v1164 = vpack.c.bf16 %v1158, %v1156
        %1165 = vst [vmem:[#allocation2 + $0x30] sm:$0xff] %v1159
        %1166 = vst [vmem:[#allocation2 + $0x38] sm:$0xff] %v1160
        %1167 = vst [vmem:[#allocation2 + $0xd0] sm:$0xff] %v1161
        %1168 = vst [vmem:[#allocation2 + $0xd8] sm:$0xff] %v1162
        %1169 = vst [vmem:[#allocation2 + $0x170] sm:$0xff] %v1163
        %1170 = vst [vmem:[#allocation2 + $0x178] sm:$0xff] %v1164
        %s1171 = sadd.s32 %s353, 3
        %p1172 = scmp.ge.s32.totalorder %s1171, 0
        %p1173 = scmp.le.s32.totalorder %s1171, 15
        %p1174 = pnand %p1172, %p1173
        %p1175 = pneg %p1174
        %p1176 = scmp.gt.s32.totalorder %s1171, 0
        %s1177 = scalar_select %p1176, %s1171, 0
        %p1178 = scmp.lt.s32.totalorder %s1177, 15
        %s1179 = scalar_select %p1178, %s1177, 15
        %s1180 = sshra.s32 %s1179, 3
        %s1181 = sand.u32 %s1179, 7
        %s1182 = sshra.s32 %s1179, 3
        %s1183 = sand.u32 %s1179, 7
        %s1184 = smul.u32 %s1180, 2
        %s1185 = smul.u32 %s1184, 8
        %s1186 = sadd.s32 %s1185, %s1183
        %s1187 = scalar_lea.vmem %s345, %s1186
        %v1188 = vld [vmem:[%s1187] ss:$8 sm:$0x3]
        %s1189 = scalar_select %p1175, 1, 0
        %v1190 = vstv %s1189
        %vm1191 = vcmp.eq.s32.totalorder %v1190, 1
        %v1192 = vsel %vm1191, %v1188, 0.0
        %s1193 = scalar_lea.vmem %s350, %s1186
        %v1194 = vld [vmem:[%s1193] ss:$8 sm:$0x3]
        %v1195 = vmul.f32 %v1194, %v1192
        %s1196 = sadd.s32 32, %s1186
        %s1197 = scalar_lea.vmem %s350, %s1196
        %v1198 = vld [vmem:[%s1197] ss:$8 sm:$0x3]
        %v1199 = vmul.f32 %v1198, %v1192
        %s1200 = sadd.s32 64, %s1186
        %s1201 = scalar_lea.vmem %s350, %s1200
        %v1202 = vld [vmem:[%s1201] ss:$8 sm:$0x3]
        %v1203 = vmul.f32 %v1202, %v1192
        %v1205 = vlaneseq
        %v1206 = vshrl.u32 %v1205, 7
        %v1207 = vsub.s32 0, %v1206
        %v1208 = vrot.slane %v1192, %v1207
        %v1209 = vlaneseq
        %v1210 = vshrl.u32 %v1209, 7
        %v1211 = vsub.s32 1, %v1210
        %v1212 = vrot.slane %v1192, %v1211
        %v1216 = vlaneseq
        %v1217 = vshrl.u32 %v1216, 7
        %v1218 = vsub.s32 0, %v1217
        %v1219 = vrot.slane %v1195, %v1218
        %v1220 = vlaneseq
        %v1221 = vshrl.u32 %v1220, 7
        %v1222 = vsub.s32 1, %v1221
        %v1223 = vrot.slane %v1195, %v1222
        %v1227 = vlaneseq
        %v1228 = vshrl.u32 %v1227, 7
        %v1229 = vsub.s32 0, %v1228
        %v1230 = vrot.slane %v1199, %v1229
        %v1231 = vlaneseq
        %v1232 = vshrl.u32 %v1231, 7
        %v1233 = vsub.s32 1, %v1232
        %v1234 = vrot.slane %v1199, %v1233
        %v1238 = vlaneseq
        %v1239 = vshrl.u32 %v1238, 7
        %v1240 = vsub.s32 0, %v1239
        %v1241 = vrot.slane %v1203, %v1240
        %v1242 = vlaneseq
        %v1243 = vshrl.u32 %v1242, 7
        %v1244 = vsub.s32 1, %v1243
        %v1245 = vrot.slane %v1203, %v1244
        %v1248 = vsel %vm431, %v1208, %v1219
        %v1249 = vsel %vm431, %v1212, %v1223
        %v1250 = vsel %vm434, %v1248, %v1230
        %v1251 = vsel %vm434, %v1249, %v1234
        %v1252 = vsel %vm437, %v1250, %v1241
        %v1253 = vsel %vm437, %v1251, %v1245
        %1254 = vrot.lane.b32.xlu0 %v1252, 17
        %v1255 = vpop.permute.xlu0 %1254
        %1256 = vrot.lane.b32.xlu0 %v1253, 17
        %v1257 = vpop.permute.xlu0 %1256
        %v1258 = vsel %vm446, %v1255, %v1257
        %v1259 = vsel %vm446, %v1257, %v1255
        %1260 = vrot.lane.b32.xlu0 %v1252, 16
        %v1261 = vpop.permute.xlu0 %1260
        %1262 = vrot.lane.b32.xlu0 %v1253, 16
        %v1263 = vpop.permute.xlu0 %1262
        %v1264 = vsel %vm453, %v1261, %v1263
        %v1265 = vsel %vm453, %v1263, %v1261
        %1266 = vrot.lane.b32.xlu0 %v1252, 15
        %v1267 = vpop.permute.xlu0 %1266
        %1268 = vrot.lane.b32.xlu0 %v1253, 15
        %v1269 = vpop.permute.xlu0 %1268
        %v1270 = vsel %vm460, %v1267, %v1269
        %v1271 = vsel %vm460, %v1269, %v1267
        %1272 = vrot.lane.b32.xlu0 %v1252, 1
        %v1273 = vpop.permute.xlu0 %1272
        %1274 = vrot.lane.b32.xlu0 %v1253, 1
        %v1275 = vpop.permute.xlu0 %1274
        %v1276 = vsel %vm467, %v1273, %v1275
        %v1277 = vsel %vm467, %v1275, %v1273
        %1278 = vrot.lane.b32.xlu0 %v1252, 127
        %v1279 = vpop.permute.xlu0 %1278
        %1280 = vrot.lane.b32.xlu0 %v1253, 127
        %v1281 = vpop.permute.xlu0 %1280
        %v1282 = vsel %vm474, %v1279, %v1281
        %v1283 = vsel %vm474, %v1281, %v1279
        %1284 = vrot.lane.b32.xlu0 %v1252, 113
        %v1285 = vpop.permute.xlu0 %1284
        %1286 = vrot.lane.b32.xlu0 %v1253, 113
        %v1287 = vpop.permute.xlu0 %1286
        %v1288 = vsel %vm481, %v1285, %v1287
        %v1289 = vsel %vm481, %v1287, %v1285
        %1290 = vrot.lane.b32.xlu0 %v1252, 112
        %v1291 = vpop.permute.xlu0 %1290
        %1292 = vrot.lane.b32.xlu0 %v1253, 112
        %v1293 = vpop.permute.xlu0 %1292
        %v1294 = vsel %vm488, %v1291, %v1293
        %v1295 = vsel %vm488, %v1293, %v1291
        %1296 = vrot.lane.b32.xlu0 %v1252, 111
        %v1297 = vpop.permute.xlu0 %1296
        %1298 = vrot.lane.b32.xlu0 %v1253, 111
        %v1299 = vpop.permute.xlu0 %1298
        %v1300 = vsel %vm495, %v1297, %v1299
        %v1301 = vsel %vm495, %v1299, %v1297
        %v1304 = vrot.slane %v1265, 4
        %v1305 = vrot.slane %v1264, 4
        %v1310 = vrot.slane %v1277, 4
        %v1311 = vrot.slane %v1276, 4
        %v1316 = vrot.slane %v1282, 4
        %v1317 = vrot.slane %v1283, 4
        %v1322 = vrot.slane %v1294, 4
        %v1323 = vrot.slane %v1295, 4
        %v1326 = vsel %vm522, %v1259, %v1304
        %v1327 = vsel %vm522, %v1258, %v1305
        %v1328 = vsel %vm522, %v1271, %v1310
        %v1329 = vsel %vm522, %v1270, %v1311
        %v1330 = vsel %vm522, %v1252, %v1316
        %v1331 = vsel %vm522, %v1253, %v1317
        %v1332 = vsel %vm522, %v1288, %v1322
        %v1333 = vsel %vm522, %v1289, %v1323
        %v1334 = vsel %vm522, %v1300, 0.0
        %v1335 = vsel %vm522, %v1301, 0.0
        %v1336 = vld [vmem:[#allocation3] sm:$0xff]
        %v1337 = vld [vmem:[#allocation3 + $0x8] sm:$0xff]
        %v1338 = vld [vmem:[#allocation3 + $0x10] sm:$0xff]
        %v1339 = vld [vmem:[#allocation3 + $0x18] sm:$0xff]
        %v1340 = vld [vmem:[#allocation3 + $0x20] sm:$0xff]
        %v1341 = vld [vmem:[#allocation3 + $0x28] sm:$0xff]
        %v1342 = vld [vmem:[#allocation3 + $0x30] sm:$0xff]
        %v1343 = vld [vmem:[#allocation3 + $0x38] sm:$0xff]
        %v1344 = vld [vmem:[#allocation3 + $0x40] sm:$0xff]
        %v1345 = vld [vmem:[#allocation3 + $0x48] sm:$0xff]
        %v1346 = vld [vmem:[#allocation3 + $0x50] sm:$0xff]
        %v1347 = vld [vmem:[#allocation3 + $0x58] sm:$0xff]
        %v1348 = vmul.f32 %v1326, %v1336
        %v1349 = vmul.f32 %v1327, %v1337
        %v1350 = vmul.f32 %v1328, %v1338
        %v1351 = vmul.f32 %v1329, %v1339
        %v1352 = vmul.f32 %v1330, %v1340
        %v1353 = vmul.f32 %v1331, %v1341
        %v1354 = vmul.f32 %v1332, %v1342
        %v1355 = vmul.f32 %v1333, %v1343
        %v1356 = vmul.f32 %v1334, %v1344
        %v1357 = vmul.f32 %v1335, %v1345
        %v1358 = vmul.f32 %v1346, 0.0
        %v1359 = vmul.f32 %v1347, 0.0
        %v1360 = vpack.c.bf16 %v1350, %v1348
        %v1361 = vpack.c.bf16 %v1351, %v1349
        %v1362 = vpack.c.bf16 %v1354, %v1352
        %v1363 = vpack.c.bf16 %v1355, %v1353
        %v1364 = vpack.c.bf16 %v1358, %v1356
        %v1365 = vpack.c.bf16 %v1359, %v1357
        %1366 = vst [vmem:[#allocation2 + $0x40] sm:$0xff] %v1360
        %1367 = vst [vmem:[#allocation2 + $0x48] sm:$0xff] %v1361
        %1368 = vst [vmem:[#allocation2 + $0xe0] sm:$0xff] %v1362
        %1369 = vst [vmem:[#allocation2 + $0xe8] sm:$0xff] %v1363
        %1370 = vst [vmem:[#allocation2 + $0x180] sm:$0xff] %v1364
        %1371 = vst [vmem:[#allocation2 + $0x188] sm:$0xff] %v1365
        %s1372 = sadd.s32 %s353, 4
        %p1373 = scmp.ge.s32.totalorder %s1372, 0
        %p1374 = scmp.le.s32.totalorder %s1372, 15
        %p1375 = pnand %p1373, %p1374
        %p1376 = pneg %p1375
        %p1377 = scmp.gt.s32.totalorder %s1372, 0
        %s1378 = scalar_select %p1377, %s1372, 0
        %p1379 = scmp.lt.s32.totalorder %s1378, 15
        %s1380 = scalar_select %p1379, %s1378, 15
        %s1381 = sshra.s32 %s1380, 3
        %s1382 = sand.u32 %s1380, 7
        %s1383 = sshra.s32 %s1380, 3
        %s1384 = sand.u32 %s1380, 7
        %s1385 = smul.u32 %s1381, 2
        %s1386 = smul.u32 %s1385, 8
        %s1387 = sadd.s32 %s1386, %s1384
        %s1388 = scalar_lea.vmem %s345, %s1387
        %v1389 = vld [vmem:[%s1388] ss:$8 sm:$0x3]
        %s1390 = scalar_select %p1376, 1, 0
        %v1391 = vstv %s1390
        %vm1392 = vcmp.eq.s32.totalorder %v1391, 1
        %v1393 = vsel %vm1392, %v1389, 0.0
        %s1394 = scalar_lea.vmem %s350, %s1387
        %v1395 = vld [vmem:[%s1394] ss:$8 sm:$0x3]
        %v1396 = vmul.f32 %v1395, %v1393
        %s1397 = sadd.s32 32, %s1387
        %s1398 = scalar_lea.vmem %s350, %s1397
        %v1399 = vld [vmem:[%s1398] ss:$8 sm:$0x3]
        %v1400 = vmul.f32 %v1399, %v1393
        %s1401 = sadd.s32 64, %s1387
        %s1402 = scalar_lea.vmem %s350, %s1401
        %v1403 = vld [vmem:[%s1402] ss:$8 sm:$0x3]
        %v1404 = vmul.f32 %v1403, %v1393
        %v1406 = vlaneseq
        %v1407 = vshrl.u32 %v1406, 7
        %v1408 = vsub.s32 0, %v1407
        %v1409 = vrot.slane %v1393, %v1408
        %v1410 = vlaneseq
        %v1411 = vshrl.u32 %v1410, 7
        %v1412 = vsub.s32 1, %v1411
        %v1413 = vrot.slane %v1393, %v1412
        %v1417 = vlaneseq
        %v1418 = vshrl.u32 %v1417, 7
        %v1419 = vsub.s32 0, %v1418
        %v1420 = vrot.slane %v1396, %v1419
        %v1421 = vlaneseq
        %v1422 = vshrl.u32 %v1421, 7
        %v1423 = vsub.s32 1, %v1422
        %v1424 = vrot.slane %v1396, %v1423
        %v1428 = vlaneseq
        %v1429 = vshrl.u32 %v1428, 7
        %v1430 = vsub.s32 0, %v1429
        %v1431 = vrot.slane %v1400, %v1430
        %v1432 = vlaneseq
        %v1433 = vshrl.u32 %v1432, 7
        %v1434 = vsub.s32 1, %v1433
        %v1435 = vrot.slane %v1400, %v1434
        %v1439 = vlaneseq
        %v1440 = vshrl.u32 %v1439, 7
        %v1441 = vsub.s32 0, %v1440
        %v1442 = vrot.slane %v1404, %v1441
        %v1443 = vlaneseq
        %v1444 = vshrl.u32 %v1443, 7
        %v1445 = vsub.s32 1, %v1444
        %v1446 = vrot.slane %v1404, %v1445
        %v1449 = vsel %vm431, %v1409, %v1420
        %v1450 = vsel %vm431, %v1413, %v1424
        %v1451 = vsel %vm434, %v1449, %v1431
        %v1452 = vsel %vm434, %v1450, %v1435
        %v1453 = vsel %vm437, %v1451, %v1442
        %v1454 = vsel %vm437, %v1452, %v1446
        %1455 = vrot.lane.b32.xlu0 %v1453, 17
        %v1456 = vpop.permute.xlu0 %1455
        %1457 = vrot.lane.b32.xlu0 %v1454, 17
        %v1458 = vpop.permute.xlu0 %1457
        %v1459 = vsel %vm446, %v1456, %v1458
        %v1460 = vsel %vm446, %v1458, %v1456
        %1461 = vrot.lane.b32.xlu0 %v1453, 16
        %v1462 = vpop.permute.xlu0 %1461
        %1463 = vrot.lane.b32.xlu0 %v1454, 16
        %v1464 = vpop.permute.xlu0 %1463
        %v1465 = vsel %vm453, %v1462, %v1464
        %v1466 = vsel %vm453, %v1464, %v1462
        %1467 = vrot.lane.b32.xlu0 %v1453, 15
        %v1468 = vpop.permute.xlu0 %1467
        %1469 = vrot.lane.b32.xlu0 %v1454, 15
        %v1470 = vpop.permute.xlu0 %1469
        %v1471 = vsel %vm460, %v1468, %v1470
        %v1472 = vsel %vm460, %v1470, %v1468
        %1473 = vrot.lane.b32.xlu0 %v1453, 1
        %v1474 = vpop.permute.xlu0 %1473
        %1475 = vrot.lane.b32.xlu0 %v1454, 1
        %v1476 = vpop.permute.xlu0 %1475
        %v1477 = vsel %vm467, %v1474, %v1476
        %v1478 = vsel %vm467, %v1476, %v1474
        %1479 = vrot.lane.b32.xlu0 %v1453, 127
        %v1480 = vpop.permute.xlu0 %1479
        %1481 = vrot.lane.b32.xlu0 %v1454, 127
        %v1482 = vpop.permute.xlu0 %1481
        %v1483 = vsel %vm474, %v1480, %v1482
        %v1484 = vsel %vm474, %v1482, %v1480
        %1485 = vrot.lane.b32.xlu0 %v1453, 113
        %v1486 = vpop.permute.xlu0 %1485
        %1487 = vrot.lane.b32.xlu0 %v1454, 113
        %v1488 = vpop.permute.xlu0 %1487
        %v1489 = vsel %vm481, %v1486, %v1488
        %v1490 = vsel %vm481, %v1488, %v1486
        %1491 = vrot.lane.b32.xlu0 %v1453, 112
        %v1492 = vpop.permute.xlu0 %1491
        %1493 = vrot.lane.b32.xlu0 %v1454, 112
        %v1494 = vpop.permute.xlu0 %1493
        %v1495 = vsel %vm488, %v1492, %v1494
        %v1496 = vsel %vm488, %v1494, %v1492
        %1497 = vrot.lane.b32.xlu0 %v1453, 111
        %v1498 = vpop.permute.xlu0 %1497
        %1499 = vrot.lane.b32.xlu0 %v1454, 111
        %v1500 = vpop.permute.xlu0 %1499
        %v1501 = vsel %vm495, %v1498, %v1500
        %v1502 = vsel %vm495, %v1500, %v1498
        %v1505 = vrot.slane %v1466, 4
        %v1506 = vrot.slane %v1465, 4
        %v1511 = vrot.slane %v1478, 4
        %v1512 = vrot.slane %v1477, 4
        %v1517 = vrot.slane %v1483, 4
        %v1518 = vrot.slane %v1484, 4
        %v1523 = vrot.slane %v1495, 4
        %v1524 = vrot.slane %v1496, 4
        %v1527 = vsel %vm522, %v1460, %v1505
        %v1528 = vsel %vm522, %v1459, %v1506
        %v1529 = vsel %vm522, %v1472, %v1511
        %v1530 = vsel %vm522, %v1471, %v1512
        %v1531 = vsel %vm522, %v1453, %v1517
        %v1532 = vsel %vm522, %v1454, %v1518
        %v1533 = vsel %vm522, %v1489, %v1523
        %v1534 = vsel %vm522, %v1490, %v1524
        %v1535 = vsel %vm522, %v1501, 0.0
        %v1536 = vsel %vm522, %v1502, 0.0
        %v1537 = vld [vmem:[#allocation3] sm:$0xff]
        %v1538 = vld [vmem:[#allocation3 + $0x8] sm:$0xff]
        %v1539 = vld [vmem:[#allocation3 + $0x10] sm:$0xff]
        %v1540 = vld [vmem:[#allocation3 + $0x18] sm:$0xff]
        %v1541 = vld [vmem:[#allocation3 + $0x20] sm:$0xff]
        %v1542 = vld [vmem:[#allocation3 + $0x28] sm:$0xff]
        %v1543 = vld [vmem:[#allocation3 + $0x30] sm:$0xff]
        %v1544 = vld [vmem:[#allocation3 + $0x38] sm:$0xff]
        %v1545 = vld [vmem:[#allocation3 + $0x40] sm:$0xff]
        %v1546 = vld [vmem:[#allocation3 + $0x48] sm:$0xff]
        %v1547 = vld [vmem:[#allocation3 + $0x50] sm:$0xff]
        %v1548 = vld [vmem:[#allocation3 + $0x58] sm:$0xff]
        %v1549 = vmul.f32 %v1527, %v1537
        %v1550 = vmul.f32 %v1528, %v1538
        %v1551 = vmul.f32 %v1529, %v1539
        %v1552 = vmul.f32 %v1530, %v1540
        %v1553 = vmul.f32 %v1531, %v1541
        %v1554 = vmul.f32 %v1532, %v1542
        %v1555 = vmul.f32 %v1533, %v1543
        %v1556 = vmul.f32 %v1534, %v1544
        %v1557 = vmul.f32 %v1535, %v1545
        %v1558 = vmul.f32 %v1536, %v1546
        %v1559 = vmul.f32 %v1547, 0.0
        %v1560 = vmul.f32 %v1548, 0.0
        %v1561 = vpack.c.bf16 %v1551, %v1549
        %v1562 = vpack.c.bf16 %v1552, %v1550
        %v1563 = vpack.c.bf16 %v1555, %v1553
        %v1564 = vpack.c.bf16 %v1556, %v1554
        %v1565 = vpack.c.bf16 %v1559, %v1557
        %v1566 = vpack.c.bf16 %v1560, %v1558
        %1567 = vst [vmem:[#allocation2 + $0x50] sm:$0xff] %v1561
        %1568 = vst [vmem:[#allocation2 + $0x58] sm:$0xff] %v1562
        %1569 = vst [vmem:[#allocation2 + $0xf0] sm:$0xff] %v1563
        %1570 = vst [vmem:[#allocation2 + $0xf8] sm:$0xff] %v1564
        %1571 = vst [vmem:[#allocation2 + $0x190] sm:$0xff] %v1565
        %1572 = vst [vmem:[#allocation2 + $0x198] sm:$0xff] %v1566
        %s1573 = sadd.s32 %s353, 5
        %p1574 = scmp.ge.s32.totalorder %s1573, 0
        %p1575 = scmp.le.s32.totalorder %s1573, 15
        %p1576 = pnand %p1574, %p1575
        %p1577 = pneg %p1576
        %p1578 = scmp.gt.s32.totalorder %s1573, 0
        %s1579 = scalar_select %p1578, %s1573, 0
        %p1580 = scmp.lt.s32.totalorder %s1579, 15
        %s1581 = scalar_select %p1580, %s1579, 15
        %s1582 = sshra.s32 %s1581, 3
        %s1583 = sand.u32 %s1581, 7
        %s1584 = sshra.s32 %s1581, 3
        %s1585 = sand.u32 %s1581, 7
        %s1586 = smul.u32 %s1582, 2
        %s1587 = smul.u32 %s1586, 8
        %s1588 = sadd.s32 %s1587, %s1585
        %s1589 = scalar_lea.vmem %s345, %s1588
        %v1590 = vld [vmem:[%s1589] ss:$8 sm:$0x3]
        %s1591 = scalar_select %p1577, 1, 0
        %v1592 = vstv %s1591
        %vm1593 = vcmp.eq.s32.totalorder %v1592, 1
        %v1594 = vsel %vm1593, %v1590, 0.0
        %s1595 = scalar_lea.vmem %s350, %s1588
        %v1596 = vld [vmem:[%s1595] ss:$8 sm:$0x3]
        %v1597 = vmul.f32 %v1596, %v1594
        %s1598 = sadd.s32 32, %s1588
        %s1599 = scalar_lea.vmem %s350, %s1598
        %v1600 = vld [vmem:[%s1599] ss:$8 sm:$0x3]
        %v1601 = vmul.f32 %v1600, %v1594
        %s1602 = sadd.s32 64, %s1588
        %s1603 = scalar_lea.vmem %s350, %s1602
        %v1604 = vld [vmem:[%s1603] ss:$8 sm:$0x3]
        %v1605 = vmul.f32 %v1604, %v1594
        %v1607 = vlaneseq
        %v1608 = vshrl.u32 %v1607, 7
        %v1609 = vsub.s32 0, %v1608
        %v1610 = vrot.slane %v1594, %v1609
        %v1611 = vlaneseq
        %v1612 = vshrl.u32 %v1611, 7
        %v1613 = vsub.s32 1, %v1612
        %v1614 = vrot.slane %v1594, %v1613
        %v1618 = vlaneseq
        %v1619 = vshrl.u32 %v1618, 7
        %v1620 = vsub.s32 0, %v1619
        %v1621 = vrot.slane %v1597, %v1620
        %v1622 = vlaneseq
        %v1623 = vshrl.u32 %v1622, 7
        %v1624 = vsub.s32 1, %v1623
        %v1625 = vrot.slane %v1597, %v1624
        %v1629 = vlaneseq
        %v1630 = vshrl.u32 %v1629, 7
        %v1631 = vsub.s32 0, %v1630
        %v1632 = vrot.slane %v1601, %v1631
        %v1633 = vlaneseq
        %v1634 = vshrl.u32 %v1633, 7
        %v1635 = vsub.s32 1, %v1634
        %v1636 = vrot.slane %v1601, %v1635
        %v1640 = vlaneseq
        %v1641 = vshrl.u32 %v1640, 7
        %v1642 = vsub.s32 0, %v1641
        %v1643 = vrot.slane %v1605, %v1642
        %v1644 = vlaneseq
        %v1645 = vshrl.u32 %v1644, 7
        %v1646 = vsub.s32 1, %v1645
        %v1647 = vrot.slane %v1605, %v1646
        %v1650 = vsel %vm431, %v1610, %v1621
        %v1651 = vsel %vm431, %v1614, %v1625
        %v1652 = vsel %vm434, %v1650, %v1632
        %v1653 = vsel %vm434, %v1651, %v1636
        %v1654 = vsel %vm437, %v1652, %v1643
        %v1655 = vsel %vm437, %v1653, %v1647
        %1656 = vrot.lane.b32.xlu0 %v1654, 17
        %v1657 = vpop.permute.xlu0 %1656
        %1658 = vrot.lane.b32.xlu0 %v1655, 17
        %v1659 = vpop.permute.xlu0 %1658
        %v1660 = vsel %vm446, %v1657, %v1659
        %v1661 = vsel %vm446, %v1659, %v1657
        %1662 = vrot.lane.b32.xlu0 %v1654, 16
        %v1663 = vpop.permute.xlu0 %1662
        %1664 = vrot.lane.b32.xlu0 %v1655, 16
        %v1665 = vpop.permute.xlu0 %1664
        %v1666 = vsel %vm453, %v1663, %v1665
        %v1667 = vsel %vm453, %v1665, %v1663
        %1668 = vrot.lane.b32.xlu0 %v1654, 15
        %v1669 = vpop.permute.xlu0 %1668
        %1670 = vrot.lane.b32.xlu0 %v1655, 15
        %v1671 = vpop.permute.xlu0 %1670
        %v1672 = vsel %vm460, %v1669, %v1671
        %v1673 = vsel %vm460, %v1671, %v1669
        %1674 = vrot.lane.b32.xlu0 %v1654, 1
        %v1675 = vpop.permute.xlu0 %1674
        %1676 = vrot.lane.b32.xlu0 %v1655, 1
        %v1677 = vpop.permute.xlu0 %1676
        %v1678 = vsel %vm467, %v1675, %v1677
        %v1679 = vsel %vm467, %v1677, %v1675
        %1680 = vrot.lane.b32.xlu0 %v1654, 127
        %v1681 = vpop.permute.xlu0 %1680
        %1682 = vrot.lane.b32.xlu0 %v1655, 127
        %v1683 = vpop.permute.xlu0 %1682
        %v1684 = vsel %vm474, %v1681, %v1683
        %v1685 = vsel %vm474, %v1683, %v1681
        %1686 = vrot.lane.b32.xlu0 %v1654, 113
        %v1687 = vpop.permute.xlu0 %1686
        %1688 = vrot.lane.b32.xlu0 %v1655, 113
        %v1689 = vpop.permute.xlu0 %1688
        %v1690 = vsel %vm481, %v1687, %v1689
        %v1691 = vsel %vm481, %v1689, %v1687
        %1692 = vrot.lane.b32.xlu0 %v1654, 112
        %v1693 = vpop.permute.xlu0 %1692
        %1694 = vrot.lane.b32.xlu0 %v1655, 112
        %v1695 = vpop.permute.xlu0 %1694
        %v1696 = vsel %vm488, %v1693, %v1695
        %v1697 = vsel %vm488, %v1695, %v1693
        %1698 = vrot.lane.b32.xlu0 %v1654, 111
        %v1699 = vpop.permute.xlu0 %1698
        %1700 = vrot.lane.b32.xlu0 %v1655, 111
        %v1701 = vpop.permute.xlu0 %1700
        %v1702 = vsel %vm495, %v1699, %v1701
        %v1703 = vsel %vm495, %v1701, %v1699
        %v1706 = vrot.slane %v1667, 4
        %v1707 = vrot.slane %v1666, 4
        %v1712 = vrot.slane %v1679, 4
        %v1713 = vrot.slane %v1678, 4
        %v1718 = vrot.slane %v1684, 4
        %v1719 = vrot.slane %v1685, 4
        %v1724 = vrot.slane %v1696, 4
        %v1725 = vrot.slane %v1697, 4
        %v1728 = vsel %vm522, %v1661, %v1706
        %v1729 = vsel %vm522, %v1660, %v1707
        %v1730 = vsel %vm522, %v1673, %v1712
        %v1731 = vsel %vm522, %v1672, %v1713
        %v1732 = vsel %vm522, %v1654, %v1718
        %v1733 = vsel %vm522, %v1655, %v1719
        %v1734 = vsel %vm522, %v1690, %v1724
        %v1735 = vsel %vm522, %v1691, %v1725
        %v1736 = vsel %vm522, %v1702, 0.0
        %v1737 = vsel %vm522, %v1703, 0.0
        %v1738 = vld [vmem:[#allocation3] sm:$0xff]
        %v1739 = vld [vmem:[#allocation3 + $0x8] sm:$0xff]
        %v1740 = vld [vmem:[#allocation3 + $0x10] sm:$0xff]
        %v1741 = vld [vmem:[#allocation3 + $0x18] sm:$0xff]
        %v1742 = vld [vmem:[#allocation3 + $0x20] sm:$0xff]
        %v1743 = vld [vmem:[#allocation3 + $0x28] sm:$0xff]
        %v1744 = vld [vmem:[#allocation3 + $0x30] sm:$0xff]
        %v1745 = vld [vmem:[#allocation3 + $0x38] sm:$0xff]
        %v1746 = vld [vmem:[#allocation3 + $0x40] sm:$0xff]
        %v1747 = vld [vmem:[#allocation3 + $0x48] sm:$0xff]
        %v1748 = vld [vmem:[#allocation3 + $0x50] sm:$0xff]
        %v1749 = vld [vmem:[#allocation3 + $0x58] sm:$0xff]
        %v1750 = vmul.f32 %v1728, %v1738
        %v1751 = vmul.f32 %v1729, %v1739
        %v1752 = vmul.f32 %v1730, %v1740
        %v1753 = vmul.f32 %v1731, %v1741
        %v1754 = vmul.f32 %v1732, %v1742
        %v1755 = vmul.f32 %v1733, %v1743
        %v1756 = vmul.f32 %v1734, %v1744
        %v1757 = vmul.f32 %v1735, %v1745
        %v1758 = vmul.f32 %v1736, %v1746
        %v1759 = vmul.f32 %v1737, %v1747
        %v1760 = vmul.f32 %v1748, 0.0
        %v1761 = vmul.f32 %v1749, 0.0
        %v1762 = vpack.c.bf16 %v1752, %v1750
        %v1763 = vpack.c.bf16 %v1753, %v1751
        %v1764 = vpack.c.bf16 %v1756, %v1754
        %v1765 = vpack.c.bf16 %v1757, %v1755
        %v1766 = vpack.c.bf16 %v1760, %v1758
        %v1767 = vpack.c.bf16 %v1761, %v1759
        %1768 = vst [vmem:[#allocation2 + $0x60] sm:$0xff] %v1762
        %1769 = vst [vmem:[#allocation2 + $0x68] sm:$0xff] %v1763
        %1770 = vst [vmem:[#allocation2 + $0x100] sm:$0xff] %v1764
        %1771 = vst [vmem:[#allocation2 + $0x108] sm:$0xff] %v1765
        %1772 = vst [vmem:[#allocation2 + $0x1a0] sm:$0xff] %v1766
        %1773 = vst [vmem:[#allocation2 + $0x1a8] sm:$0xff] %v1767
        %s1774 = sadd.s32 %s353, 6
        %p1775 = scmp.ge.s32.totalorder %s1774, 0
        %p1776 = scmp.le.s32.totalorder %s1774, 15
        %p1777 = pnand %p1775, %p1776
        %p1778 = pneg %p1777
        %p1779 = scmp.gt.s32.totalorder %s1774, 0
        %s1780 = scalar_select %p1779, %s1774, 0
        %p1781 = scmp.lt.s32.totalorder %s1780, 15
        %s1782 = scalar_select %p1781, %s1780, 15
        %s1783 = sshra.s32 %s1782, 3
        %s1784 = sand.u32 %s1782, 7
        %s1785 = sshra.s32 %s1782, 3
        %s1786 = sand.u32 %s1782, 7
        %s1787 = smul.u32 %s1783, 2
        %s1788 = smul.u32 %s1787, 8
        %s1789 = sadd.s32 %s1788, %s1786
        %s1790 = scalar_lea.vmem %s345, %s1789
        %v1791 = vld [vmem:[%s1790] ss:$8 sm:$0x3]
        %s1792 = scalar_select %p1778, 1, 0
        %v1793 = vstv %s1792
        %vm1794 = vcmp.eq.s32.totalorder %v1793, 1
        %v1795 = vsel %vm1794, %v1791, 0.0
        %s1796 = scalar_lea.vmem %s350, %s1789
        %v1797 = vld [vmem:[%s1796] ss:$8 sm:$0x3]
        %v1798 = vmul.f32 %v1797, %v1795
        %s1799 = sadd.s32 32, %s1789
        %s1800 = scalar_lea.vmem %s350, %s1799
        %v1801 = vld [vmem:[%s1800] ss:$8 sm:$0x3]
        %v1802 = vmul.f32 %v1801, %v1795
        %s1803 = sadd.s32 64, %s1789
        %s1804 = scalar_lea.vmem %s350, %s1803
        %v1805 = vld [vmem:[%s1804] ss:$8 sm:$0x3]
        %v1806 = vmul.f32 %v1805, %v1795
        %v1808 = vlaneseq
        %v1809 = vshrl.u32 %v1808, 7
        %v1810 = vsub.s32 0, %v1809
        %v1811 = vrot.slane %v1795, %v1810
        %v1812 = vlaneseq
        %v1813 = vshrl.u32 %v1812, 7
        %v1814 = vsub.s32 1, %v1813
        %v1815 = vrot.slane %v1795, %v1814
        %v1819 = vlaneseq
        %v1820 = vshrl.u32 %v1819, 7
        %v1821 = vsub.s32 0, %v1820
        %v1822 = vrot.slane %v1798, %v1821
        %v1823 = vlaneseq
        %v1824 = vshrl.u32 %v1823, 7
        %v1825 = vsub.s32 1, %v1824
        %v1826 = vrot.slane %v1798, %v1825
        %v1830 = vlaneseq
        %v1831 = vshrl.u32 %v1830, 7
        %v1832 = vsub.s32 0, %v1831
        %v1833 = vrot.slane %v1802, %v1832
        %v1834 = vlaneseq
        %v1835 = vshrl.u32 %v1834, 7
        %v1836 = vsub.s32 1, %v1835
        %v1837 = vrot.slane %v1802, %v1836
        %v1841 = vlaneseq
        %v1842 = vshrl.u32 %v1841, 7
        %v1843 = vsub.s32 0, %v1842
        %v1844 = vrot.slane %v1806, %v1843
        %v1845 = vlaneseq
        %v1846 = vshrl.u32 %v1845, 7
        %v1847 = vsub.s32 1, %v1846
        %v1848 = vrot.slane %v1806, %v1847
        %v1851 = vsel %vm431, %v1811, %v1822
        %v1852 = vsel %vm431, %v1815, %v1826
        %v1853 = vsel %vm434, %v1851, %v1833
        %v1854 = vsel %vm434, %v1852, %v1837
        %v1855 = vsel %vm437, %v1853, %v1844
        %v1856 = vsel %vm437, %v1854, %v1848
        %1857 = vrot.lane.b32.xlu0 %v1855, 17
        %v1858 = vpop.permute.xlu0 %1857
        %1859 = vrot.lane.b32.xlu0 %v1856, 17
        %v1860 = vpop.permute.xlu0 %1859
        %v1861 = vsel %vm446, %v1858, %v1860
        %v1862 = vsel %vm446, %v1860, %v1858
        %1863 = vrot.lane.b32.xlu0 %v1855, 16
        %v1864 = vpop.permute.xlu0 %1863
        %1865 = vrot.lane.b32.xlu0 %v1856, 16
        %v1866 = vpop.permute.xlu0 %1865
        %v1867 = vsel %vm453, %v1864, %v1866
        %v1868 = vsel %vm453, %v1866, %v1864
        %1869 = vrot.lane.b32.xlu0 %v1855, 15
        %v1870 = vpop.permute.xlu0 %1869
        %1871 = vrot.lane.b32.xlu0 %v1856, 15
        %v1872 = vpop.permute.xlu0 %1871
        %v1873 = vsel %vm460, %v1870, %v1872
        %v1874 = vsel %vm460, %v1872, %v1870
        %1875 = vrot.lane.b32.xlu0 %v1855, 1
        %v1876 = vpop.permute.xlu0 %1875
        %1877 = vrot.lane.b32.xlu0 %v1856, 1
        %v1878 = vpop.permute.xlu0 %1877
        %v1879 = vsel %vm467, %v1876, %v1878
        %v1880 = vsel %vm467, %v1878, %v1876
        %1881 = vrot.lane.b32.xlu0 %v1855, 127
        %v1882 = vpop.permute.xlu0 %1881
        %1883 = vrot.lane.b32.xlu0 %v1856, 127
        %v1884 = vpop.permute.xlu0 %1883
        %v1885 = vsel %vm474, %v1882, %v1884
        %v1886 = vsel %vm474, %v1884, %v1882
        %1887 = vrot.lane.b32.xlu0 %v1855, 113
        %v1888 = vpop.permute.xlu0 %1887
        %1889 = vrot.lane.b32.xlu0 %v1856, 113
        %v1890 = vpop.permute.xlu0 %1889
        %v1891 = vsel %vm481, %v1888, %v1890
        %v1892 = vsel %vm481, %v1890, %v1888
        %1893 = vrot.lane.b32.xlu0 %v1855, 112
        %v1894 = vpop.permute.xlu0 %1893
        %1895 = vrot.lane.b32.xlu0 %v1856, 112
        %v1896 = vpop.permute.xlu0 %1895
        %v1897 = vsel %vm488, %v1894, %v1896
        %v1898 = vsel %vm488, %v1896, %v1894
        %1899 = vrot.lane.b32.xlu0 %v1855, 111
        %v1900 = vpop.permute.xlu0 %1899
        %1901 = vrot.lane.b32.xlu0 %v1856, 111
        %v1902 = vpop.permute.xlu0 %1901
        %v1903 = vsel %vm495, %v1900, %v1902
        %v1904 = vsel %vm495, %v1902, %v1900
        %v1907 = vrot.slane %v1868, 4
        %v1908 = vrot.slane %v1867, 4
        %v1913 = vrot.slane %v1880, 4
        %v1914 = vrot.slane %v1879, 4
        %v1919 = vrot.slane %v1885, 4
        %v1920 = vrot.slane %v1886, 4
        %v1925 = vrot.slane %v1897, 4
        %v1926 = vrot.slane %v1898, 4
        %v1929 = vsel %vm522, %v1862, %v1907
        %v1930 = vsel %vm522, %v1861, %v1908
        %v1931 = vsel %vm522, %v1874, %v1913
        %v1932 = vsel %vm522, %v1873, %v1914
        %v1933 = vsel %vm522, %v1855, %v1919
        %v1934 = vsel %vm522, %v1856, %v1920
        %v1935 = vsel %vm522, %v1891, %v1925
        %v1936 = vsel %vm522, %v1892, %v1926
        %v1937 = vsel %vm522, %v1903, 0.0
        %v1938 = vsel %vm522, %v1904, 0.0
        %v1939 = vld [vmem:[#allocation3] sm:$0xff]
        %v1940 = vld [vmem:[#allocation3 + $0x8] sm:$0xff]
        %v1941 = vld [vmem:[#allocation3 + $0x10] sm:$0xff]
        %v1942 = vld [vmem:[#allocation3 + $0x18] sm:$0xff]
        %v1943 = vld [vmem:[#allocation3 + $0x20] sm:$0xff]
        %v1944 = vld [vmem:[#allocation3 + $0x28] sm:$0xff]
        %v1945 = vld [vmem:[#allocation3 + $0x30] sm:$0xff]
        %v1946 = vld [vmem:[#allocation3 + $0x38] sm:$0xff]
        %v1947 = vld [vmem:[#allocation3 + $0x40] sm:$0xff]
        %v1948 = vld [vmem:[#allocation3 + $0x48] sm:$0xff]
        %v1949 = vld [vmem:[#allocation3 + $0x50] sm:$0xff]
        %v1950 = vld [vmem:[#allocation3 + $0x58] sm:$0xff]
        %v1951 = vmul.f32 %v1929, %v1939
        %v1952 = vmul.f32 %v1930, %v1940
        %v1953 = vmul.f32 %v1931, %v1941
        %v1954 = vmul.f32 %v1932, %v1942
        %v1955 = vmul.f32 %v1933, %v1943
        %v1956 = vmul.f32 %v1934, %v1944
        %v1957 = vmul.f32 %v1935, %v1945
        %v1958 = vmul.f32 %v1936, %v1946
        %v1959 = vmul.f32 %v1937, %v1947
        %v1960 = vmul.f32 %v1938, %v1948
        %v1961 = vmul.f32 %v1949, 0.0
        %v1962 = vmul.f32 %v1950, 0.0
        %v1963 = vpack.c.bf16 %v1953, %v1951
        %v1964 = vpack.c.bf16 %v1954, %v1952
        %v1965 = vpack.c.bf16 %v1957, %v1955
        %v1966 = vpack.c.bf16 %v1958, %v1956
        %v1967 = vpack.c.bf16 %v1961, %v1959
        %v1968 = vpack.c.bf16 %v1962, %v1960
        %1969 = vst [vmem:[#allocation2 + $0x70] sm:$0xff] %v1963
        %1970 = vst [vmem:[#allocation2 + $0x78] sm:$0xff] %v1964
        %1971 = vst [vmem:[#allocation2 + $0x110] sm:$0xff] %v1965
        %1972 = vst [vmem:[#allocation2 + $0x118] sm:$0xff] %v1966
        %1973 = vst [vmem:[#allocation2 + $0x1b0] sm:$0xff] %v1967
        %1974 = vst [vmem:[#allocation2 + $0x1b8] sm:$0xff] %v1968
        %s1975 = sadd.s32 %s353, 7
        %p1976 = scmp.ge.s32.totalorder %s1975, 0
        %p1977 = scmp.le.s32.totalorder %s1975, 15
        %p1978 = pnand %p1976, %p1977
        %p1979 = pneg %p1978
        %p1980 = scmp.gt.s32.totalorder %s1975, 0
        %s1981 = scalar_select %p1980, %s1975, 0
        %p1982 = scmp.lt.s32.totalorder %s1981, 15
        %s1983 = scalar_select %p1982, %s1981, 15
        %s1984 = sshra.s32 %s1983, 3
        %s1985 = sand.u32 %s1983, 7
        %s1986 = sshra.s32 %s1983, 3
        %s1987 = sand.u32 %s1983, 7
        %s1988 = smul.u32 %s1984, 2
        %s1989 = smul.u32 %s1988, 8
        %s1990 = sadd.s32 %s1989, %s1987
        %s1991 = scalar_lea.vmem %s345, %s1990
        %v1992 = vld [vmem:[%s1991] ss:$8 sm:$0x3]
        %s1993 = scalar_select %p1979, 1, 0
        %v1994 = vstv %s1993
        %vm1995 = vcmp.eq.s32.totalorder %v1994, 1
        %v1996 = vsel %vm1995, %v1992, 0.0
        %s1997 = scalar_lea.vmem %s350, %s1990
        %v1998 = vld [vmem:[%s1997] ss:$8 sm:$0x3]
        %v1999 = vmul.f32 %v1998, %v1996
        %s2000 = sadd.s32 32, %s1990
        %s2001 = scalar_lea.vmem %s350, %s2000
        %v2002 = vld [vmem:[%s2001] ss:$8 sm:$0x3]
        %v2003 = vmul.f32 %v2002, %v1996
        %s2004 = sadd.s32 64, %s1990
        %s2005 = scalar_lea.vmem %s350, %s2004
        %v2006 = vld [vmem:[%s2005] ss:$8 sm:$0x3]
        %v2007 = vmul.f32 %v2006, %v1996
        %v2009 = vlaneseq
        %v2010 = vshrl.u32 %v2009, 7
        %v2011 = vsub.s32 0, %v2010
        %v2012 = vrot.slane %v1996, %v2011
        %v2013 = vlaneseq
        %v2014 = vshrl.u32 %v2013, 7
        %v2015 = vsub.s32 1, %v2014
        %v2016 = vrot.slane %v1996, %v2015
        %v2020 = vlaneseq
        %v2021 = vshrl.u32 %v2020, 7
        %v2022 = vsub.s32 0, %v2021
        %v2023 = vrot.slane %v1999, %v2022
        %v2024 = vlaneseq
        %v2025 = vshrl.u32 %v2024, 7
        %v2026 = vsub.s32 1, %v2025
        %v2027 = vrot.slane %v1999, %v2026
        %v2031 = vlaneseq
        %v2032 = vshrl.u32 %v2031, 7
        %v2033 = vsub.s32 0, %v2032
        %v2034 = vrot.slane %v2003, %v2033
        %v2035 = vlaneseq
        %v2036 = vshrl.u32 %v2035, 7
        %v2037 = vsub.s32 1, %v2036
        %v2038 = vrot.slane %v2003, %v2037
        %v2042 = vlaneseq
        %v2043 = vshrl.u32 %v2042, 7
        %v2044 = vsub.s32 0, %v2043
        %v2045 = vrot.slane %v2007, %v2044
        %v2046 = vlaneseq
        %v2047 = vshrl.u32 %v2046, 7
        %v2048 = vsub.s32 1, %v2047
        %v2049 = vrot.slane %v2007, %v2048
        %v2052 = vsel %vm431, %v2012, %v2023
        %v2053 = vsel %vm431, %v2016, %v2027
        %v2054 = vsel %vm434, %v2052, %v2034
        %v2055 = vsel %vm434, %v2053, %v2038
        %v2056 = vsel %vm437, %v2054, %v2045
        %v2057 = vsel %vm437, %v2055, %v2049
        %2058 = vrot.lane.b32.xlu0 %v2056, 17
        %v2059 = vpop.permute.xlu0 %2058
        %2060 = vrot.lane.b32.xlu0 %v2057, 17
        %v2061 = vpop.permute.xlu0 %2060
        %v2062 = vsel %vm446, %v2059, %v2061
        %v2063 = vsel %vm446, %v2061, %v2059
        %2064 = vrot.lane.b32.xlu0 %v2056, 16
        %v2065 = vpop.permute.xlu0 %2064
        %2066 = vrot.lane.b32.xlu0 %v2057, 16
        %v2067 = vpop.permute.xlu0 %2066
        %v2068 = vsel %vm453, %v2065, %v2067
        %v2069 = vsel %vm453, %v2067, %v2065
        %2070 = vrot.lane.b32.xlu0 %v2056, 15
        %v2071 = vpop.permute.xlu0 %2070
        %2072 = vrot.lane.b32.xlu0 %v2057, 15
        %v2073 = vpop.permute.xlu0 %2072
        %v2074 = vsel %vm460, %v2071, %v2073
        %v2075 = vsel %vm460, %v2073, %v2071
        %2076 = vrot.lane.b32.xlu0 %v2056, 1
        %v2077 = vpop.permute.xlu0 %2076
        %2078 = vrot.lane.b32.xlu0 %v2057, 1
        %v2079 = vpop.permute.xlu0 %2078
        %v2080 = vsel %vm467, %v2077, %v2079
        %v2081 = vsel %vm467, %v2079, %v2077
        %2082 = vrot.lane.b32.xlu0 %v2056, 127
        %v2083 = vpop.permute.xlu0 %2082
        %2084 = vrot.lane.b32.xlu0 %v2057, 127
        %v2085 = vpop.permute.xlu0 %2084
        %v2086 = vsel %vm474, %v2083, %v2085
        %v2087 = vsel %vm474, %v2085, %v2083
        %2088 = vrot.lane.b32.xlu0 %v2056, 113
        %v2089 = vpop.permute.xlu0 %2088
        %2090 = vrot.lane.b32.xlu0 %v2057, 113
        %v2091 = vpop.permute.xlu0 %2090
        %v2092 = vsel %vm481, %v2089, %v2091
        %v2093 = vsel %vm481, %v2091, %v2089
        %2094 = vrot.lane.b32.xlu0 %v2056, 112
        %v2095 = vpop.permute.xlu0 %2094
        %2096 = vrot.lane.b32.xlu0 %v2057, 112
        %v2097 = vpop.permute.xlu0 %2096
        %v2098 = vsel %vm488, %v2095, %v2097
        %v2099 = vsel %vm488, %v2097, %v2095
        %2100 = vrot.lane.b32.xlu0 %v2056, 111
        %v2101 = vpop.permute.xlu0 %2100
        %2102 = vrot.lane.b32.xlu0 %v2057, 111
        %v2103 = vpop.permute.xlu0 %2102
        %v2104 = vsel %vm495, %v2101, %v2103
        %v2105 = vsel %vm495, %v2103, %v2101
        %v2108 = vrot.slane %v2069, 4
        %v2109 = vrot.slane %v2068, 4
        %v2114 = vrot.slane %v2081, 4
        %v2115 = vrot.slane %v2080, 4
        %v2120 = vrot.slane %v2086, 4
        %v2121 = vrot.slane %v2087, 4
        %v2126 = vrot.slane %v2098, 4
        %v2127 = vrot.slane %v2099, 4
        %v2130 = vsel %vm522, %v2063, %v2108
        %v2131 = vsel %vm522, %v2062, %v2109
        %v2132 = vsel %vm522, %v2075, %v2114
        %v2133 = vsel %vm522, %v2074, %v2115
        %v2134 = vsel %vm522, %v2056, %v2120
        %v2135 = vsel %vm522, %v2057, %v2121
        %v2136 = vsel %vm522, %v2092, %v2126
        %v2137 = vsel %vm522, %v2093, %v2127
        %v2138 = vsel %vm522, %v2104, 0.0
        %v2139 = vsel %vm522, %v2105, 0.0
        %v2140 = vld [vmem:[#allocation3] sm:$0xff]
        %v2141 = vld [vmem:[#allocation3 + $0x8] sm:$0xff]
        %v2142 = vld [vmem:[#allocation3 + $0x10] sm:$0xff]
        %v2143 = vld [vmem:[#allocation3 + $0x18] sm:$0xff]
        %v2144 = vld [vmem:[#allocation3 + $0x20] sm:$0xff]
        %v2145 = vld [vmem:[#allocation3 + $0x28] sm:$0xff]
        %v2146 = vld [vmem:[#allocation3 + $0x30] sm:$0xff]
        %v2147 = vld [vmem:[#allocation3 + $0x38] sm:$0xff]
        %v2148 = vld [vmem:[#allocation3 + $0x40] sm:$0xff]
        %v2149 = vld [vmem:[#allocation3 + $0x48] sm:$0xff]
        %v2150 = vld [vmem:[#allocation3 + $0x50] sm:$0xff]
        %v2151 = vld [vmem:[#allocation3 + $0x58] sm:$0xff]
        %v2152 = vmul.f32 %v2130, %v2140
        %v2153 = vmul.f32 %v2131, %v2141
        %v2154 = vmul.f32 %v2132, %v2142
        %v2155 = vmul.f32 %v2133, %v2143
        %v2156 = vmul.f32 %v2134, %v2144
        %v2157 = vmul.f32 %v2135, %v2145
        %v2158 = vmul.f32 %v2136, %v2146
        %v2159 = vmul.f32 %v2137, %v2147
        %v2160 = vmul.f32 %v2138, %v2148
        %v2161 = vmul.f32 %v2139, %v2149
        %v2162 = vmul.f32 %v2150, 0.0
        %v2163 = vmul.f32 %v2151, 0.0
        %v2164 = vpack.c.bf16 %v2154, %v2152
        %v2165 = vpack.c.bf16 %v2155, %v2153
        %v2166 = vpack.c.bf16 %v2158, %v2156
        %v2167 = vpack.c.bf16 %v2159, %v2157
        %v2168 = vpack.c.bf16 %v2162, %v2160
        %v2169 = vpack.c.bf16 %v2163, %v2161
        %2170 = vst [vmem:[#allocation2 + $0x80] sm:$0xff] %v2164
        %2171 = vst [vmem:[#allocation2 + $0x88] sm:$0xff] %v2165
        %2172 = vst [vmem:[#allocation2 + $0x120] sm:$0xff] %v2166
        %2173 = vst [vmem:[#allocation2 + $0x128] sm:$0xff] %v2167
        %2174 = vst [vmem:[#allocation2 + $0x1c0] sm:$0xff] %v2168
        %2175 = vst [vmem:[#allocation2 + $0x1c8] sm:$0xff] %v2169
        %s2176 = sadd.s32 %s353, 8
        %p2177 = scmp.ge.s32.totalorder %s2176, 0
        %p2178 = scmp.le.s32.totalorder %s2176, 15
        %p2179 = pnand %p2177, %p2178
        %p2180 = pneg %p2179
        %p2181 = scmp.gt.s32.totalorder %s2176, 0
        %s2182 = scalar_select %p2181, %s2176, 0
        %p2183 = scmp.lt.s32.totalorder %s2182, 15
        %s2184 = scalar_select %p2183, %s2182, 15
        %s2185 = sshra.s32 %s2184, 3
        %s2186 = sand.u32 %s2184, 7
        %s2187 = sshra.s32 %s2184, 3
        %s2188 = sand.u32 %s2184, 7
        %s2189 = smul.u32 %s2185, 2
        %s2190 = smul.u32 %s2189, 8
        %s2191 = sadd.s32 %s2190, %s2188
        %s2192 = scalar_lea.vmem %s345, %s2191
        %v2193 = vld [vmem:[%s2192] ss:$8 sm:$0x3]
        %s2194 = scalar_select %p2180, 1, 0
        %v2195 = vstv %s2194
        %vm2196 = vcmp.eq.s32.totalorder %v2195, 1
        %v2197 = vsel %vm2196, %v2193, 0.0
        %s2198 = scalar_lea.vmem %s350, %s2191
        %v2199 = vld [vmem:[%s2198] ss:$8 sm:$0x3]
        %v2200 = vmul.f32 %v2199, %v2197
        %s2201 = sadd.s32 32, %s2191
        %s2202 = scalar_lea.vmem %s350, %s2201
        %v2203 = vld [vmem:[%s2202] ss:$8 sm:$0x3]
        %v2204 = vmul.f32 %v2203, %v2197
        %s2205 = sadd.s32 64, %s2191
        %s2206 = scalar_lea.vmem %s350, %s2205
        %v2207 = vld [vmem:[%s2206] ss:$8 sm:$0x3]
        %v2208 = vmul.f32 %v2207, %v2197
        %v2210 = vlaneseq
        %v2211 = vshrl.u32 %v2210, 7
        %v2212 = vsub.s32 0, %v2211
        %v2213 = vrot.slane %v2197, %v2212
        %v2214 = vlaneseq
        %v2215 = vshrl.u32 %v2214, 7
        %v2216 = vsub.s32 1, %v2215
        %v2217 = vrot.slane %v2197, %v2216
        %v2221 = vlaneseq
        %v2222 = vshrl.u32 %v2221, 7
        %v2223 = vsub.s32 0, %v2222
        %v2224 = vrot.slane %v2200, %v2223
        %v2225 = vlaneseq
        %v2226 = vshrl.u32 %v2225, 7
        %v2227 = vsub.s32 1, %v2226
        %v2228 = vrot.slane %v2200, %v2227
        %v2232 = vlaneseq
        %v2233 = vshrl.u32 %v2232, 7
        %v2234 = vsub.s32 0, %v2233
        %v2235 = vrot.slane %v2204, %v2234
        %v2236 = vlaneseq
        %v2237 = vshrl.u32 %v2236, 7
        %v2238 = vsub.s32 1, %v2237
        %v2239 = vrot.slane %v2204, %v2238
        %v2243 = vlaneseq
        %v2244 = vshrl.u32 %v2243, 7
        %v2245 = vsub.s32 0, %v2244
        %v2246 = vrot.slane %v2208, %v2245
        %v2247 = vlaneseq
        %v2248 = vshrl.u32 %v2247, 7
        %v2249 = vsub.s32 1, %v2248
        %v2250 = vrot.slane %v2208, %v2249
        %v2253 = vsel %vm431, %v2213, %v2224
        %v2254 = vsel %vm431, %v2217, %v2228
        %v2255 = vsel %vm434, %v2253, %v2235
        %v2256 = vsel %vm434, %v2254, %v2239
        %v2257 = vsel %vm437, %v2255, %v2246
        %v2258 = vsel %vm437, %v2256, %v2250
        %2259 = vrot.lane.b32.xlu0 %v2257, 17
        %v2260 = vpop.permute.xlu0 %2259
        %2261 = vrot.lane.b32.xlu0 %v2258, 17
        %v2262 = vpop.permute.xlu0 %2261
        %v2263 = vsel %vm446, %v2260, %v2262
        %v2264 = vsel %vm446, %v2262, %v2260
        %2265 = vrot.lane.b32.xlu0 %v2257, 16
        %v2266 = vpop.permute.xlu0 %2265
        %2267 = vrot.lane.b32.xlu0 %v2258, 16
        %v2268 = vpop.permute.xlu0 %2267
        %v2269 = vsel %vm453, %v2266, %v2268
        %v2270 = vsel %vm453, %v2268, %v2266
        %2271 = vrot.lane.b32.xlu0 %v2257, 15
        %v2272 = vpop.permute.xlu0 %2271
        %2273 = vrot.lane.b32.xlu0 %v2258, 15
        %v2274 = vpop.permute.xlu0 %2273
        %v2275 = vsel %vm460, %v2272, %v2274
        %v2276 = vsel %vm460, %v2274, %v2272
        %2277 = vrot.lane.b32.xlu0 %v2257, 1
        %v2278 = vpop.permute.xlu0 %2277
        %2279 = vrot.lane.b32.xlu0 %v2258, 1
        %v2280 = vpop.permute.xlu0 %2279
        %v2281 = vsel %vm467, %v2278, %v2280
        %v2282 = vsel %vm467, %v2280, %v2278
        %2283 = vrot.lane.b32.xlu0 %v2257, 127
        %v2284 = vpop.permute.xlu0 %2283
        %2285 = vrot.lane.b32.xlu0 %v2258, 127
        %v2286 = vpop.permute.xlu0 %2285
        %v2287 = vsel %vm474, %v2284, %v2286
        %v2288 = vsel %vm474, %v2286, %v2284
        %2289 = vrot.lane.b32.xlu0 %v2257, 113
        %v2290 = vpop.permute.xlu0 %2289
        %2291 = vrot.lane.b32.xlu0 %v2258, 113
        %v2292 = vpop.permute.xlu0 %2291
        %v2293 = vsel %vm481, %v2290, %v2292
        %v2294 = vsel %vm481, %v2292, %v2290
        %2295 = vrot.lane.b32.xlu0 %v2257, 112
        %v2296 = vpop.permute.xlu0 %2295
        %2297 = vrot.lane.b32.xlu0 %v2258, 112
        %v2298 = vpop.permute.xlu0 %2297
        %v2299 = vsel %vm488, %v2296, %v2298
        %v2300 = vsel %vm488, %v2298, %v2296
        %2301 = vrot.lane.b32.xlu0 %v2257, 111
        %v2302 = vpop.permute.xlu0 %2301
        %2303 = vrot.lane.b32.xlu0 %v2258, 111
        %v2304 = vpop.permute.xlu0 %2303
        %v2305 = vsel %vm495, %v2302, %v2304
        %v2306 = vsel %vm495, %v2304, %v2302
        %v2309 = vrot.slane %v2270, 4
        %v2310 = vrot.slane %v2269, 4
        %v2315 = vrot.slane %v2282, 4
        %v2316 = vrot.slane %v2281, 4
        %v2321 = vrot.slane %v2287, 4
        %v2322 = vrot.slane %v2288, 4
        %v2327 = vrot.slane %v2299, 4
        %v2328 = vrot.slane %v2300, 4
        %v2331 = vsel %vm522, %v2264, %v2309
        %v2332 = vsel %vm522, %v2263, %v2310
        %v2333 = vsel %vm522, %v2276, %v2315
        %v2334 = vsel %vm522, %v2275, %v2316
        %v2335 = vsel %vm522, %v2257, %v2321
        %v2336 = vsel %vm522, %v2258, %v2322
        %v2337 = vsel %vm522, %v2293, %v2327
        %v2338 = vsel %vm522, %v2294, %v2328
        %v2339 = vsel %vm522, %v2305, 0.0
        %v2340 = vsel %vm522, %v2306, 0.0
        %v2341 = vld [vmem:[#allocation3] sm:$0xff]
        %v2342 = vld [vmem:[#allocation3 + $0x8] sm:$0xff]
        %v2343 = vld [vmem:[#allocation3 + $0x10] sm:$0xff]
        %v2344 = vld [vmem:[#allocation3 + $0x18] sm:$0xff]
        %v2345 = vld [vmem:[#allocation3 + $0x20] sm:$0xff]
        %v2346 = vld [vmem:[#allocation3 + $0x28] sm:$0xff]
        %v2347 = vld [vmem:[#allocation3 + $0x30] sm:$0xff]
        %v2348 = vld [vmem:[#allocation3 + $0x38] sm:$0xff]
        %v2349 = vld [vmem:[#allocation3 + $0x40] sm:$0xff]
        %v2350 = vld [vmem:[#allocation3 + $0x48] sm:$0xff]
        %v2351 = vld [vmem:[#allocation3 + $0x50] sm:$0xff]
        %v2352 = vld [vmem:[#allocation3 + $0x58] sm:$0xff]
        %v2353 = vmul.f32 %v2331, %v2341
        %v2354 = vmul.f32 %v2332, %v2342
        %v2355 = vmul.f32 %v2333, %v2343
        %v2356 = vmul.f32 %v2334, %v2344
        %v2357 = vmul.f32 %v2335, %v2345
        %v2358 = vmul.f32 %v2336, %v2346
        %v2359 = vmul.f32 %v2337, %v2347
        %v2360 = vmul.f32 %v2338, %v2348
        %v2361 = vmul.f32 %v2339, %v2349
        %v2362 = vmul.f32 %v2340, %v2350
        %v2363 = vmul.f32 %v2351, 0.0
        %v2364 = vmul.f32 %v2352, 0.0
        %v2365 = vpack.c.bf16 %v2355, %v2353
        %v2366 = vpack.c.bf16 %v2356, %v2354
        %v2367 = vpack.c.bf16 %v2359, %v2357
        %v2368 = vpack.c.bf16 %v2360, %v2358
        %v2369 = vpack.c.bf16 %v2363, %v2361
        %v2370 = vpack.c.bf16 %v2364, %v2362
        %2371 = vst [vmem:[#allocation2 + $0x90] sm:$0xff] %v2365
        %2372 = vst [vmem:[#allocation2 + $0x98] sm:$0xff] %v2366
        %2373 = vst [vmem:[#allocation2 + $0x130] sm:$0xff] %v2367
        %2374 = vst [vmem:[#allocation2 + $0x138] sm:$0xff] %v2368
        %2375 = vst [vmem:[#allocation2 + $0x1d0] sm:$0xff] %v2369
        %2376 = vst [vmem:[#allocation2 + $0x1d8] sm:$0xff] %v2370
        %v2377 = vld [vmem:[#allocation5] sm:$0xf]
        %v2378 = vld [vmem:[#allocation5 + $0x4] sm:$0xf]
        %v2379 = vld [vmem:[#allocation5 + $0x8] sm:$0xf]
        %v2380 = vld [vmem:[#allocation5 + $0xc] sm:$0xf]
        %v2381 = vld [vmem:[#allocation2] sm:$0xff]
        %v2382 = vld [vmem:[#allocation2 + $0x8] sm:$0xff]
        %v2383 = vld [vmem:[#allocation2 + $0x10] sm:$0xff]
        %v2384 = vld [vmem:[#allocation2 + $0x18] sm:$0xff]
        %v2385 = vld [vmem:[#allocation2 + $0x20] sm:$0xff]
        %v2386 = vld [vmem:[#allocation2 + $0x28] sm:$0xff]
        %v2387 = vld [vmem:[#allocation2 + $0x30] sm:$0xff]
        %v2388 = vld [vmem:[#allocation2 + $0x38] sm:$0xff]
        %v2389 = vld [vmem:[#allocation2 + $0x40] sm:$0xff]
        %v2390 = vld [vmem:[#allocation2 + $0x48] sm:$0xff]
        %v2391 = vld [vmem:[#allocation2 + $0x50] sm:$0xff]
        %v2392 = vld [vmem:[#allocation2 + $0x58] sm:$0xff]
        %v2393 = vld [vmem:[#allocation2 + $0x60] sm:$0xff]
        %v2394 = vld [vmem:[#allocation2 + $0x68] sm:$0xff]
        %v2395 = vld [vmem:[#allocation2 + $0x70] sm:$0xff]
        %v2396 = vld [vmem:[#allocation2 + $0x78] sm:$0xff]
        %v2397 = vld [vmem:[#allocation2 + $0xa0] sm:$0xff]
        %v2398 = vld [vmem:[#allocation2 + $0xa8] sm:$0xff]
        %v2399 = vld [vmem:[#allocation2 + $0xb0] sm:$0xff]
        %v2400 = vld [vmem:[#allocation2 + $0xb8] sm:$0xff]
        %v2401 = vld [vmem:[#allocation2 + $0xc0] sm:$0xff]
        %v2402 = vld [vmem:[#allocation2 + $0xc8] sm:$0xff]
        %v2403 = vld [vmem:[#allocation2 + $0xd0] sm:$0xff]
        %v2404 = vld [vmem:[#allocation2 + $0xd8] sm:$0xff]
        %v2405 = vld [vmem:[#allocation2 + $0xe0] sm:$0xff]
        %v2406 = vld [vmem:[#allocation2 + $0xe8] sm:$0xff]
        %v2407 = vld [vmem:[#allocation2 + $0xf0] sm:$0xff]
        %v2408 = vld [vmem:[#allocation2 + $0xf8] sm:$0xff]
        %v2409 = vld [vmem:[#allocation2 + $0x100] sm:$0xff]
        %v2410 = vld [vmem:[#allocation2 + $0x108] sm:$0xff]
        %v2411 = vld [vmem:[#allocation2 + $0x110] sm:$0xff]
        %v2412 = vld [vmem:[#allocation2 + $0x118] sm:$0xff]
        %v2413 = vld [vmem:[#allocation2 + $0x140] sm:$0xff]
        %v2414 = vld [vmem:[#allocation2 + $0x148] sm:$0xff]
        %v2415 = vld [vmem:[#allocation2 + $0x150] sm:$0xff]
        %v2416 = vld [vmem:[#allocation2 + $0x158] sm:$0xff]
        %v2417 = vld [vmem:[#allocation2 + $0x160] sm:$0xff]
        %v2418 = vld [vmem:[#allocation2 + $0x168] sm:$0xff]
        %v2419 = vld [vmem:[#allocation2 + $0x170] sm:$0xff]
        %v2420 = vld [vmem:[#allocation2 + $0x178] sm:$0xff]
        %v2421 = vld [vmem:[#allocation2 + $0x180] sm:$0xff]
        %v2422 = vld [vmem:[#allocation2 + $0x188] sm:$0xff]
        %v2423 = vld [vmem:[#allocation2 + $0x190] sm:$0xff]
        %v2424 = vld [vmem:[#allocation2 + $0x198] sm:$0xff]
        %v2425 = vld [vmem:[#allocation2 + $0x1a0] sm:$0xff]
        %v2426 = vld [vmem:[#allocation2 + $0x1a8] sm:$0xff]
        %v2427 = vld [vmem:[#allocation2 + $0x1b0] sm:$0xff]
        %v2428 = vld [vmem:[#allocation2 + $0x1b8] sm:$0xff]
        %s2429 = scalar_lea.vmem [#allocation5], 16
        %v2430 = vld [vmem:[%s2429] sm:$0xf]
        %v2431 = vld [vmem:[%s2429 + $0x4] sm:$0xf]
        %v2432 = vld [vmem:[%s2429 + $0x8] sm:$0xf]
        %v2433 = vld [vmem:[%s2429 + $0xc] sm:$0xf]
        %v2434 = vld [vmem:[#allocation2 + $0x80] sm:$0xff]
        %v2435 = vld [vmem:[#allocation2 + $0x88] sm:$0xff]
        %v2436 = vld [vmem:[#allocation2 + $0x120] sm:$0xff]
        %v2437 = vld [vmem:[#allocation2 + $0x128] sm:$0xff]
        %v2438 = vld [vmem:[#allocation2 + $0x1c0] sm:$0xff]
        %v2439 = vld [vmem:[#allocation2 + $0x1c8] sm:$0xff]
        %v2444 = vunpack.c.l.b16 %v2430
        %v2445 = vunpack.c.l.b16 %v2431
        %v2446 = vunpack.c.l.b16 %v2432
        %v2447 = vunpack.c.l.b16 %v2433
        %v2448 = vpack.c.b16 %v2445, %v2444
        %v2449 = vpack.c.b16 %v2447, %v2446
        %vm2450 = vcmask 392192
        %v2452 = vsel %vm2450, %v2448, 0
        %v2455 = vsel %vm2450, %v2449, 0
        %2457 = vmatprep.subr.bf16.mxu0 %v2384
        %2458 = vmatpush1.bf16.msra.mxu0 %v2383
        %2459 = vmatprep.subr.bf16.mxu0 %v2400
        %2460 = vmatpush1.bf16.msra.mxu0 %v2399
        %2461 = vmatprep.subr.bf16.mxu0 %v2416
        %2462 = vmatpush1.bf16.msra.mxu0 %v2415
        %2463 = vmatprep.subr.bf16.mxu0 0
        %2464 = vmatpush1.bf16.msra.mxu0 0
        %2465 = vmatprep.subr.bf16.mxu0 0
        %2466 = vmatpush1.bf16.msra.mxu0 0
        %2467 = vmatprep.subr.bf16.mxu0 0
        %2468 = vmatpush1.bf16.msra.mxu0 0
        %2469 = vmatprep.subr.bf16.mxu0 0
        %2470 = vmatpush1.bf16.msra.mxu0 0
        %2471 = vmatprep.subr.bf16.mxu0 0
        %2472 = vmatpush1.bf16.msra.mxu0 0
        %2473 = vmatprep.subr.bf16.mxu0 0
        %2474 = vmatpush1.bf16.msra.mxu0 0
        %2475 = vmatprep.subr.bf16.mxu0 0
        %2476 = vmatpush1.bf16.msra.mxu0 0
        %2477 = vmatprep.subr.bf16.mxu0 0
        %2478 = vmatpush1.bf16.msra.mxu0 0
        %2479 = vmatprep.subr.bf16.mxu0 0
        %2480 = vmatpush1.bf16.msra.mxu0 0
        %2481 = vmatprep.subr.bf16.mxu0 0
        %2482 = vmatpush1.bf16.msra.mxu0 0
        %2483 = vmatprep.subr.bf16.mxu0 0
        %2484 = vmatpush1.bf16.msra.mxu0 0
        %2485 = vmatprep.subr.bf16.mxu0 0
        %2486 = vmatpush1.bf16.msra.mxu0 0
        %2487 = vmatprep.subr.bf16.mxu0 0
        %2488 = vmatpush1.bf16.msra.mxu0 0
        %2489 = vmatprep.mubr.bf16.mxu0 0
        %2490 = vmatmul.mubr.bf16.gmra.mrb[0].mxu0 %v2452
        %v2491 = vpop.f32.mrb[0].mxu0
        %v2492 = vadd.f32 0.0, %v2491
        %v2493 = vpop.f32.mrb[0].mxu0
        %v2494 = vadd.f32 0.0, %v2493
        %v2495 = vpop.f32.mrb[0].mxu0
        %v2496 = vadd.f32 0.0, %v2495
        %v2497 = vpop.f32.mrb[0].mxu0
        %v2498 = vadd.f32 0.0, %v2497
        %2499 = vmatprep.mubr.bf16.mxu0 0
        %2500 = vmatmul.mubr.bf16.gmra.mrb[0].mxu0 %v2455
        %v2501 = vpop.f32.mrb[0].mxu0
        %v2502 = vadd.f32 0.0, %v2501
        %v2503 = vpop.f32.mrb[0].mxu0
        %v2504 = vadd.f32 0.0, %v2503
        %v2505 = vpop.f32.mrb[0].mxu0
        %v2506 = vadd.f32 0.0, %v2505
        %v2507 = vpop.f32.mrb[0].mxu0
        %v2508 = vadd.f32 0.0, %v2507
        %2509 = vdwg.mxu0
        %2510 = vmatprep.subr.bf16.mxu0 %v2386
        %2511 = vmatpush1.bf16.msra.mxu0 %v2385
        %2512 = vmatprep.subr.bf16.mxu0 %v2402
        %2513 = vmatpush1.bf16.msra.mxu0 %v2401
        %2514 = vmatprep.subr.bf16.mxu0 %v2418
        %2515 = vmatpush1.bf16.msra.mxu0 %v2417
        %2516 = vmatprep.subr.bf16.mxu0 0
        %2517 = vmatpush1.bf16.msra.mxu0 0
        %2518 = vmatprep.subr.bf16.mxu0 0
        %2519 = vmatpush1.bf16.msra.mxu0 0
        %2520 = vmatprep.subr.bf16.mxu0 0
        %2521 = vmatpush1.bf16.msra.mxu0 0
        %2522 = vmatprep.subr.bf16.mxu0 0
        %2523 = vmatpush1.bf16.msra.mxu0 0
        %2524 = vmatprep.subr.bf16.mxu0 0
        %2525 = vmatpush1.bf16.msra.mxu0 0
        %2526 = vmatprep.subr.bf16.mxu0 0
        %2527 = vmatpush1.bf16.msra.mxu0 0
        %2528 = vmatprep.subr.bf16.mxu0 0
        %2529 = vmatpush1.bf16.msra.mxu0 0
        %2530 = vmatprep.subr.bf16.mxu0 0
        %2531 = vmatpush1.bf16.msra.mxu0 0
        %2532 = vmatprep.subr.bf16.mxu0 0
        %2533 = vmatpush1.bf16.msra.mxu0 0
        %2534 = vmatprep.subr.bf16.mxu0 0
        %2535 = vmatpush1.bf16.msra.mxu0 0
        %2536 = vmatprep.subr.bf16.mxu0 0
        %2537 = vmatpush1.bf16.msra.mxu0 0
        %2538 = vmatprep.subr.bf16.mxu0 0
        %2539 = vmatpush1.bf16.msra.mxu0 0
        %2540 = vmatprep.subr.bf16.mxu0 0
        %2541 = vmatpush1.bf16.msra.mxu0 0
        %2542 = vmatprep.mubr.bf16.mxu0 0
        %2543 = vmatmul.mubr.bf16.gmra.mrb[0].mxu0 %v2452
        %v2544 = vpop.f32.mrb[0].mxu0
        %v2545 = vadd.f32 0.0, %v2544
        %v2546 = vpop.f32.mrb[0].mxu0
        %v2547 = vadd.f32 0.0, %v2546
        %v2548 = vpop.f32.mrb[0].mxu0
        %v2549 = vadd.f32 0.0, %v2548
        %v2550 = vpop.f32.mrb[0].mxu0
        %v2551 = vadd.f32 0.0, %v2550
        %2552 = vmatprep.mubr.bf16.mxu0 0
        %2553 = vmatmul.mubr.bf16.gmra.mrb[0].mxu0 %v2455
        %v2554 = vpop.f32.mrb[0].mxu0
        %v2555 = vadd.f32 0.0, %v2554
        %v2556 = vpop.f32.mrb[0].mxu0
        %v2557 = vadd.f32 0.0, %v2556
        %v2558 = vpop.f32.mrb[0].mxu0
        %v2559 = vadd.f32 0.0, %v2558
        %v2560 = vpop.f32.mrb[0].mxu0
        %v2561 = vadd.f32 0.0, %v2560
        %2562 = vdwg.mxu0
        %2563 = vmatprep.subr.bf16.mxu0 %v2388
        %2564 = vmatpush1.bf16.msra.mxu0 %v2387
        %2565 = vmatprep.subr.bf16.mxu0 %v2404
        %2566 = vmatpush1.bf16.msra.mxu0 %v2403
        %2567 = vmatprep.subr.bf16.mxu0 %v2420
        %2568 = vmatpush1.bf16.msra.mxu0 %v2419
        %2569 = vmatprep.subr.bf16.mxu0 0
        %2570 = vmatpush1.bf16.msra.mxu0 0
        %2571 = vmatprep.subr.bf16.mxu0 0
        %2572 = vmatpush1.bf16.msra.mxu0 0
        %2573 = vmatprep.subr.bf16.mxu0 0
        %2574 = vmatpush1.bf16.msra.mxu0 0
        %2575 = vmatprep.subr.bf16.mxu0 0
        %2576 = vmatpush1.bf16.msra.mxu0 0
        %2577 = vmatprep.subr.bf16.mxu0 0
        %2578 = vmatpush1.bf16.msra.mxu0 0
        %2579 = vmatprep.subr.bf16.mxu0 0
        %2580 = vmatpush1.bf16.msra.mxu0 0
        %2581 = vmatprep.subr.bf16.mxu0 0
        %2582 = vmatpush1.bf16.msra.mxu0 0
        %2583 = vmatprep.subr.bf16.mxu0 0
        %2584 = vmatpush1.bf16.msra.mxu0 0
        %2585 = vmatprep.subr.bf16.mxu0 0
        %2586 = vmatpush1.bf16.msra.mxu0 0
        %2587 = vmatprep.subr.bf16.mxu0 0
        %2588 = vmatpush1.bf16.msra.mxu0 0
        %2589 = vmatprep.subr.bf16.mxu0 0
        %2590 = vmatpush1.bf16.msra.mxu0 0
        %2591 = vmatprep.subr.bf16.mxu0 0
        %2592 = vmatpush1.bf16.msra.mxu0 0
        %2593 = vmatprep.subr.bf16.mxu0 0
        %2594 = vmatpush1.bf16.msra.mxu0 0
        %2595 = vmatprep.mubr.bf16.mxu0 0
        %2596 = vmatmul.mubr.bf16.gmra.mrb[0].mxu0 %v2452
        %v2597 = vpop.f32.mrb[0].mxu0
        %v2598 = vadd.f32 0.0, %v2597
        %v2599 = vpop.f32.mrb[0].mxu0
        %v2600 = vadd.f32 0.0, %v2599
        %v2601 = vpop.f32.mrb[0].mxu0
        %v2602 = vadd.f32 0.0, %v2601
        %v2603 = vpop.f32.mrb[0].mxu0
        %v2604 = vadd.f32 0.0, %v2603
        %2605 = vmatprep.mubr.bf16.mxu0 0
        %2606 = vmatmul.mubr.bf16.gmra.mrb[0].mxu0 %v2455
        %v2607 = vpop.f32.mrb[0].mxu0
        %v2608 = vadd.f32 0.0, %v2607
        %v2609 = vpop.f32.mrb[0].mxu0
        %v2610 = vadd.f32 0.0, %v2609
        %v2611 = vpop.f32.mrb[0].mxu0
        %v2612 = vadd.f32 0.0, %v2611
        %v2613 = vpop.f32.mrb[0].mxu0
        %v2614 = vadd.f32 0.0, %v2613
        %2615 = vdwg.mxu0
        %2616 = vmatprep.subr.bf16.mxu0 %v2390
        %2617 = vmatpush1.bf16.msra.mxu0 %v2389
        %2618 = vmatprep.subr.bf16.mxu0 %v2406
        %2619 = vmatpush1.bf16.msra.mxu0 %v2405
        %2620 = vmatprep.subr.bf16.mxu0 %v2422
        %2621 = vmatpush1.bf16.msra.mxu0 %v2421
        %2622 = vmatprep.subr.bf16.mxu0 0
        %2623 = vmatpush1.bf16.msra.mxu0 0
        %2624 = vmatprep.subr.bf16.mxu0 0
        %2625 = vmatpush1.bf16.msra.mxu0 0
        %2626 = vmatprep.subr.bf16.mxu0 0
        %2627 = vmatpush1.bf16.msra.mxu0 0
        %2628 = vmatprep.subr.bf16.mxu0 0
        %2629 = vmatpush1.bf16.msra.mxu0 0
        %2630 = vmatprep.subr.bf16.mxu0 0
        %2631 = vmatpush1.bf16.msra.mxu0 0
        %2632 = vmatprep.subr.bf16.mxu0 0
        %2633 = vmatpush1.bf16.msra.mxu0 0
        %2634 = vmatprep.subr.bf16.mxu0 0
        %2635 = vmatpush1.bf16.msra.mxu0 0
        %2636 = vmatprep.subr.bf16.mxu0 0
        %2637 = vmatpush1.bf16.msra.mxu0 0
        %2638 = vmatprep.subr.bf16.mxu0 0
        %2639 = vmatpush1.bf16.msra.mxu0 0
        %2640 = vmatprep.subr.bf16.mxu0 0
        %2641 = vmatpush1.bf16.msra.mxu0 0
        %2642 = vmatprep.subr.bf16.mxu0 0
        %2643 = vmatpush1.bf16.msra.mxu0 0
        %2644 = vmatprep.subr.bf16.mxu0 0
        %2645 = vmatpush1.bf16.msra.mxu0 0
        %2646 = vmatprep.subr.bf16.mxu0 0
        %2647 = vmatpush1.bf16.msra.mxu0 0
        %2648 = vmatprep.mubr.bf16.mxu0 0
        %2649 = vmatmul.mubr.bf16.gmra.mrb[0].mxu0 %v2452
        %v2650 = vpop.f32.mrb[0].mxu0
        %v2651 = vadd.f32 0.0, %v2650
        %v2652 = vpop.f32.mrb[0].mxu0
        %v2653 = vadd.f32 0.0, %v2652
        %v2654 = vpop.f32.mrb[0].mxu0
        %v2655 = vadd.f32 0.0, %v2654
        %v2656 = vpop.f32.mrb[0].mxu0
        %v2657 = vadd.f32 0.0, %v2656
        %2658 = vmatprep.mubr.bf16.mxu0 0
        %2659 = vmatmul.mubr.bf16.gmra.mrb[0].mxu0 %v2455
        %v2660 = vpop.f32.mrb[0].mxu0
        %v2661 = vadd.f32 0.0, %v2660
        %v2662 = vpop.f32.mrb[0].mxu0
        %v2663 = vadd.f32 0.0, %v2662
        %v2664 = vpop.f32.mrb[0].mxu0
        %v2665 = vadd.f32 0.0, %v2664
        %v2666 = vpop.f32.mrb[0].mxu0
        %v2667 = vadd.f32 0.0, %v2666
        %2668 = vdwg.mxu0
        %2669 = vmatprep.subr.bf16.mxu0 %v2392
        %2670 = vmatpush1.bf16.msra.mxu0 %v2391
        %2671 = vmatprep.subr.bf16.mxu0 %v2408
        %2672 = vmatpush1.bf16.msra.mxu0 %v2407
        %2673 = vmatprep.subr.bf16.mxu0 %v2424
        %2674 = vmatpush1.bf16.msra.mxu0 %v2423
        %2675 = vmatprep.subr.bf16.mxu0 0
        %2676 = vmatpush1.bf16.msra.mxu0 0
        %2677 = vmatprep.subr.bf16.mxu0 0
        %2678 = vmatpush1.bf16.msra.mxu0 0
        %2679 = vmatprep.subr.bf16.mxu0 0
        %2680 = vmatpush1.bf16.msra.mxu0 0
        %2681 = vmatprep.subr.bf16.mxu0 0
        %2682 = vmatpush1.bf16.msra.mxu0 0
        %2683 = vmatprep.subr.bf16.mxu0 0
        %2684 = vmatpush1.bf16.msra.mxu0 0
        %2685 = vmatprep.subr.bf16.mxu0 0
        %2686 = vmatpush1.bf16.msra.mxu0 0
        %2687 = vmatprep.subr.bf16.mxu0 0
        %2688 = vmatpush1.bf16.msra.mxu0 0
        %2689 = vmatprep.subr.bf16.mxu0 0
        %2690 = vmatpush1.bf16.msra.mxu0 0
        %2691 = vmatprep.subr.bf16.mxu0 0
        %2692 = vmatpush1.bf16.msra.mxu0 0
        %2693 = vmatprep.subr.bf16.mxu0 0
        %2694 = vmatpush1.bf16.msra.mxu0 0
        %2695 = vmatprep.subr.bf16.mxu0 0
        %2696 = vmatpush1.bf16.msra.mxu0 0
        %2697 = vmatprep.subr.bf16.mxu0 0
        %2698 = vmatpush1.bf16.msra.mxu0 0
        %2699 = vmatprep.subr.bf16.mxu0 0
        %2700 = vmatpush1.bf16.msra.mxu0 0
        %2701 = vmatprep.mubr.bf16.mxu0 0
        %2702 = vmatmul.mubr.bf16.gmra.mrb[0].mxu0 %v2452
        %v2703 = vpop.f32.mrb[0].mxu0
        %v2704 = vadd.f32 0.0, %v2703
        %v2705 = vpop.f32.mrb[0].mxu0
        %v2706 = vadd.f32 0.0, %v2705
        %v2707 = vpop.f32.mrb[0].mxu0
        %v2708 = vadd.f32 0.0, %v2707
        %v2709 = vpop.f32.mrb[0].mxu0
        %v2710 = vadd.f32 0.0, %v2709
        %2711 = vmatprep.mubr.bf16.mxu0 0
        %2712 = vmatmul.mubr.bf16.gmra.mrb[0].mxu0 %v2455
        %v2713 = vpop.f32.mrb[0].mxu0
        %v2714 = vadd.f32 0.0, %v2713
        %v2715 = vpop.f32.mrb[0].mxu0
        %v2716 = vadd.f32 0.0, %v2715
        %v2717 = vpop.f32.mrb[0].mxu0
        %v2718 = vadd.f32 0.0, %v2717
        %v2719 = vpop.f32.mrb[0].mxu0
        %v2720 = vadd.f32 0.0, %v2719
        %2721 = vdwg.mxu0
        %2722 = vmatprep.subr.bf16.mxu0 %v2394
        %2723 = vmatpush1.bf16.msra.mxu0 %v2393
        %2724 = vmatprep.subr.bf16.mxu0 %v2410
        %2725 = vmatpush1.bf16.msra.mxu0 %v2409
        %2726 = vmatprep.subr.bf16.mxu0 %v2426
        %2727 = vmatpush1.bf16.msra.mxu0 %v2425
        %2728 = vmatprep.subr.bf16.mxu0 0
        %2729 = vmatpush1.bf16.msra.mxu0 0
        %2730 = vmatprep.subr.bf16.mxu0 0
        %2731 = vmatpush1.bf16.msra.mxu0 0
        %2732 = vmatprep.subr.bf16.mxu0 0
        %2733 = vmatpush1.bf16.msra.mxu0 0
        %2734 = vmatprep.subr.bf16.mxu0 0
        %2735 = vmatpush1.bf16.msra.mxu0 0
        %2736 = vmatprep.subr.bf16.mxu0 0
        %2737 = vmatpush1.bf16.msra.mxu0 0
        %2738 = vmatprep.subr.bf16.mxu0 0
        %2739 = vmatpush1.bf16.msra.mxu0 0
        %2740 = vmatprep.subr.bf16.mxu0 0
        %2741 = vmatpush1.bf16.msra.mxu0 0
        %2742 = vmatprep.subr.bf16.mxu0 0
        %2743 = vmatpush1.bf16.msra.mxu0 0
        %2744 = vmatprep.subr.bf16.mxu0 0
        %2745 = vmatpush1.bf16.msra.mxu0 0
        %2746 = vmatprep.subr.bf16.mxu0 0
        %2747 = vmatpush1.bf16.msra.mxu0 0
        %2748 = vmatprep.subr.bf16.mxu0 0
        %2749 = vmatpush1.bf16.msra.mxu0 0
        %2750 = vmatprep.subr.bf16.mxu0 0
        %2751 = vmatpush1.bf16.msra.mxu0 0
        %2752 = vmatprep.subr.bf16.mxu0 0
        %2753 = vmatpush1.bf16.msra.mxu0 0
        %2754 = vmatprep.mubr.bf16.mxu0 0
        %2755 = vmatmul.mubr.bf16.gmra.mrb[0].mxu0 %v2452
        %v2756 = vpop.f32.mrb[0].mxu0
        %v2757 = vadd.f32 0.0, %v2756
        %v2758 = vpop.f32.mrb[0].mxu0
        %v2759 = vadd.f32 0.0, %v2758
        %v2760 = vpop.f32.mrb[0].mxu0
        %v2761 = vadd.f32 0.0, %v2760
        %v2762 = vpop.f32.mrb[0].mxu0
        %v2763 = vadd.f32 0.0, %v2762
        %2764 = vmatprep.mubr.bf16.mxu0 0
        %2765 = vmatmul.mubr.bf16.gmra.mrb[0].mxu0 %v2455
        %v2766 = vpop.f32.mrb[0].mxu0
        %v2767 = vadd.f32 0.0, %v2766
        %v2768 = vpop.f32.mrb[0].mxu0
        %v2769 = vadd.f32 0.0, %v2768
        %v2770 = vpop.f32.mrb[0].mxu0
        %v2771 = vadd.f32 0.0, %v2770
        %v2772 = vpop.f32.mrb[0].mxu0
        %v2773 = vadd.f32 0.0, %v2772
        %2774 = vdwg.mxu0
        %2775 = vmatprep.subr.bf16.mxu0 %v2396
        %2776 = vmatpush1.bf16.msra.mxu0 %v2395
        %2777 = vmatprep.subr.bf16.mxu0 %v2412
        %2778 = vmatpush1.bf16.msra.mxu0 %v2411
        %2779 = vmatprep.subr.bf16.mxu0 %v2428
        %2780 = vmatpush1.bf16.msra.mxu0 %v2427
        %2781 = vmatprep.subr.bf16.mxu0 0
        %2782 = vmatpush1.bf16.msra.mxu0 0
        %2783 = vmatprep.subr.bf16.mxu0 0
        %2784 = vmatpush1.bf16.msra.mxu0 0
        %2785 = vmatprep.subr.bf16.mxu0 0
        %2786 = vmatpush1.bf16.msra.mxu0 0
        %2787 = vmatprep.subr.bf16.mxu0 0
        %2788 = vmatpush1.bf16.msra.mxu0 0
        %2789 = vmatprep.subr.bf16.mxu0 0
        %2790 = vmatpush1.bf16.msra.mxu0 0
        %2791 = vmatprep.subr.bf16.mxu0 0
        %2792 = vmatpush1.bf16.msra.mxu0 0
        %2793 = vmatprep.subr.bf16.mxu0 0
        %2794 = vmatpush1.bf16.msra.mxu0 0
        %2795 = vmatprep.subr.bf16.mxu0 0
        %2796 = vmatpush1.bf16.msra.mxu0 0
        %2797 = vmatprep.subr.bf16.mxu0 0
        %2798 = vmatpush1.bf16.msra.mxu0 0
        %2799 = vmatprep.subr.bf16.mxu0 0
        %2800 = vmatpush1.bf16.msra.mxu0 0
        %2801 = vmatprep.subr.bf16.mxu0 0
        %2802 = vmatpush1.bf16.msra.mxu0 0
        %2803 = vmatprep.subr.bf16.mxu0 0
        %2804 = vmatpush1.bf16.msra.mxu0 0
        %2805 = vmatprep.subr.bf16.mxu0 0
        %2806 = vmatpush1.bf16.msra.mxu0 0
        %2807 = vmatprep.mubr.bf16.mxu0 0
        %2808 = vmatmul.mubr.bf16.gmra.mrb[0].mxu0 %v2452
        %v2809 = vpop.f32.mrb[0].mxu0
        %v2810 = vadd.f32 0.0, %v2809
        %v2811 = vpop.f32.mrb[0].mxu0
        %v2812 = vadd.f32 0.0, %v2811
        %v2813 = vpop.f32.mrb[0].mxu0
        %v2814 = vadd.f32 0.0, %v2813
        %v2815 = vpop.f32.mrb[0].mxu0
        %v2816 = vadd.f32 0.0, %v2815
        %2817 = vmatprep.mubr.bf16.mxu0 0
        %2818 = vmatmul.mubr.bf16.gmra.mrb[0].mxu0 %v2455
        %v2819 = vpop.f32.mrb[0].mxu0
        %v2820 = vadd.f32 0.0, %v2819
        %v2821 = vpop.f32.mrb[0].mxu0
        %v2822 = vadd.f32 0.0, %v2821
        %v2823 = vpop.f32.mrb[0].mxu0
        %v2824 = vadd.f32 0.0, %v2823
        %v2825 = vpop.f32.mrb[0].mxu0
        %v2826 = vadd.f32 0.0, %v2825
        %2827 = vdwg.mxu0
        %2828 = vmatprep.subr.bf16.mxu0 %v2435
        %2829 = vmatpush1.bf16.msra.mxu0 %v2434
        %2830 = vmatprep.subr.bf16.mxu0 %v2437
        %2831 = vmatpush1.bf16.msra.mxu0 %v2436
        %2832 = vmatprep.subr.bf16.mxu0 %v2439
        %2833 = vmatpush1.bf16.msra.mxu0 %v2438
        %2834 = vmatprep.subr.bf16.mxu0 0
        %2835 = vmatpush1.bf16.msra.mxu0 0
        %2836 = vmatprep.subr.bf16.mxu0 0
        %2837 = vmatpush1.bf16.msra.mxu0 0
        %2838 = vmatprep.subr.bf16.mxu0 0
        %2839 = vmatpush1.bf16.msra.mxu0 0
        %2840 = vmatprep.subr.bf16.mxu0 0
        %2841 = vmatpush1.bf16.msra.mxu0 0
        %2842 = vmatprep.subr.bf16.mxu0 0
        %2843 = vmatpush1.bf16.msra.mxu0 0
        %2844 = vmatprep.subr.bf16.mxu0 0
        %2845 = vmatpush1.bf16.msra.mxu0 0
        %2846 = vmatprep.subr.bf16.mxu0 0
        %2847 = vmatpush1.bf16.msra.mxu0 0
        %2848 = vmatprep.subr.bf16.mxu0 0
        %2849 = vmatpush1.bf16.msra.mxu0 0
        %2850 = vmatprep.subr.bf16.mxu0 0
        %2851 = vmatpush1.bf16.msra.mxu0 0
        %2852 = vmatprep.subr.bf16.mxu0 0
        %2853 = vmatpush1.bf16.msra.mxu0 0
        %2854 = vmatprep.subr.bf16.mxu0 0
        %2855 = vmatpush1.bf16.msra.mxu0 0
        %2856 = vmatprep.subr.bf16.mxu0 0
        %2857 = vmatpush1.bf16.msra.mxu0 0
        %2858 = vmatprep.subr.bf16.mxu0 0
        %2859 = vmatpush1.bf16.msra.mxu0 0
        %2860 = vmatprep.mubr.bf16.mxu0 0
        %2861 = vmatmul.mubr.bf16.gmra.mrb[0].mxu0 %v2452
        %v2862 = vpop.f32.mrb[0].mxu0
        %v2863 = vadd.f32 0.0, %v2862
        %v2864 = vpop.f32.mrb[0].mxu0
        %v2865 = vadd.f32 0.0, %v2864
        %v2866 = vpop.f32.mrb[0].mxu0
        %v2867 = vadd.f32 0.0, %v2866
        %v2868 = vpop.f32.mrb[0].mxu0
        %v2869 = vadd.f32 0.0, %v2868
        %2870 = vmatprep.mubr.bf16.mxu0 0
        %2871 = vmatmul.mubr.bf16.gmra.mrb[0].mxu0 %v2455
        %v2872 = vpop.f32.mrb[0].mxu0
        %v2873 = vadd.f32 0.0, %v2872
        %v2874 = vpop.f32.mrb[0].mxu0
        %v2875 = vadd.f32 0.0, %v2874
        %v2876 = vpop.f32.mrb[0].mxu0
        %v2877 = vadd.f32 0.0, %v2876
        %v2878 = vpop.f32.mrb[0].mxu0
        %v2879 = vadd.f32 0.0, %v2878
        %2880 = vdwg.mxu0
        %v2885 = vunpack.c.l.b16 %v2377
        %v2886 = vunpack.c.l.b16 %v2378
        %v2887 = vunpack.c.l.b16 %v2379
        %v2888 = vunpack.c.l.b16 %v2380
        %v2889 = vpack.c.b16 %v2886, %v2885
        %v2890 = vpack.c.b16 %v2888, %v2887
        %v2892 = vsel %vm2450, %v2889, 0
        %v2895 = vsel %vm2450, %v2890, 0
        %2897 = vmatprep.subr.bf16.mxu0 %v2382
        %2898 = vmatpush1.bf16.msra.mxu0 %v2381
        %2899 = vmatprep.subr.bf16.mxu0 %v2398
        %2900 = vmatpush1.bf16.msra.mxu0 %v2397
        %2901 = vmatprep.subr.bf16.mxu0 %v2414
        %2902 = vmatpush1.bf16.msra.mxu0 %v2413
        %2903 = vmatprep.subr.bf16.mxu0 0
        %2904 = vmatpush1.bf16.msra.mxu0 0
        %2905 = vmatprep.subr.bf16.mxu0 0
        %2906 = vmatpush1.bf16.msra.mxu0 0
        %2907 = vmatprep.subr.bf16.mxu0 0
        %2908 = vmatpush1.bf16.msra.mxu0 0
        %2909 = vmatprep.subr.bf16.mxu0 0
        %2910 = vmatpush1.bf16.msra.mxu0 0
        %2911 = vmatprep.subr.bf16.mxu0 0
        %2912 = vmatpush1.bf16.msra.mxu0 0
        %2913 = vmatprep.subr.bf16.mxu0 0
        %2914 = vmatpush1.bf16.msra.mxu0 0
        %2915 = vmatprep.subr.bf16.mxu0 0
        %2916 = vmatpush1.bf16.msra.mxu0 0
        %2917 = vmatprep.subr.bf16.mxu0 0
        %2918 = vmatpush1.bf16.msra.mxu0 0
        %2919 = vmatprep.subr.bf16.mxu0 0
        %2920 = vmatpush1.bf16.msra.mxu0 0
        %2921 = vmatprep.subr.bf16.mxu0 0
        %2922 = vmatpush1.bf16.msra.mxu0 0
        %2923 = vmatprep.subr.bf16.mxu0 0
        %2924 = vmatpush1.bf16.msra.mxu0 0
        %2925 = vmatprep.subr.bf16.mxu0 0
        %2926 = vmatpush1.bf16.msra.mxu0 0
        %2927 = vmatprep.subr.bf16.mxu0 0
        %2928 = vmatpush1.bf16.msra.mxu0 0
        %2929 = vmatprep.mubr.bf16.mxu0 0
        %2930 = vmatmul.mubr.bf16.gmra.mrb[0].mxu0 %v2892
        %v2931 = vpop.f32.mrb[0].mxu0
        %v2932 = vadd.f32 %v2492, %v2931
        %v2933 = vpop.f32.mrb[0].mxu0
        %v2934 = vadd.f32 %v2494, %v2933
        %v2935 = vpop.f32.mrb[0].mxu0
        %v2936 = vadd.f32 %v2496, %v2935
        %v2937 = vpop.f32.mrb[0].mxu0
        %v2938 = vadd.f32 %v2498, %v2937
        %2939 = vmatprep.mubr.bf16.mxu0 0
        %2940 = vmatmul.mubr.bf16.gmra.mrb[0].mxu0 %v2895
        %v2941 = vpop.f32.mrb[0].mxu0
        %v2942 = vadd.f32 %v2502, %v2941
        %v2943 = vpop.f32.mrb[0].mxu0
        %v2944 = vadd.f32 %v2504, %v2943
        %v2945 = vpop.f32.mrb[0].mxu0
        %v2946 = vadd.f32 %v2506, %v2945
        %v2947 = vpop.f32.mrb[0].mxu0
        %v2948 = vadd.f32 %v2508, %v2947
        %2949 = vdwg.mxu0
        %2950 = vmatprep.subr.bf16.mxu0 %v2384
        %2951 = vmatpush1.bf16.msra.mxu0 %v2383
        %2952 = vmatprep.subr.bf16.mxu0 %v2400
        %2953 = vmatpush1.bf16.msra.mxu0 %v2399
        %2954 = vmatprep.subr.bf16.mxu0 %v2416
        %2955 = vmatpush1.bf16.msra.mxu0 %v2415
        %2956 = vmatprep.subr.bf16.mxu0 0
        %2957 = vmatpush1.bf16.msra.mxu0 0
        %2958 = vmatprep.subr.bf16.mxu0 0
        %2959 = vmatpush1.bf16.msra.mxu0 0
        %2960 = vmatprep.subr.bf16.mxu0 0
        %2961 = vmatpush1.bf16.msra.mxu0 0
        %2962 = vmatprep.subr.bf16.mxu0 0
        %2963 = vmatpush1.bf16.msra.mxu0 0
        %2964 = vmatprep.subr.bf16.mxu0 0
        %2965 = vmatpush1.bf16.msra.mxu0 0
        %2966 = vmatprep.subr.bf16.mxu0 0
        %2967 = vmatpush1.bf16.msra.mxu0 0
        %2968 = vmatprep.subr.bf16.mxu0 0
        %2969 = vmatpush1.bf16.msra.mxu0 0
        %2970 = vmatprep.subr.bf16.mxu0 0
        %2971 = vmatpush1.bf16.msra.mxu0 0
        %2972 = vmatprep.subr.bf16.mxu0 0
        %2973 = vmatpush1.bf16.msra.mxu0 0
        %2974 = vmatprep.subr.bf16.mxu0 0
        %2975 = vmatpush1.bf16.msra.mxu0 0
        %2976 = vmatprep.subr.bf16.mxu0 0
        %2977 = vmatpush1.bf16.msra.mxu0 0
        %2978 = vmatprep.subr.bf16.mxu0 0
        %2979 = vmatpush1.bf16.msra.mxu0 0
        %2980 = vmatprep.subr.bf16.mxu0 0
        %2981 = vmatpush1.bf16.msra.mxu0 0
        %2982 = vmatprep.mubr.bf16.mxu0 0
        %2983 = vmatmul.mubr.bf16.gmra.mrb[0].mxu0 %v2892
        %v2984 = vpop.f32.mrb[0].mxu0
        %v2985 = vadd.f32 %v2545, %v2984
        %v2986 = vpop.f32.mrb[0].mxu0
        %v2987 = vadd.f32 %v2547, %v2986
        %v2988 = vpop.f32.mrb[0].mxu0
        %v2989 = vadd.f32 %v2549, %v2988
        %v2990 = vpop.f32.mrb[0].mxu0
        %v2991 = vadd.f32 %v2551, %v2990
        %2992 = vmatprep.mubr.bf16.mxu0 0
        %2993 = vmatmul.mubr.bf16.gmra.mrb[0].mxu0 %v2895
        %v2994 = vpop.f32.mrb[0].mxu0
        %v2995 = vadd.f32 %v2555, %v2994
        %v2996 = vpop.f32.mrb[0].mxu0
        %v2997 = vadd.f32 %v2557, %v2996
        %v2998 = vpop.f32.mrb[0].mxu0
        %v2999 = vadd.f32 %v2559, %v2998
        %v3000 = vpop.f32.mrb[0].mxu0
        %v3001 = vadd.f32 %v2561, %v3000
        %3002 = vdwg.mxu0
        %3003 = vmatprep.subr.bf16.mxu0 %v2386
        %3004 = vmatpush1.bf16.msra.mxu0 %v2385
        %3005 = vmatprep.subr.bf16.mxu0 %v2402
        %3006 = vmatpush1.bf16.msra.mxu0 %v2401
        %3007 = vmatprep.subr.bf16.mxu0 %v2418
        %3008 = vmatpush1.bf16.msra.mxu0 %v2417
        %3009 = vmatprep.subr.bf16.mxu0 0
        %3010 = vmatpush1.bf16.msra.mxu0 0
        %3011 = vmatprep.subr.bf16.mxu0 0
        %3012 = vmatpush1.bf16.msra.mxu0 0
        %3013 = vmatprep.subr.bf16.mxu0 0
        %3014 = vmatpush1.bf16.msra.mxu0 0
        %3015 = vmatprep.subr.bf16.mxu0 0
        %3016 = vmatpush1.bf16.msra.mxu0 0
        %3017 = vmatprep.subr.bf16.mxu0 0
        %3018 = vmatpush1.bf16.msra.mxu0 0
        %3019 = vmatprep.subr.bf16.mxu0 0
        %3020 = vmatpush1.bf16.msra.mxu0 0
        %3021 = vmatprep.subr.bf16.mxu0 0
        %3022 = vmatpush1.bf16.msra.mxu0 0
        %3023 = vmatprep.subr.bf16.mxu0 0
        %3024 = vmatpush1.bf16.msra.mxu0 0
        %3025 = vmatprep.subr.bf16.mxu0 0
        %3026 = vmatpush1.bf16.msra.mxu0 0
        %3027 = vmatprep.subr.bf16.mxu0 0
        %3028 = vmatpush1.bf16.msra.mxu0 0
        %3029 = vmatprep.subr.bf16.mxu0 0
        %3030 = vmatpush1.bf16.msra.mxu0 0
        %3031 = vmatprep.subr.bf16.mxu0 0
        %3032 = vmatpush1.bf16.msra.mxu0 0
        %3033 = vmatprep.subr.bf16.mxu0 0
        %3034 = vmatpush1.bf16.msra.mxu0 0
        %3035 = vmatprep.mubr.bf16.mxu0 0
        %3036 = vmatmul.mubr.bf16.gmra.mrb[0].mxu0 %v2892
        %v3037 = vpop.f32.mrb[0].mxu0
        %v3038 = vadd.f32 %v2598, %v3037
        %v3039 = vpop.f32.mrb[0].mxu0
        %v3040 = vadd.f32 %v2600, %v3039
        %v3041 = vpop.f32.mrb[0].mxu0
        %v3042 = vadd.f32 %v2602, %v3041
        %v3043 = vpop.f32.mrb[0].mxu0
        %v3044 = vadd.f32 %v2604, %v3043
        %3045 = vmatprep.mubr.bf16.mxu0 0
        %3046 = vmatmul.mubr.bf16.gmra.mrb[0].mxu0 %v2895
        %v3047 = vpop.f32.mrb[0].mxu0
        %v3048 = vadd.f32 %v2608, %v3047
        %v3049 = vpop.f32.mrb[0].mxu0
        %v3050 = vadd.f32 %v2610, %v3049
        %v3051 = vpop.f32.mrb[0].mxu0
        %v3052 = vadd.f32 %v2612, %v3051
        %v3053 = vpop.f32.mrb[0].mxu0
        %v3054 = vadd.f32 %v2614, %v3053
        %3055 = vdwg.mxu0
        %3056 = vmatprep.subr.bf16.mxu0 %v2388
        %3057 = vmatpush1.bf16.msra.mxu0 %v2387
        %3058 = vmatprep.subr.bf16.mxu0 %v2404
        %3059 = vmatpush1.bf16.msra.mxu0 %v2403
        %3060 = vmatprep.subr.bf16.mxu0 %v2420
        %3061 = vmatpush1.bf16.msra.mxu0 %v2419
        %3062 = vmatprep.subr.bf16.mxu0 0
        %3063 = vmatpush1.bf16.msra.mxu0 0
        %3064 = vmatprep.subr.bf16.mxu0 0
        %3065 = vmatpush1.bf16.msra.mxu0 0
        %3066 = vmatprep.subr.bf16.mxu0 0
        %3067 = vmatpush1.bf16.msra.mxu0 0
        %3068 = vmatprep.subr.bf16.mxu0 0
        %3069 = vmatpush1.bf16.msra.mxu0 0
        %3070 = vmatprep.subr.bf16.mxu0 0
        %3071 = vmatpush1.bf16.msra.mxu0 0
        %3072 = vmatprep.subr.bf16.mxu0 0
        %3073 = vmatpush1.bf16.msra.mxu0 0
        %3074 = vmatprep.subr.bf16.mxu0 0
        %3075 = vmatpush1.bf16.msra.mxu0 0
        %3076 = vmatprep.subr.bf16.mxu0 0
        %3077 = vmatpush1.bf16.msra.mxu0 0
        %3078 = vmatprep.subr.bf16.mxu0 0
        %3079 = vmatpush1.bf16.msra.mxu0 0
        %3080 = vmatprep.subr.bf16.mxu0 0
        %3081 = vmatpush1.bf16.msra.mxu0 0
        %3082 = vmatprep.subr.bf16.mxu0 0
        %3083 = vmatpush1.bf16.msra.mxu0 0
        %3084 = vmatprep.subr.bf16.mxu0 0
        %3085 = vmatpush1.bf16.msra.mxu0 0
        %3086 = vmatprep.subr.bf16.mxu0 0
        %3087 = vmatpush1.bf16.msra.mxu0 0
        %3088 = vmatprep.mubr.bf16.mxu0 0
        %3089 = vmatmul.mubr.bf16.gmra.mrb[0].mxu0 %v2892
        %v3090 = vpop.f32.mrb[0].mxu0
        %v3091 = vadd.f32 %v2651, %v3090
        %v3092 = vpop.f32.mrb[0].mxu0
        %v3093 = vadd.f32 %v2653, %v3092
        %v3094 = vpop.f32.mrb[0].mxu0
        %v3095 = vadd.f32 %v2655, %v3094
        %v3096 = vpop.f32.mrb[0].mxu0
        %v3097 = vadd.f32 %v2657, %v3096
        %3098 = vmatprep.mubr.bf16.mxu0 0
        %3099 = vmatmul.mubr.bf16.gmra.mrb[0].mxu0 %v2895
        %v3100 = vpop.f32.mrb[0].mxu0
        %v3101 = vadd.f32 %v2661, %v3100
        %v3102 = vpop.f32.mrb[0].mxu0
        %v3103 = vadd.f32 %v2663, %v3102
        %v3104 = vpop.f32.mrb[0].mxu0
        %v3105 = vadd.f32 %v2665, %v3104
        %v3106 = vpop.f32.mrb[0].mxu0
        %v3107 = vadd.f32 %v2667, %v3106
        %3108 = vdwg.mxu0
        %3109 = vmatprep.subr.bf16.mxu0 %v2390
        %3110 = vmatpush1.bf16.msra.mxu0 %v2389
        %3111 = vmatprep.subr.bf16.mxu0 %v2406
        %3112 = vmatpush1.bf16.msra.mxu0 %v2405
        %3113 = vmatprep.subr.bf16.mxu0 %v2422
        %3114 = vmatpush1.bf16.msra.mxu0 %v2421
        %3115 = vmatprep.subr.bf16.mxu0 0
        %3116 = vmatpush1.bf16.msra.mxu0 0
        %3117 = vmatprep.subr.bf16.mxu0 0
        %3118 = vmatpush1.bf16.msra.mxu0 0
        %3119 = vmatprep.subr.bf16.mxu0 0
        %3120 = vmatpush1.bf16.msra.mxu0 0
        %3121 = vmatprep.subr.bf16.mxu0 0
        %3122 = vmatpush1.bf16.msra.mxu0 0
        %3123 = vmatprep.subr.bf16.mxu0 0
        %3124 = vmatpush1.bf16.msra.mxu0 0
        %3125 = vmatprep.subr.bf16.mxu0 0
        %3126 = vmatpush1.bf16.msra.mxu0 0
        %3127 = vmatprep.subr.bf16.mxu0 0
        %3128 = vmatpush1.bf16.msra.mxu0 0
        %3129 = vmatprep.subr.bf16.mxu0 0
        %3130 = vmatpush1.bf16.msra.mxu0 0
        %3131 = vmatprep.subr.bf16.mxu0 0
        %3132 = vmatpush1.bf16.msra.mxu0 0
        %3133 = vmatprep.subr.bf16.mxu0 0
        %3134 = vmatpush1.bf16.msra.mxu0 0
        %3135 = vmatprep.subr.bf16.mxu0 0
        %3136 = vmatpush1.bf16.msra.mxu0 0
        %3137 = vmatprep.subr.bf16.mxu0 0
        %3138 = vmatpush1.bf16.msra.mxu0 0
        %3139 = vmatprep.subr.bf16.mxu0 0
        %3140 = vmatpush1.bf16.msra.mxu0 0
        %3141 = vmatprep.mubr.bf16.mxu0 0
        %3142 = vmatmul.mubr.bf16.gmra.mrb[0].mxu0 %v2892
        %v3143 = vpop.f32.mrb[0].mxu0
        %v3144 = vadd.f32 %v2704, %v3143
        %v3145 = vpop.f32.mrb[0].mxu0
        %v3146 = vadd.f32 %v2706, %v3145
        %v3147 = vpop.f32.mrb[0].mxu0
        %v3148 = vadd.f32 %v2708, %v3147
        %v3149 = vpop.f32.mrb[0].mxu0
        %v3150 = vadd.f32 %v2710, %v3149
        %3151 = vmatprep.mubr.bf16.mxu0 0
        %3152 = vmatmul.mubr.bf16.gmra.mrb[0].mxu0 %v2895
        %v3153 = vpop.f32.mrb[0].mxu0
        %v3154 = vadd.f32 %v2714, %v3153
        %v3155 = vpop.f32.mrb[0].mxu0
        %v3156 = vadd.f32 %v2716, %v3155
        %v3157 = vpop.f32.mrb[0].mxu0
        %v3158 = vadd.f32 %v2718, %v3157
        %v3159 = vpop.f32.mrb[0].mxu0
        %v3160 = vadd.f32 %v2720, %v3159
        %3161 = vdwg.mxu0
        %3162 = vmatprep.subr.bf16.mxu0 %v2392
        %3163 = vmatpush1.bf16.msra.mxu0 %v2391
        %3164 = vmatprep.subr.bf16.mxu0 %v2408
        %3165 = vmatpush1.bf16.msra.mxu0 %v2407
        %3166 = vmatprep.subr.bf16.mxu0 %v2424
        %3167 = vmatpush1.bf16.msra.mxu0 %v2423
        %3168 = vmatprep.subr.bf16.mxu0 0
        %3169 = vmatpush1.bf16.msra.mxu0 0
        %3170 = vmatprep.subr.bf16.mxu0 0
        %3171 = vmatpush1.bf16.msra.mxu0 0
        %3172 = vmatprep.subr.bf16.mxu0 0
        %3173 = vmatpush1.bf16.msra.mxu0 0
        %3174 = vmatprep.subr.bf16.mxu0 0
        %3175 = vmatpush1.bf16.msra.mxu0 0
        %3176 = vmatprep.subr.bf16.mxu0 0
        %3177 = vmatpush1.bf16.msra.mxu0 0
        %3178 = vmatprep.subr.bf16.mxu0 0
        %3179 = vmatpush1.bf16.msra.mxu0 0
        %3180 = vmatprep.subr.bf16.mxu0 0
        %3181 = vmatpush1.bf16.msra.mxu0 0
        %3182 = vmatprep.subr.bf16.mxu0 0
        %3183 = vmatpush1.bf16.msra.mxu0 0
        %3184 = vmatprep.subr.bf16.mxu0 0
        %3185 = vmatpush1.bf16.msra.mxu0 0
        %3186 = vmatprep.subr.bf16.mxu0 0
        %3187 = vmatpush1.bf16.msra.mxu0 0
        %3188 = vmatprep.subr.bf16.mxu0 0
        %3189 = vmatpush1.bf16.msra.mxu0 0
        %3190 = vmatprep.subr.bf16.mxu0 0
        %3191 = vmatpush1.bf16.msra.mxu0 0
        %3192 = vmatprep.subr.bf16.mxu0 0
        %3193 = vmatpush1.bf16.msra.mxu0 0
        %3194 = vmatprep.mubr.bf16.mxu0 0
        %3195 = vmatmul.mubr.bf16.gmra.mrb[0].mxu0 %v2892
        %v3196 = vpop.f32.mrb[0].mxu0
        %v3197 = vadd.f32 %v2757, %v3196
        %v3198 = vpop.f32.mrb[0].mxu0
        %v3199 = vadd.f32 %v2759, %v3198
        %v3200 = vpop.f32.mrb[0].mxu0
        %v3201 = vadd.f32 %v2761, %v3200
        %v3202 = vpop.f32.mrb[0].mxu0
        %v3203 = vadd.f32 %v2763, %v3202
        %3204 = vmatprep.mubr.bf16.mxu0 0
        %3205 = vmatmul.mubr.bf16.gmra.mrb[0].mxu0 %v2895
        %v3206 = vpop.f32.mrb[0].mxu0
        %v3207 = vadd.f32 %v2767, %v3206
        %v3208 = vpop.f32.mrb[0].mxu0
        %v3209 = vadd.f32 %v2769, %v3208
        %v3210 = vpop.f32.mrb[0].mxu0
        %v3211 = vadd.f32 %v2771, %v3210
        %v3212 = vpop.f32.mrb[0].mxu0
        %v3213 = vadd.f32 %v2773, %v3212
        %3214 = vdwg.mxu0
        %3215 = vmatprep.subr.bf16.mxu0 %v2394
        %3216 = vmatpush1.bf16.msra.mxu0 %v2393
        %3217 = vmatprep.subr.bf16.mxu0 %v2410
        %3218 = vmatpush1.bf16.msra.mxu0 %v2409
        %3219 = vmatprep.subr.bf16.mxu0 %v2426
        %3220 = vmatpush1.bf16.msra.mxu0 %v2425
        %3221 = vmatprep.subr.bf16.mxu0 0
        %3222 = vmatpush1.bf16.msra.mxu0 0
        %3223 = vmatprep.subr.bf16.mxu0 0
        %3224 = vmatpush1.bf16.msra.mxu0 0
        %3225 = vmatprep.subr.bf16.mxu0 0
        %3226 = vmatpush1.bf16.msra.mxu0 0
        %3227 = vmatprep.subr.bf16.mxu0 0
        %3228 = vmatpush1.bf16.msra.mxu0 0
        %3229 = vmatprep.subr.bf16.mxu0 0
        %3230 = vmatpush1.bf16.msra.mxu0 0
        %3231 = vmatprep.subr.bf16.mxu0 0
        %3232 = vmatpush1.bf16.msra.mxu0 0
        %3233 = vmatprep.subr.bf16.mxu0 0
        %3234 = vmatpush1.bf16.msra.mxu0 0
        %3235 = vmatprep.subr.bf16.mxu0 0
        %3236 = vmatpush1.bf16.msra.mxu0 0
        %3237 = vmatprep.subr.bf16.mxu0 0
        %3238 = vmatpush1.bf16.msra.mxu0 0
        %3239 = vmatprep.subr.bf16.mxu0 0
        %3240 = vmatpush1.bf16.msra.mxu0 0
        %3241 = vmatprep.subr.bf16.mxu0 0
        %3242 = vmatpush1.bf16.msra.mxu0 0
        %3243 = vmatprep.subr.bf16.mxu0 0
        %3244 = vmatpush1.bf16.msra.mxu0 0
        %3245 = vmatprep.subr.bf16.mxu0 0
        %3246 = vmatpush1.bf16.msra.mxu0 0
        %3247 = vmatprep.mubr.bf16.mxu0 0
        %3248 = vmatmul.mubr.bf16.gmra.mrb[0].mxu0 %v2892
        %v3249 = vpop.f32.mrb[0].mxu0
        %v3250 = vadd.f32 %v2810, %v3249
        %v3251 = vpop.f32.mrb[0].mxu0
        %v3252 = vadd.f32 %v2812, %v3251
        %v3253 = vpop.f32.mrb[0].mxu0
        %v3254 = vadd.f32 %v2814, %v3253
        %v3255 = vpop.f32.mrb[0].mxu0
        %v3256 = vadd.f32 %v2816, %v3255
        %3257 = vmatprep.mubr.bf16.mxu0 0
        %3258 = vmatmul.mubr.bf16.gmra.mrb[0].mxu0 %v2895
        %v3259 = vpop.f32.mrb[0].mxu0
        %v3260 = vadd.f32 %v2820, %v3259
        %v3261 = vpop.f32.mrb[0].mxu0
        %v3262 = vadd.f32 %v2822, %v3261
        %v3263 = vpop.f32.mrb[0].mxu0
        %v3264 = vadd.f32 %v2824, %v3263
        %v3265 = vpop.f32.mrb[0].mxu0
        %v3266 = vadd.f32 %v2826, %v3265
        %3267 = vdwg.mxu0
        %3268 = vmatprep.subr.bf16.mxu0 %v2396
        %3269 = vmatpush1.bf16.msra.mxu0 %v2395
        %3270 = vmatprep.subr.bf16.mxu0 %v2412
        %3271 = vmatpush1.bf16.msra.mxu0 %v2411
        %3272 = vmatprep.subr.bf16.mxu0 %v2428
        %3273 = vmatpush1.bf16.msra.mxu0 %v2427
        %3274 = vmatprep.subr.bf16.mxu0 0
        %3275 = vmatpush1.bf16.msra.mxu0 0
        %3276 = vmatprep.subr.bf16.mxu0 0
        %3277 = vmatpush1.bf16.msra.mxu0 0
        %3278 = vmatprep.subr.bf16.mxu0 0
        %3279 = vmatpush1.bf16.msra.mxu0 0
        %3280 = vmatprep.subr.bf16.mxu0 0
        %3281 = vmatpush1.bf16.msra.mxu0 0
        %3282 = vmatprep.subr.bf16.mxu0 0
        %3283 = vmatpush1.bf16.msra.mxu0 0
        %3284 = vmatprep.subr.bf16.mxu0 0
        %3285 = vmatpush1.bf16.msra.mxu0 0
        %3286 = vmatprep.subr.bf16.mxu0 0
        %3287 = vmatpush1.bf16.msra.mxu0 0
        %3288 = vmatprep.subr.bf16.mxu0 0
        %3289 = vmatpush1.bf16.msra.mxu0 0
        %3290 = vmatprep.subr.bf16.mxu0 0
        %3291 = vmatpush1.bf16.msra.mxu0 0
        %3292 = vmatprep.subr.bf16.mxu0 0
        %3293 = vmatpush1.bf16.msra.mxu0 0
        %3294 = vmatprep.subr.bf16.mxu0 0
        %3295 = vmatpush1.bf16.msra.mxu0 0
        %3296 = vmatprep.subr.bf16.mxu0 0
        %3297 = vmatpush1.bf16.msra.mxu0 0
        %3298 = vmatprep.subr.bf16.mxu0 0
        %3299 = vmatpush1.bf16.msra.mxu0 0
        %3300 = vmatprep.mubr.bf16.mxu0 0
        %3301 = vmatmul.mubr.bf16.gmra.mrb[0].mxu0 %v2892
        %v3302 = vpop.f32.mrb[0].mxu0
        %v3303 = vadd.f32 %v2863, %v3302
        %v3304 = vpop.f32.mrb[0].mxu0
        %v3305 = vadd.f32 %v2865, %v3304
        %v3306 = vpop.f32.mrb[0].mxu0
        %v3307 = vadd.f32 %v2867, %v3306
        %v3308 = vpop.f32.mrb[0].mxu0
        %v3309 = vadd.f32 %v2869, %v3308
        %3310 = vmatprep.mubr.bf16.mxu0 0
        %3311 = vmatmul.mubr.bf16.gmra.mrb[0].mxu0 %v2895
        %v3312 = vpop.f32.mrb[0].mxu0
        %v3313 = vadd.f32 %v2873, %v3312
        %v3314 = vpop.f32.mrb[0].mxu0
        %v3315 = vadd.f32 %v2875, %v3314
        %v3316 = vpop.f32.mrb[0].mxu0
        %v3317 = vadd.f32 %v2877, %v3316
        %v3318 = vpop.f32.mrb[0].mxu0
        %v3319 = vadd.f32 %v2879, %v3318
        %3320 = vdwg.mxu0
        %s3321 = scalar_lea.vmem [#allocation5], 32
        %v3322 = vld [vmem:[%s3321] sm:$0xf]
        %v3323 = vld [vmem:[%s3321 + $0x4] sm:$0xf]
        %v3324 = vld [vmem:[%s3321 + $0x8] sm:$0xf]
        %v3325 = vld [vmem:[%s3321 + $0xc] sm:$0xf]
        %v3326 = vld [vmem:[#allocation2 + $0x20] sm:$0xff]
        %v3327 = vld [vmem:[#allocation2 + $0x28] sm:$0xff]
        %v3328 = vld [vmem:[#allocation2 + $0x30] sm:$0xff]
        %v3329 = vld [vmem:[#allocation2 + $0x38] sm:$0xff]
        %v3330 = vld [vmem:[#allocation2 + $0x40] sm:$0xff]
        %v3331 = vld [vmem:[#allocation2 + $0x48] sm:$0xff]
        %v3332 = vld [vmem:[#allocation2 + $0x50] sm:$0xff]
        %v3333 = vld [vmem:[#allocation2 + $0x58] sm:$0xff]
        %v3334 = vld [vmem:[#allocation2 + $0x60] sm:$0xff]
        %v3335 = vld [vmem:[#allocation2 + $0x68] sm:$0xff]
        %v3336 = vld [vmem:[#allocation2 + $0x70] sm:$0xff]
        %v3337 = vld [vmem:[#allocation2 + $0x78] sm:$0xff]
        %v3338 = vld [vmem:[#allocation2 + $0x80] sm:$0xff]
        %v3339 = vld [vmem:[#allocation2 + $0x88] sm:$0xff]
        %v3340 = vld [vmem:[#allocation2 + $0x90] sm:$0xff]
        %v3341 = vld [vmem:[#allocation2 + $0x98] sm:$0xff]
        %v3342 = vld [vmem:[#allocation2 + $0xc0] sm:$0xff]
        %v3343 = vld [vmem:[#allocation2 + $0xc8] sm:$0xff]
        %v3344 = vld [vmem:[#allocation2 + $0xd0] sm:$0xff]
        %v3345 = vld [vmem:[#allocation2 + $0xd8] sm:$0xff]
        %v3346 = vld [vmem:[#allocation2 + $0xe0] sm:$0xff]
        %v3347 = vld [vmem:[#allocation2 + $0xe8] sm:$0xff]
        %v3348 = vld [vmem:[#allocation2 + $0xf0] sm:$0xff]
        %v3349 = vld [vmem:[#allocation2 + $0xf8] sm:$0xff]
        %v3350 = vld [vmem:[#allocation2 + $0x100] sm:$0xff]
        %v3351 = vld [vmem:[#allocation2 + $0x108] sm:$0xff]
        %v3352 = vld [vmem:[#allocation2 + $0x110] sm:$0xff]
        %v3353 = vld [vmem:[#allocation2 + $0x118] sm:$0xff]
        %v3354 = vld [vmem:[#allocation2 + $0x120] sm:$0xff]
        %v3355 = vld [vmem:[#allocation2 + $0x128] sm:$0xff]
        %v3356 = vld [vmem:[#allocation2 + $0x130] sm:$0xff]
        %v3357 = vld [vmem:[#allocation2 + $0x138] sm:$0xff]
        %v3358 = vld [vmem:[#allocation2 + $0x160] sm:$0xff]
        %v3359 = vld [vmem:[#allocation2 + $0x168] sm:$0xff]
        %v3360 = vld [vmem:[#allocation2 + $0x170] sm:$0xff]
        %v3361 = vld [vmem:[#allocation2 + $0x178] sm:$0xff]
        %v3362 = vld [vmem:[#allocation2 + $0x180] sm:$0xff]
        %v3363 = vld [vmem:[#allocation2 + $0x188] sm:$0xff]
        %v3364 = vld [vmem:[#allocation2 + $0x190] sm:$0xff]
        %v3365 = vld [vmem:[#allocation2 + $0x198] sm:$0xff]
        %v3366 = vld [vmem:[#allocation2 + $0x1a0] sm:$0xff]
        %v3367 = vld [vmem:[#allocation2 + $0x1a8] sm:$0xff]
        %v3368 = vld [vmem:[#allocation2 + $0x1b0] sm:$0xff]
        %v3369 = vld [vmem:[#allocation2 + $0x1b8] sm:$0xff]
        %v3370 = vld [vmem:[#allocation2 + $0x1c0] sm:$0xff]
        %v3371 = vld [vmem:[#allocation2 + $0x1c8] sm:$0xff]
        %v3372 = vld [vmem:[#allocation2 + $0x1d0] sm:$0xff]
        %v3373 = vld [vmem:[#allocation2 + $0x1d8] sm:$0xff]
        %v3378 = vunpack.c.l.b16 %v3322
        %v3379 = vunpack.c.l.b16 %v3323
        %v3380 = vunpack.c.l.b16 %v3324
        %v3381 = vunpack.c.l.b16 %v3325
        %v3382 = vpack.c.b16 %v3379, %v3378
        %v3383 = vpack.c.b16 %v3381, %v3380
        %v3385 = vsel %vm2450, %v3382, 0
        %v3388 = vsel %vm2450, %v3383, 0
        %3390 = vmatprep.subr.bf16.mxu0 %v3327
        %3391 = vmatpush1.bf16.msra.mxu0 %v3326
        %3392 = vmatprep.subr.bf16.mxu0 %v3343
        %3393 = vmatpush1.bf16.msra.mxu0 %v3342
        %3394 = vmatprep.subr.bf16.mxu0 %v3359
        %3395 = vmatpush1.bf16.msra.mxu0 %v3358
        %3396 = vmatprep.subr.bf16.mxu0 0
        %3397 = vmatpush1.bf16.msra.mxu0 0
        %3398 = vmatprep.subr.bf16.mxu0 0
        %3399 = vmatpush1.bf16.msra.mxu0 0
        %3400 = vmatprep.subr.bf16.mxu0 0
        %3401 = vmatpush1.bf16.msra.mxu0 0
        %3402 = vmatprep.subr.bf16.mxu0 0
        %3403 = vmatpush1.bf16.msra.mxu0 0
        %3404 = vmatprep.subr.bf16.mxu0 0
        %3405 = vmatpush1.bf16.msra.mxu0 0
        %3406 = vmatprep.subr.bf16.mxu0 0
        %3407 = vmatpush1.bf16.msra.mxu0 0
        %3408 = vmatprep.subr.bf16.mxu0 0
        %3409 = vmatpush1.bf16.msra.mxu0 0
        %3410 = vmatprep.subr.bf16.mxu0 0
        %3411 = vmatpush1.bf16.msra.mxu0 0
        %3412 = vmatprep.subr.bf16.mxu0 0
        %3413 = vmatpush1.bf16.msra.mxu0 0
        %3414 = vmatprep.subr.bf16.mxu0 0
        %3415 = vmatpush1.bf16.msra.mxu0 0
        %3416 = vmatprep.subr.bf16.mxu0 0
        %3417 = vmatpush1.bf16.msra.mxu0 0
        %3418 = vmatprep.subr.bf16.mxu0 0
        %3419 = vmatpush1.bf16.msra.mxu0 0
        %3420 = vmatprep.subr.bf16.mxu0 0
        %3421 = vmatpush1.bf16.msra.mxu0 0
        %3422 = vmatprep.mubr.bf16.mxu0 0
        %3423 = vmatmul.mubr.bf16.gmra.mrb[0].mxu0 %v3385
        %v3424 = vpop.f32.mrb[0].mxu0
        %v3425 = vadd.f32 0.0, %v3424
        %v3426 = vpop.f32.mrb[0].mxu0
        %v3427 = vadd.f32 0.0, %v3426
        %v3428 = vpop.f32.mrb[0].mxu0
        %v3429 = vadd.f32 0.0, %v3428
        %v3430 = vpop.f32.mrb[0].mxu0
        %v3431 = vadd.f32 0.0, %v3430
        %3432 = vmatprep.mubr.bf16.mxu0 0
        %3433 = vmatmul.mubr.bf16.gmra.mrb[0].mxu0 %v3388
        %v3434 = vpop.f32.mrb[0].mxu0
        %v3435 = vadd.f32 0.0, %v3434
        %v3436 = vpop.f32.mrb[0].mxu0
        %v3437 = vadd.f32 0.0, %v3436
        %v3438 = vpop.f32.mrb[0].mxu0
        %v3439 = vadd.f32 0.0, %v3438
        %v3440 = vpop.f32.mrb[0].mxu0
        %v3441 = vadd.f32 0.0, %v3440
        %3442 = vdwg.mxu0
        %3443 = vmatprep.subr.bf16.mxu0 %v3329
        %3444 = vmatpush1.bf16.msra.mxu0 %v3328
        %3445 = vmatprep.subr.bf16.mxu0 %v3345
        %3446 = vmatpush1.bf16.msra.mxu0 %v3344
        %3447 = vmatprep.subr.bf16.mxu0 %v3361
        %3448 = vmatpush1.bf16.msra.mxu0 %v3360
        %3449 = vmatprep.subr.bf16.mxu0 0
        %3450 = vmatpush1.bf16.msra.mxu0 0
        %3451 = vmatprep.subr.bf16.mxu0 0
        %3452 = vmatpush1.bf16.msra.mxu0 0
        %3453 = vmatprep.subr.bf16.mxu0 0
        %3454 = vmatpush1.bf16.msra.mxu0 0
        %3455 = vmatprep.subr.bf16.mxu0 0
        %3456 = vmatpush1.bf16.msra.mxu0 0
        %3457 = vmatprep.subr.bf16.mxu0 0
        %3458 = vmatpush1.bf16.msra.mxu0 0
        %3459 = vmatprep.subr.bf16.mxu0 0
        %3460 = vmatpush1.bf16.msra.mxu0 0
        %3461 = vmatprep.subr.bf16.mxu0 0
        %3462 = vmatpush1.bf16.msra.mxu0 0
        %3463 = vmatprep.subr.bf16.mxu0 0
        %3464 = vmatpush1.bf16.msra.mxu0 0
        %3465 = vmatprep.subr.bf16.mxu0 0
        %3466 = vmatpush1.bf16.msra.mxu0 0
        %3467 = vmatprep.subr.bf16.mxu0 0
        %3468 = vmatpush1.bf16.msra.mxu0 0
        %3469 = vmatprep.subr.bf16.mxu0 0
        %3470 = vmatpush1.bf16.msra.mxu0 0
        %3471 = vmatprep.subr.bf16.mxu0 0
        %3472 = vmatpush1.bf16.msra.mxu0 0
        %3473 = vmatprep.subr.bf16.mxu0 0
        %3474 = vmatpush1.bf16.msra.mxu0 0
        %3475 = vmatprep.mubr.bf16.mxu0 0
        %3476 = vmatmul.mubr.bf16.gmra.mrb[0].mxu0 %v3385
        %v3477 = vpop.f32.mrb[0].mxu0
        %v3478 = vadd.f32 0.0, %v3477
        %v3479 = vpop.f32.mrb[0].mxu0
        %v3480 = vadd.f32 0.0, %v3479
        %v3481 = vpop.f32.mrb[0].mxu0
        %v3482 = vadd.f32 0.0, %v3481
        %v3483 = vpop.f32.mrb[0].mxu0
        %v3484 = vadd.f32 0.0, %v3483
        %3485 = vmatprep.mubr.bf16.mxu0 0
        %3486 = vmatmul.mubr.bf16.gmra.mrb[0].mxu0 %v3388
        %v3487 = vpop.f32.mrb[0].mxu0
        %v3488 = vadd.f32 0.0, %v3487
        %v3489 = vpop.f32.mrb[0].mxu0
        %v3490 = vadd.f32 0.0, %v3489
        %v3491 = vpop.f32.mrb[0].mxu0
        %v3492 = vadd.f32 0.0, %v3491
        %v3493 = vpop.f32.mrb[0].mxu0
        %v3494 = vadd.f32 0.0, %v3493
        %3495 = vdwg.mxu0
        %3496 = vmatprep.subr.bf16.mxu0 %v3331
        %3497 = vmatpush1.bf16.msra.mxu0 %v3330
        %3498 = vmatprep.subr.bf16.mxu0 %v3347
        %3499 = vmatpush1.bf16.msra.mxu0 %v3346
        %3500 = vmatprep.subr.bf16.mxu0 %v3363
        %3501 = vmatpush1.bf16.msra.mxu0 %v3362
        %3502 = vmatprep.subr.bf16.mxu0 0
        %3503 = vmatpush1.bf16.msra.mxu0 0
        %3504 = vmatprep.subr.bf16.mxu0 0
        %3505 = vmatpush1.bf16.msra.mxu0 0
        %3506 = vmatprep.subr.bf16.mxu0 0
        %3507 = vmatpush1.bf16.msra.mxu0 0
        %3508 = vmatprep.subr.bf16.mxu0 0
        %3509 = vmatpush1.bf16.msra.mxu0 0
        %3510 = vmatprep.subr.bf16.mxu0 0
        %3511 = vmatpush1.bf16.msra.mxu0 0
        %3512 = vmatprep.subr.bf16.mxu0 0
        %3513 = vmatpush1.bf16.msra.mxu0 0
        %3514 = vmatprep.subr.bf16.mxu0 0
        %3515 = vmatpush1.bf16.msra.mxu0 0
        %3516 = vmatprep.subr.bf16.mxu0 0
        %3517 = vmatpush1.bf16.msra.mxu0 0
        %3518 = vmatprep.subr.bf16.mxu0 0
        %3519 = vmatpush1.bf16.msra.mxu0 0
        %3520 = vmatprep.subr.bf16.mxu0 0
        %3521 = vmatpush1.bf16.msra.mxu0 0
        %3522 = vmatprep.subr.bf16.mxu0 0
        %3523 = vmatpush1.bf16.msra.mxu0 0
        %3524 = vmatprep.subr.bf16.mxu0 0
        %3525 = vmatpush1.bf16.msra.mxu0 0
        %3526 = vmatprep.subr.bf16.mxu0 0
        %3527 = vmatpush1.bf16.msra.mxu0 0
        %3528 = vmatprep.mubr.bf16.mxu0 0
        %3529 = vmatmul.mubr.bf16.gmra.mrb[0].mxu0 %v3385
        %v3530 = vpop.f32.mrb[0].mxu0
        %v3531 = vadd.f32 0.0, %v3530
        %v3532 = vpop.f32.mrb[0].mxu0
        %v3533 = vadd.f32 0.0, %v3532
        %v3534 = vpop.f32.mrb[0].mxu0
        %v3535 = vadd.f32 0.0, %v3534
        %v3536 = vpop.f32.mrb[0].mxu0
        %v3537 = vadd.f32 0.0, %v3536
        %3538 = vmatprep.mubr.bf16.mxu0 0
        %3539 = vmatmul.mubr.bf16.gmra.mrb[0].mxu0 %v3388
        %v3540 = vpop.f32.mrb[0].mxu0
        %v3541 = vadd.f32 0.0, %v3540
        %v3542 = vpop.f32.mrb[0].mxu0
        %v3543 = vadd.f32 0.0, %v3542
        %v3544 = vpop.f32.mrb[0].mxu0
        %v3545 = vadd.f32 0.0, %v3544
        %v3546 = vpop.f32.mrb[0].mxu0
        %v3547 = vadd.f32 0.0, %v3546
        %3548 = vdwg.mxu0
        %3549 = vmatprep.subr.bf16.mxu0 %v3333
        %3550 = vmatpush1.bf16.msra.mxu0 %v3332
        %3551 = vmatprep.subr.bf16.mxu0 %v3349
        %3552 = vmatpush1.bf16.msra.mxu0 %v3348
        %3553 = vmatprep.subr.bf16.mxu0 %v3365
        %3554 = vmatpush1.bf16.msra.mxu0 %v3364
        %3555 = vmatprep.subr.bf16.mxu0 0
        %3556 = vmatpush1.bf16.msra.mxu0 0
        %3557 = vmatprep.subr.bf16.mxu0 0
        %3558 = vmatpush1.bf16.msra.mxu0 0
        %3559 = vmatprep.subr.bf16.mxu0 0
        %3560 = vmatpush1.bf16.msra.mxu0 0
        %3561 = vmatprep.subr.bf16.mxu0 0
        %3562 = vmatpush1.bf16.msra.mxu0 0
        %3563 = vmatprep.subr.bf16.mxu0 0
        %3564 = vmatpush1.bf16.msra.mxu0 0
        %3565 = vmatprep.subr.bf16.mxu0 0
        %3566 = vmatpush1.bf16.msra.mxu0 0
        %3567 = vmatprep.subr.bf16.mxu0 0
        %3568 = vmatpush1.bf16.msra.mxu0 0
        %3569 = vmatprep.subr.bf16.mxu0 0
        %3570 = vmatpush1.bf16.msra.mxu0 0
        %3571 = vmatprep.subr.bf16.mxu0 0
        %3572 = vmatpush1.bf16.msra.mxu0 0
        %3573 = vmatprep.subr.bf16.mxu0 0
        %3574 = vmatpush1.bf16.msra.mxu0 0
        %3575 = vmatprep.subr.bf16.mxu0 0
        %3576 = vmatpush1.bf16.msra.mxu0 0
        %3577 = vmatprep.subr.bf16.mxu0 0
        %3578 = vmatpush1.bf16.msra.mxu0 0
        %3579 = vmatprep.subr.bf16.mxu0 0
        %3580 = vmatpush1.bf16.msra.mxu0 0
        %3581 = vmatprep.mubr.bf16.mxu0 0
        %3582 = vmatmul.mubr.bf16.gmra.mrb[0].mxu0 %v3385
        %v3583 = vpop.f32.mrb[0].mxu0
        %v3584 = vadd.f32 0.0, %v3583
        %v3585 = vpop.f32.mrb[0].mxu0
        %v3586 = vadd.f32 0.0, %v3585
        %v3587 = vpop.f32.mrb[0].mxu0
        %v3588 = vadd.f32 0.0, %v3587
        %v3589 = vpop.f32.mrb[0].mxu0
        %v3590 = vadd.f32 0.0, %v3589
        %3591 = vmatprep.mubr.bf16.mxu0 0
        %3592 = vmatmul.mubr.bf16.gmra.mrb[0].mxu0 %v3388
        %v3593 = vpop.f32.mrb[0].mxu0
        %v3594 = vadd.f32 0.0, %v3593
        %v3595 = vpop.f32.mrb[0].mxu0
        %v3596 = vadd.f32 0.0, %v3595
        %v3597 = vpop.f32.mrb[0].mxu0
        %v3598 = vadd.f32 0.0, %v3597
        %v3599 = vpop.f32.mrb[0].mxu0
        %v3600 = vadd.f32 0.0, %v3599
        %3601 = vdwg.mxu0
        %3602 = vmatprep.subr.bf16.mxu0 %v3335
        %3603 = vmatpush1.bf16.msra.mxu0 %v3334
        %3604 = vmatprep.subr.bf16.mxu0 %v3351
        %3605 = vmatpush1.bf16.msra.mxu0 %v3350
        %3606 = vmatprep.subr.bf16.mxu0 %v3367
        %3607 = vmatpush1.bf16.msra.mxu0 %v3366
        %3608 = vmatprep.subr.bf16.mxu0 0
        %3609 = vmatpush1.bf16.msra.mxu0 0
        %3610 = vmatprep.subr.bf16.mxu0 0
        %3611 = vmatpush1.bf16.msra.mxu0 0
        %3612 = vmatprep.subr.bf16.mxu0 0
        %3613 = vmatpush1.bf16.msra.mxu0 0
        %3614 = vmatprep.subr.bf16.mxu0 0
        %3615 = vmatpush1.bf16.msra.mxu0 0
        %3616 = vmatprep.subr.bf16.mxu0 0
        %3617 = vmatpush1.bf16.msra.mxu0 0
        %3618 = vmatprep.subr.bf16.mxu0 0
        %3619 = vmatpush1.bf16.msra.mxu0 0
        %3620 = vmatprep.subr.bf16.mxu0 0
        %3621 = vmatpush1.bf16.msra.mxu0 0
        %3622 = vmatprep.subr.bf16.mxu0 0
        %3623 = vmatpush1.bf16.msra.mxu0 0
        %3624 = vmatprep.subr.bf16.mxu0 0
        %3625 = vmatpush1.bf16.msra.mxu0 0
        %3626 = vmatprep.subr.bf16.mxu0 0
        %3627 = vmatpush1.bf16.msra.mxu0 0
        %3628 = vmatprep.subr.bf16.mxu0 0
        %3629 = vmatpush1.bf16.msra.mxu0 0
        %3630 = vmatprep.subr.bf16.mxu0 0
        %3631 = vmatpush1.bf16.msra.mxu0 0
        %3632 = vmatprep.subr.bf16.mxu0 0
        %3633 = vmatpush1.bf16.msra.mxu0 0
        %3634 = vmatprep.mubr.bf16.mxu0 0
        %3635 = vmatmul.mubr.bf16.gmra.mrb[0].mxu0 %v3385
        %v3636 = vpop.f32.mrb[0].mxu0
        %v3637 = vadd.f32 0.0, %v3636
        %v3638 = vpop.f32.mrb[0].mxu0
        %v3639 = vadd.f32 0.0, %v3638
        %v3640 = vpop.f32.mrb[0].mxu0
        %v3641 = vadd.f32 0.0, %v3640
        %v3642 = vpop.f32.mrb[0].mxu0
        %v3643 = vadd.f32 0.0, %v3642
        %3644 = vmatprep.mubr.bf16.mxu0 0
        %3645 = vmatmul.mubr.bf16.gmra.mrb[0].mxu0 %v3388
        %v3646 = vpop.f32.mrb[0].mxu0
        %v3647 = vadd.f32 0.0, %v3646
        %v3648 = vpop.f32.mrb[0].mxu0
        %v3649 = vadd.f32 0.0, %v3648
        %v3650 = vpop.f32.mrb[0].mxu0
        %v3651 = vadd.f32 0.0, %v3650
        %v3652 = vpop.f32.mrb[0].mxu0
        %v3653 = vadd.f32 0.0, %v3652
        %3654 = vdwg.mxu0
        %3655 = vmatprep.subr.bf16.mxu0 %v3337
        %3656 = vmatpush1.bf16.msra.mxu0 %v3336
        %3657 = vmatprep.subr.bf16.mxu0 %v3353
        %3658 = vmatpush1.bf16.msra.mxu0 %v3352
        %3659 = vmatprep.subr.bf16.mxu0 %v3369
        %3660 = vmatpush1.bf16.msra.mxu0 %v3368
        %3661 = vmatprep.subr.bf16.mxu0 0
        %3662 = vmatpush1.bf16.msra.mxu0 0
        %3663 = vmatprep.subr.bf16.mxu0 0
        %3664 = vmatpush1.bf16.msra.mxu0 0
        %3665 = vmatprep.subr.bf16.mxu0 0
        %3666 = vmatpush1.bf16.msra.mxu0 0
        %3667 = vmatprep.subr.bf16.mxu0 0
        %3668 = vmatpush1.bf16.msra.mxu0 0
        %3669 = vmatprep.subr.bf16.mxu0 0
        %3670 = vmatpush1.bf16.msra.mxu0 0
        %3671 = vmatprep.subr.bf16.mxu0 0
        %3672 = vmatpush1.bf16.msra.mxu0 0
        %3673 = vmatprep.subr.bf16.mxu0 0
        %3674 = vmatpush1.bf16.msra.mxu0 0
        %3675 = vmatprep.subr.bf16.mxu0 0
        %3676 = vmatpush1.bf16.msra.mxu0 0
        %3677 = vmatprep.subr.bf16.mxu0 0
        %3678 = vmatpush1.bf16.msra.mxu0 0
        %3679 = vmatprep.subr.bf16.mxu0 0
        %3680 = vmatpush1.bf16.msra.mxu0 0
        %3681 = vmatprep.subr.bf16.mxu0 0
        %3682 = vmatpush1.bf16.msra.mxu0 0
        %3683 = vmatprep.subr.bf16.mxu0 0
        %3684 = vmatpush1.bf16.msra.mxu0 0
        %3685 = vmatprep.subr.bf16.mxu0 0
        %3686 = vmatpush1.bf16.msra.mxu0 0
        %3687 = vmatprep.mubr.bf16.mxu0 0
        %3688 = vmatmul.mubr.bf16.gmra.mrb[0].mxu0 %v3385
        %v3689 = vpop.f32.mrb[0].mxu0
        %v3690 = vadd.f32 0.0, %v3689
        %v3691 = vpop.f32.mrb[0].mxu0
        %v3692 = vadd.f32 0.0, %v3691
        %v3693 = vpop.f32.mrb[0].mxu0
        %v3694 = vadd.f32 0.0, %v3693
        %v3695 = vpop.f32.mrb[0].mxu0
        %v3696 = vadd.f32 0.0, %v3695
        %3697 = vmatprep.mubr.bf16.mxu0 0
        %3698 = vmatmul.mubr.bf16.gmra.mrb[0].mxu0 %v3388
        %v3699 = vpop.f32.mrb[0].mxu0
        %v3700 = vadd.f32 0.0, %v3699
        %v3701 = vpop.f32.mrb[0].mxu0
        %v3702 = vadd.f32 0.0, %v3701
        %v3703 = vpop.f32.mrb[0].mxu0
        %v3704 = vadd.f32 0.0, %v3703
        %v3705 = vpop.f32.mrb[0].mxu0
        %v3706 = vadd.f32 0.0, %v3705
        %3707 = vdwg.mxu0
        %3708 = vmatprep.subr.bf16.mxu0 %v3339
        %3709 = vmatpush1.bf16.msra.mxu0 %v3338
        %3710 = vmatprep.subr.bf16.mxu0 %v3355
        %3711 = vmatpush1.bf16.msra.mxu0 %v3354
        %3712 = vmatprep.subr.bf16.mxu0 %v3371
        %3713 = vmatpush1.bf16.msra.mxu0 %v3370
        %3714 = vmatprep.subr.bf16.mxu0 0
        %3715 = vmatpush1.bf16.msra.mxu0 0
        %3716 = vmatprep.subr.bf16.mxu0 0
        %3717 = vmatpush1.bf16.msra.mxu0 0
        %3718 = vmatprep.subr.bf16.mxu0 0
        %3719 = vmatpush1.bf16.msra.mxu0 0
        %3720 = vmatprep.subr.bf16.mxu0 0
        %3721 = vmatpush1.bf16.msra.mxu0 0
        %3722 = vmatprep.subr.bf16.mxu0 0
        %3723 = vmatpush1.bf16.msra.mxu0 0
        %3724 = vmatprep.subr.bf16.mxu0 0
        %3725 = vmatpush1.bf16.msra.mxu0 0
        %3726 = vmatprep.subr.bf16.mxu0 0
        %3727 = vmatpush1.bf16.msra.mxu0 0
        %3728 = vmatprep.subr.bf16.mxu0 0
        %3729 = vmatpush1.bf16.msra.mxu0 0
        %3730 = vmatprep.subr.bf16.mxu0 0
        %3731 = vmatpush1.bf16.msra.mxu0 0
        %3732 = vmatprep.subr.bf16.mxu0 0
        %3733 = vmatpush1.bf16.msra.mxu0 0
        %3734 = vmatprep.subr.bf16.mxu0 0
        %3735 = vmatpush1.bf16.msra.mxu0 0
        %3736 = vmatprep.subr.bf16.mxu0 0
        %3737 = vmatpush1.bf16.msra.mxu0 0
        %3738 = vmatprep.subr.bf16.mxu0 0
        %3739 = vmatpush1.bf16.msra.mxu0 0
        %3740 = vmatprep.mubr.bf16.mxu0 0
        %3741 = vmatmul.mubr.bf16.gmra.mrb[0].mxu0 %v3385
        %v3742 = vpop.f32.mrb[0].mxu0
        %v3743 = vadd.f32 0.0, %v3742
        %v3744 = vpop.f32.mrb[0].mxu0
        %v3745 = vadd.f32 0.0, %v3744
        %v3746 = vpop.f32.mrb[0].mxu0
        %v3747 = vadd.f32 0.0, %v3746
        %v3748 = vpop.f32.mrb[0].mxu0
        %v3749 = vadd.f32 0.0, %v3748
        %3750 = vmatprep.mubr.bf16.mxu0 0
        %3751 = vmatmul.mubr.bf16.gmra.mrb[0].mxu0 %v3388
        %v3752 = vpop.f32.mrb[0].mxu0
        %v3753 = vadd.f32 0.0, %v3752
        %v3754 = vpop.f32.mrb[0].mxu0
        %v3755 = vadd.f32 0.0, %v3754
        %v3756 = vpop.f32.mrb[0].mxu0
        %v3757 = vadd.f32 0.0, %v3756
        %v3758 = vpop.f32.mrb[0].mxu0
        %v3759 = vadd.f32 0.0, %v3758
        %3760 = vdwg.mxu0
        %3761 = vmatprep.subr.bf16.mxu0 %v3341
        %3762 = vmatpush1.bf16.msra.mxu0 %v3340
        %3763 = vmatprep.subr.bf16.mxu0 %v3357
        %3764 = vmatpush1.bf16.msra.mxu0 %v3356
        %3765 = vmatprep.subr.bf16.mxu0 %v3373
        %3766 = vmatpush1.bf16.msra.mxu0 %v3372
        %3767 = vmatprep.subr.bf16.mxu0 0
        %3768 = vmatpush1.bf16.msra.mxu0 0
        %3769 = vmatprep.subr.bf16.mxu0 0
        %3770 = vmatpush1.bf16.msra.mxu0 0
        %3771 = vmatprep.subr.bf16.mxu0 0
        %3772 = vmatpush1.bf16.msra.mxu0 0
        %3773 = vmatprep.subr.bf16.mxu0 0
        %3774 = vmatpush1.bf16.msra.mxu0 0
        %3775 = vmatprep.subr.bf16.mxu0 0
        %3776 = vmatpush1.bf16.msra.mxu0 0
        %3777 = vmatprep.subr.bf16.mxu0 0
        %3778 = vmatpush1.bf16.msra.mxu0 0
        %3779 = vmatprep.subr.bf16.mxu0 0
        %3780 = vmatpush1.bf16.msra.mxu0 0
        %3781 = vmatprep.subr.bf16.mxu0 0
        %3782 = vmatpush1.bf16.msra.mxu0 0
        %3783 = vmatprep.subr.bf16.mxu0 0
        %3784 = vmatpush1.bf16.msra.mxu0 0
        %3785 = vmatprep.subr.bf16.mxu0 0
        %3786 = vmatpush1.bf16.msra.mxu0 0
        %3787 = vmatprep.subr.bf16.mxu0 0
        %3788 = vmatpush1.bf16.msra.mxu0 0
        %3789 = vmatprep.subr.bf16.mxu0 0
        %3790 = vmatpush1.bf16.msra.mxu0 0
        %3791 = vmatprep.subr.bf16.mxu0 0
        %3792 = vmatpush1.bf16.msra.mxu0 0
        %3793 = vmatprep.mubr.bf16.mxu0 0
        %3794 = vmatmul.mubr.bf16.gmra.mrb[0].mxu0 %v3385
        %v3795 = vpop.f32.mrb[0].mxu0
        %v3796 = vadd.f32 0.0, %v3795
        %v3797 = vpop.f32.mrb[0].mxu0
        %v3798 = vadd.f32 0.0, %v3797
        %v3799 = vpop.f32.mrb[0].mxu0
        %v3800 = vadd.f32 0.0, %v3799
        %v3801 = vpop.f32.mrb[0].mxu0
        %v3802 = vadd.f32 0.0, %v3801
        %3803 = vmatprep.mubr.bf16.mxu0 0
        %3804 = vmatmul.mubr.bf16.gmra.mrb[0].mxu0 %v3388
        %v3805 = vpop.f32.mrb[0].mxu0
        %v3806 = vadd.f32 0.0, %v3805
        %v3807 = vpop.f32.mrb[0].mxu0
        %v3808 = vadd.f32 0.0, %v3807
        %v3809 = vpop.f32.mrb[0].mxu0
        %v3810 = vadd.f32 0.0, %v3809
        %v3811 = vpop.f32.mrb[0].mxu0
        %v3812 = vadd.f32 0.0, %v3811
        %3813 = vdwg.mxu0
        %v3814 = vadd.f32 %v2932, %v3425
        %v3815 = vadd.f32 %v2934, %v3427
        %v3816 = vadd.f32 %v2985, %v3478
        %v3817 = vadd.f32 %v2987, %v3480
        %v3818 = vadd.f32 %v3038, %v3531
        %v3819 = vadd.f32 %v3040, %v3533
        %v3820 = vadd.f32 %v3091, %v3584
        %v3821 = vadd.f32 %v3093, %v3586
        %v3822 = vadd.f32 %v3144, %v3637
        %v3823 = vadd.f32 %v3146, %v3639
        %v3824 = vadd.f32 %v3197, %v3690
        %v3825 = vadd.f32 %v3199, %v3692
        %v3826 = vadd.f32 %v3250, %v3743
        %v3827 = vadd.f32 %v3252, %v3745
        %v3828 = vadd.f32 %v3303, %v3796
        %v3829 = vadd.f32 %v3305, %v3798
        %v3830 = vadd.f32 %v2936, %v3429
        %v3831 = vadd.f32 %v2938, %v3431
        %v3832 = vadd.f32 %v2989, %v3482
        %v3833 = vadd.f32 %v2991, %v3484
        %v3834 = vadd.f32 %v3042, %v3535
        %v3835 = vadd.f32 %v3044, %v3537
        %v3836 = vadd.f32 %v3095, %v3588
        %v3837 = vadd.f32 %v3097, %v3590
        %v3838 = vadd.f32 %v3148, %v3641
        %v3839 = vadd.f32 %v3150, %v3643
        %v3840 = vadd.f32 %v3201, %v3694
        %v3841 = vadd.f32 %v3203, %v3696
        %v3842 = vadd.f32 %v3254, %v3747
        %v3843 = vadd.f32 %v3256, %v3749
        %v3844 = vadd.f32 %v3307, %v3800
        %v3845 = vadd.f32 %v3309, %v3802
        %v3846 = vadd.f32 %v2942, %v3435
        %v3847 = vadd.f32 %v2944, %v3437
        %v3848 = vadd.f32 %v2995, %v3488
        %v3849 = vadd.f32 %v2997, %v3490
        %v3850 = vadd.f32 %v3048, %v3541
        %v3851 = vadd.f32 %v3050, %v3543
        %v3852 = vadd.f32 %v3101, %v3594
        %v3853 = vadd.f32 %v3103, %v3596
        %v3854 = vadd.f32 %v3154, %v3647
        %v3855 = vadd.f32 %v3156, %v3649
        %v3856 = vadd.f32 %v3207, %v3700
        %v3857 = vadd.f32 %v3209, %v3702
        %v3858 = vadd.f32 %v3260, %v3753
        %v3859 = vadd.f32 %v3262, %v3755
        %v3860 = vadd.f32 %v3313, %v3806
        %v3861 = vadd.f32 %v3315, %v3808
        %v3862 = vadd.f32 %v2946, %v3439
        %v3863 = vadd.f32 %v2948, %v3441
        %v3864 = vadd.f32 %v2999, %v3492
        %v3865 = vadd.f32 %v3001, %v3494
        %v3866 = vadd.f32 %v3052, %v3545
        %v3867 = vadd.f32 %v3054, %v3547
        %v3868 = vadd.f32 %v3105, %v3598
        %v3869 = vadd.f32 %v3107, %v3600
        %v3870 = vadd.f32 %v3158, %v3651
        %v3871 = vadd.f32 %v3160, %v3653
        %v3872 = vadd.f32 %v3211, %v3704
        %v3873 = vadd.f32 %v3213, %v3706
        %v3874 = vadd.f32 %v3264, %v3757
        %v3875 = vadd.f32 %v3266, %v3759
        %v3876 = vadd.f32 %v3317, %v3810
        %v3877 = vadd.f32 %v3319, %v3812
        %v3878 = vld [vmem:[%s4] sm:$0xff]
        %v3879 = vld [vmem:[%s4 + $0x8] sm:$0xff]
        %v3880 = vld [vmem:[%s4 + $0x10] sm:$0xff]
        %v3881 = vld [vmem:[%s4 + $0x18] sm:$0xff]
        %3883 = vset.pattern.permute.xlu0 0
        %3884 = vperm.xlu0 %3883, %v3878
        %v3885 = vpop.permute.xlu0 %3884
        %3888 = vset.pattern.permute.xlu0 0
        %3889 = vperm.xlu0 %3888, %v3879
        %v3890 = vpop.permute.xlu0 %3889
        %3893 = vset.pattern.permute.xlu0 0
        %3894 = vperm.xlu0 %3893, %v3880
        %v3895 = vpop.permute.xlu0 %3894
        %3898 = vset.pattern.permute.xlu0 0
        %3899 = vperm.xlu0 %3898, %v3881
        %v3900 = vpop.permute.xlu0 %3899
        %v3902 = vadd.f32 %v3814, %v3885
        %v3903 = vadd.f32 %v3815, %v3885
        %v3904 = vadd.f32 %v3816, %v3885
        %v3905 = vadd.f32 %v3817, %v3885
        %v3906 = vadd.f32 %v3818, %v3885
        %v3907 = vadd.f32 %v3819, %v3885
        %v3908 = vadd.f32 %v3820, %v3885
        %v3909 = vadd.f32 %v3821, %v3885
        %v3910 = vadd.f32 %v3822, %v3885
        %v3911 = vadd.f32 %v3823, %v3885
        %v3912 = vadd.f32 %v3824, %v3885
        %v3913 = vadd.f32 %v3825, %v3885
        %v3914 = vadd.f32 %v3826, %v3885
        %v3915 = vadd.f32 %v3827, %v3885
        %v3916 = vadd.f32 %v3828, %v3885
        %v3917 = vadd.f32 %v3829, %v3885
        %v3918 = vadd.f32 %v3830, %v3890
        %v3919 = vadd.f32 %v3831, %v3890
        %v3920 = vadd.f32 %v3832, %v3890
        %v3921 = vadd.f32 %v3833, %v3890
        %v3922 = vadd.f32 %v3834, %v3890
        %v3923 = vadd.f32 %v3835, %v3890
        %v3924 = vadd.f32 %v3836, %v3890
        %v3925 = vadd.f32 %v3837, %v3890
        %v3926 = vadd.f32 %v3838, %v3890
        %v3927 = vadd.f32 %v3839, %v3890
        %v3928 = vadd.f32 %v3840, %v3890
        %v3929 = vadd.f32 %v3841, %v3890
        %v3930 = vadd.f32 %v3842, %v3890
        %v3931 = vadd.f32 %v3843, %v3890
        %v3932 = vadd.f32 %v3844, %v3890
        %v3933 = vadd.f32 %v3845, %v3890
        %v3934 = vadd.f32 %v3846, %v3895
        %v3935 = vadd.f32 %v3847, %v3895
        %v3936 = vadd.f32 %v3848, %v3895
        %v3937 = vadd.f32 %v3849, %v3895
        %v3938 = vadd.f32 %v3850, %v3895
        %v3939 = vadd.f32 %v3851, %v3895
        %v3940 = vadd.f32 %v3852, %v3895
        %v3941 = vadd.f32 %v3853, %v3895
        %v3942 = vadd.f32 %v3854, %v3895
        %v3943 = vadd.f32 %v3855, %v3895
        %v3944 = vadd.f32 %v3856, %v3895
        %v3945 = vadd.f32 %v3857, %v3895
        %v3946 = vadd.f32 %v3858, %v3895
        %v3947 = vadd.f32 %v3859, %v3895
        %v3948 = vadd.f32 %v3860, %v3895
        %v3949 = vadd.f32 %v3861, %v3895
        %v3950 = vadd.f32 %v3862, %v3900
        %v3951 = vadd.f32 %v3863, %v3900
        %v3952 = vadd.f32 %v3864, %v3900
        %v3953 = vadd.f32 %v3865, %v3900
        %v3954 = vadd.f32 %v3866, %v3900
        %v3955 = vadd.f32 %v3867, %v3900
        %v3956 = vadd.f32 %v3868, %v3900
        %v3957 = vadd.f32 %v3869, %v3900
        %v3958 = vadd.f32 %v3870, %v3900
        %v3959 = vadd.f32 %v3871, %v3900
        %v3960 = vadd.f32 %v3872, %v3900
        %v3961 = vadd.f32 %v3873, %v3900
        %v3962 = vadd.f32 %v3874, %v3900
        %v3963 = vadd.f32 %v3875, %v3900
        %v3964 = vadd.f32 %v3876, %v3900
        %v3965 = vadd.f32 %v3877, %v3900
        %v3966 = vmul.f32 %v3902, 0.01
        %v3967 = vmul.f32 %v3903, 0.01
        %v3968 = vmul.f32 %v3904, 0.01
        %v3969 = vmul.f32 %v3905, 0.01
        %v3970 = vmul.f32 %v3906, 0.01
        %v3971 = vmul.f32 %v3907, 0.01
        %v3972 = vmul.f32 %v3908, 0.01
        %v3973 = vmul.f32 %v3909, 0.01
        %v3974 = vmul.f32 %v3910, 0.01
        %v3975 = vmul.f32 %v3911, 0.01
        %v3976 = vmul.f32 %v3912, 0.01
        %v3977 = vmul.f32 %v3913, 0.01
        %v3978 = vmul.f32 %v3914, 0.01
        %v3979 = vmul.f32 %v3915, 0.01
        %v3980 = vmul.f32 %v3916, 0.01
        %v3981 = vmul.f32 %v3917, 0.01
        %v3982 = vmul.f32 %v3918, 0.01
        %v3983 = vmul.f32 %v3919, 0.01
        %v3984 = vmul.f32 %v3920, 0.01
        %v3985 = vmul.f32 %v3921, 0.01
        %v3986 = vmul.f32 %v3922, 0.01
        %v3987 = vmul.f32 %v3923, 0.01
        %v3988 = vmul.f32 %v3924, 0.01
        %v3989 = vmul.f32 %v3925, 0.01
        %v3990 = vmul.f32 %v3926, 0.01
        %v3991 = vmul.f32 %v3927, 0.01
        %v3992 = vmul.f32 %v3928, 0.01
        %v3993 = vmul.f32 %v3929, 0.01
        %v3994 = vmul.f32 %v3930, 0.01
        %v3995 = vmul.f32 %v3931, 0.01
        %v3996 = vmul.f32 %v3932, 0.01
        %v3997 = vmul.f32 %v3933, 0.01
        %v3998 = vmul.f32 %v3934, 0.01
        %v3999 = vmul.f32 %v3935, 0.01
        %v4000 = vmul.f32 %v3936, 0.01
        %v4001 = vmul.f32 %v3937, 0.01
        %v4002 = vmul.f32 %v3938, 0.01
        %v4003 = vmul.f32 %v3939, 0.01
        %v4004 = vmul.f32 %v3940, 0.01
        %v4005 = vmul.f32 %v3941, 0.01
        %v4006 = vmul.f32 %v3942, 0.01
        %v4007 = vmul.f32 %v3943, 0.01
        %v4008 = vmul.f32 %v3944, 0.01
        %v4009 = vmul.f32 %v3945, 0.01
        %v4010 = vmul.f32 %v3946, 0.01
        %v4011 = vmul.f32 %v3947, 0.01
        %v4012 = vmul.f32 %v3948, 0.01
        %v4013 = vmul.f32 %v3949, 0.01
        %v4014 = vmul.f32 %v3950, 0.01
        %v4015 = vmul.f32 %v3951, 0.01
        %v4016 = vmul.f32 %v3952, 0.01
        %v4017 = vmul.f32 %v3953, 0.01
        %v4018 = vmul.f32 %v3954, 0.01
        %v4019 = vmul.f32 %v3955, 0.01
        %v4020 = vmul.f32 %v3956, 0.01
        %v4021 = vmul.f32 %v3957, 0.01
        %v4022 = vmul.f32 %v3958, 0.01
        %v4023 = vmul.f32 %v3959, 0.01
        %v4024 = vmul.f32 %v3960, 0.01
        %v4025 = vmul.f32 %v3961, 0.01
        %v4026 = vmul.f32 %v3962, 0.01
        %v4027 = vmul.f32 %v3963, 0.01
        %v4028 = vmul.f32 %v3964, 0.01
        %v4029 = vmul.f32 %v3965, 0.01
        %v4030 = vmax.f32 %v3902, %v3966
        %v4031 = vmax.f32 %v3903, %v3967
        %v4032 = vmax.f32 %v3904, %v3968
        %v4033 = vmax.f32 %v3905, %v3969
        %v4034 = vmax.f32 %v3906, %v3970
        %v4035 = vmax.f32 %v3907, %v3971
        %v4036 = vmax.f32 %v3908, %v3972
        %v4037 = vmax.f32 %v3909, %v3973
        %v4038 = vmax.f32 %v3910, %v3974
        %v4039 = vmax.f32 %v3911, %v3975
        %v4040 = vmax.f32 %v3912, %v3976
        %v4041 = vmax.f32 %v3913, %v3977
        %v4042 = vmax.f32 %v3914, %v3978
        %v4043 = vmax.f32 %v3915, %v3979
        %v4044 = vmax.f32 %v3916, %v3980
        %v4045 = vmax.f32 %v3917, %v3981
        %v4046 = vmax.f32 %v3918, %v3982
        %v4047 = vmax.f32 %v3919, %v3983
        %v4048 = vmax.f32 %v3920, %v3984
        %v4049 = vmax.f32 %v3921, %v3985
        %v4050 = vmax.f32 %v3922, %v3986
        %v4051 = vmax.f32 %v3923, %v3987
        %v4052 = vmax.f32 %v3924, %v3988
        %v4053 = vmax.f32 %v3925, %v3989
        %v4054 = vmax.f32 %v3926, %v3990
        %v4055 = vmax.f32 %v3927, %v3991
        %v4056 = vmax.f32 %v3928, %v3992
        %v4057 = vmax.f32 %v3929, %v3993
        %v4058 = vmax.f32 %v3930, %v3994
        %v4059 = vmax.f32 %v3931, %v3995
        %v4060 = vmax.f32 %v3932, %v3996
        %v4061 = vmax.f32 %v3933, %v3997
        %v4062 = vmax.f32 %v3934, %v3998
        %v4063 = vmax.f32 %v3935, %v3999
        %v4064 = vmax.f32 %v3936, %v4000
        %v4065 = vmax.f32 %v3937, %v4001
        %v4066 = vmax.f32 %v3938, %v4002
        %v4067 = vmax.f32 %v3939, %v4003
        %v4068 = vmax.f32 %v3940, %v4004
        %v4069 = vmax.f32 %v3941, %v4005
        %v4070 = vmax.f32 %v3942, %v4006
        %v4071 = vmax.f32 %v3943, %v4007
        %v4072 = vmax.f32 %v3944, %v4008
        %v4073 = vmax.f32 %v3945, %v4009
        %v4074 = vmax.f32 %v3946, %v4010
        %v4075 = vmax.f32 %v3947, %v4011
        %v4076 = vmax.f32 %v3948, %v4012
        %v4077 = vmax.f32 %v3949, %v4013
        %v4078 = vmax.f32 %v3950, %v4014
        %v4079 = vmax.f32 %v3951, %v4015
        %v4080 = vmax.f32 %v3952, %v4016
        %v4081 = vmax.f32 %v3953, %v4017
        %v4082 = vmax.f32 %v3954, %v4018
        %v4083 = vmax.f32 %v3955, %v4019
        %v4084 = vmax.f32 %v3956, %v4020
        %v4085 = vmax.f32 %v3957, %v4021
        %v4086 = vmax.f32 %v3958, %v4022
        %v4087 = vmax.f32 %v3959, %v4023
        %v4088 = vmax.f32 %v3960, %v4024
        %v4089 = vmax.f32 %v3961, %v4025
        %v4090 = vmax.f32 %v3962, %v4026
        %v4091 = vmax.f32 %v3963, %v4027
        %v4092 = vmax.f32 %v3964, %v4028
        %v4093 = vmax.f32 %v3965, %v4029
        %v4094 = vld [vmem:[#allocation7] sm:$0xf]
        %v4095 = vld [vmem:[#allocation7 + $0x4] sm:$0xf]
        %v4096 = vld [vmem:[#allocation7 + $0x8] sm:$0xf]
        %v4097 = vld [vmem:[#allocation7 + $0xc] sm:$0xf]
        %v4098 = vpack.c.bf16 %v4046, %v4030
        %v4099 = vpack.c.bf16 %v4047, %v4031
        %v4100 = vpack.c.bf16 %v4048, %v4032
        %v4101 = vpack.c.bf16 %v4049, %v4033
        %v4102 = vpack.c.bf16 %v4050, %v4034
        %v4103 = vpack.c.bf16 %v4051, %v4035
        %v4104 = vpack.c.bf16 %v4052, %v4036
        %v4105 = vpack.c.bf16 %v4053, %v4037
        %v4106 = vpack.c.bf16 %v4054, %v4038
        %v4107 = vpack.c.bf16 %v4055, %v4039
        %v4108 = vpack.c.bf16 %v4056, %v4040
        %v4109 = vpack.c.bf16 %v4057, %v4041
        %v4110 = vpack.c.bf16 %v4058, %v4042
        %v4111 = vpack.c.bf16 %v4059, %v4043
        %v4112 = vpack.c.bf16 %v4060, %v4044
        %v4113 = vpack.c.bf16 %v4061, %v4045
        %v4114 = vpack.c.bf16 %v4078, %v4062
        %v4115 = vpack.c.bf16 %v4079, %v4063
        %v4116 = vpack.c.bf16 %v4080, %v4064
        %v4117 = vpack.c.bf16 %v4081, %v4065
        %v4118 = vpack.c.bf16 %v4082, %v4066
        %v4119 = vpack.c.bf16 %v4083, %v4067
        %v4120 = vpack.c.bf16 %v4084, %v4068
        %v4121 = vpack.c.bf16 %v4085, %v4069
        %v4122 = vpack.c.bf16 %v4086, %v4070
        %v4123 = vpack.c.bf16 %v4087, %v4071
        %v4124 = vpack.c.bf16 %v4088, %v4072
        %v4125 = vpack.c.bf16 %v4089, %v4073
        %v4126 = vpack.c.bf16 %v4090, %v4074
        %v4127 = vpack.c.bf16 %v4091, %v4075
        %v4128 = vpack.c.bf16 %v4092, %v4076
        %v4129 = vpack.c.bf16 %v4093, %v4077
        %v4130 = vld [vmem:[%s6] sm:$0xff]
        %v4131 = vld [vmem:[%s6 + $0x8] sm:$0xff]
        %v4132 = vld [vmem:[%s6 + $0x10] sm:$0xff]
        %v4133 = vld [vmem:[%s6 + $0x18] sm:$0xff]
        %4135 = vset.pattern.permute.xlu0 0
        %4136 = vperm.xlu0 %4135, %v4130
        %v4137 = vpop.permute.xlu0 %4136
        %4140 = vset.pattern.permute.xlu0 0
        %4141 = vperm.xlu0 %4140, %v4131
        %v4142 = vpop.permute.xlu0 %4141
        %4145 = vset.pattern.permute.xlu0 0
        %4146 = vperm.xlu0 %4145, %v4132
        %v4147 = vpop.permute.xlu0 %4146
        %4150 = vset.pattern.permute.xlu0 0
        %4151 = vperm.xlu0 %4150, %v4133
        %v4152 = vpop.permute.xlu0 %4151
        %v4158 = vunpack.c.l.b16 %v4094
        %v4159 = vunpack.c.l.b16 %v4095
        %v4160 = vunpack.c.l.b16 %v4096
        %v4161 = vunpack.c.l.b16 %v4097
        %v4162 = vpack.c.b16 %v4159, %v4158
        %v4163 = vpack.c.b16 %v4161, %v4160
        %vm4164 = vcmask 261120
        %v4166 = vsel %vm4164, %v4162, 0
        %v4169 = vsel %vm4164, %v4163, 0
        %4171 = vmatprep.subr.bf16.mxu0 %v4099
        %4172 = vmatpush1.bf16.msra.mxu0 %v4098
        %4173 = vmatprep.subr.bf16.mxu0 %v4115
        %4174 = vmatpush1.bf16.msra.mxu0 %v4114
        %4175 = vmatprep.subr.bf16.mxu0 0
        %4176 = vmatpush1.bf16.msra.mxu0 0
        %4177 = vmatprep.subr.bf16.mxu0 0
        %4178 = vmatpush1.bf16.msra.mxu0 0
        %4179 = vmatprep.subr.bf16.mxu0 0
        %4180 = vmatpush1.bf16.msra.mxu0 0
        %4181 = vmatprep.subr.bf16.mxu0 0
        %4182 = vmatpush1.bf16.msra.mxu0 0
        %4183 = vmatprep.subr.bf16.mxu0 0
        %4184 = vmatpush1.bf16.msra.mxu0 0
        %4185 = vmatprep.subr.bf16.mxu0 0
        %4186 = vmatpush1.bf16.msra.mxu0 0
        %4187 = vmatprep.subr.bf16.mxu0 0
        %4188 = vmatpush1.bf16.msra.mxu0 0
        %4189 = vmatprep.subr.bf16.mxu0 0
        %4190 = vmatpush1.bf16.msra.mxu0 0
        %4191 = vmatprep.subr.bf16.mxu0 0
        %4192 = vmatpush1.bf16.msra.mxu0 0
        %4193 = vmatprep.subr.bf16.mxu0 0
        %4194 = vmatpush1.bf16.msra.mxu0 0
        %4195 = vmatprep.subr.bf16.mxu0 0
        %4196 = vmatpush1.bf16.msra.mxu0 0
        %4197 = vmatprep.subr.bf16.mxu0 0
        %4198 = vmatpush1.bf16.msra.mxu0 0
        %4199 = vmatprep.subr.bf16.mxu0 0
        %4200 = vmatpush1.bf16.msra.mxu0 0
        %4201 = vmatprep.subr.bf16.mxu0 0
        %4202 = vmatpush1.bf16.msra.mxu0 0
        %4203 = vmatprep.mubr.bf16.mxu0 0
        %4204 = vmatmul.mubr.bf16.gmra.mrb[0].mxu0 %v4166
        %v4205 = vpop.f32.mrb[0].mxu0
        %v4206 = vadd.f32 %v4137, %v4205
        %v4207 = vpop.f32.mrb[0].mxu0
        %v4208 = vadd.f32 %v4137, %v4207
        %v4209 = vpop.f32.mrb[0].mxu0
        %v4210 = vadd.f32 %v4142, %v4209
        %v4211 = vpop.f32.mrb[0].mxu0
        %v4212 = vadd.f32 %v4142, %v4211
        %4213 = vmatprep.mubr.bf16.mxu0 0
        %4214 = vmatmul.mubr.bf16.gmra.mrb[0].mxu0 %v4169
        %v4215 = vpop.f32.mrb[0].mxu0
        %v4216 = vadd.f32 %v4147, %v4215
        %v4217 = vpop.f32.mrb[0].mxu0
        %v4218 = vadd.f32 %v4147, %v4217
        %v4219 = vpop.f32.mrb[0].mxu0
        %v4220 = vadd.f32 %v4152, %v4219
        %v4221 = vpop.f32.mrb[0].mxu0
        %v4222 = vadd.f32 %v4152, %v4221
        %4223 = vdwg.mxu0
        %4224 = vmatprep.subr.bf16.mxu0 %v4101
        %4225 = vmatpush1.bf16.msra.mxu0 %v4100
        %4226 = vmatprep.subr.bf16.mxu0 %v4117
        %4227 = vmatpush1.bf16.msra.mxu0 %v4116
        %4228 = vmatprep.subr.bf16.mxu0 0
        %4229 = vmatpush1.bf16.msra.mxu0 0
        %4230 = vmatprep.subr.bf16.mxu0 0
        %4231 = vmatpush1.bf16.msra.mxu0 0
        %4232 = vmatprep.subr.bf16.mxu0 0
        %4233 = vmatpush1.bf16.msra.mxu0 0
        %4234 = vmatprep.subr.bf16.mxu0 0
        %4235 = vmatpush1.bf16.msra.mxu0 0
        %4236 = vmatprep.subr.bf16.mxu0 0
        %4237 = vmatpush1.bf16.msra.mxu0 0
        %4238 = vmatprep.subr.bf16.mxu0 0
        %4239 = vmatpush1.bf16.msra.mxu0 0
        %4240 = vmatprep.subr.bf16.mxu0 0
        %4241 = vmatpush1.bf16.msra.mxu0 0
        %4242 = vmatprep.subr.bf16.mxu0 0
        %4243 = vmatpush1.bf16.msra.mxu0 0
        %4244 = vmatprep.subr.bf16.mxu0 0
        %4245 = vmatpush1.bf16.msra.mxu0 0
        %4246 = vmatprep.subr.bf16.mxu0 0
        %4247 = vmatpush1.bf16.msra.mxu0 0
        %4248 = vmatprep.subr.bf16.mxu0 0
        %4249 = vmatpush1.bf16.msra.mxu0 0
        %4250 = vmatprep.subr.bf16.mxu0 0
        %4251 = vmatpush1.bf16.msra.mxu0 0
        %4252 = vmatprep.subr.bf16.mxu0 0
        %4253 = vmatpush1.bf16.msra.mxu0 0
        %4254 = vmatprep.subr.bf16.mxu0 0
        %4255 = vmatpush1.bf16.msra.mxu0 0
        %4256 = vmatprep.mubr.bf16.mxu0 0
        %4257 = vmatmul.mubr.bf16.gmra.mrb[0].mxu0 %v4166
        %v4258 = vpop.f32.mrb[0].mxu0
        %v4259 = vadd.f32 %v4137, %v4258
        %v4260 = vpop.f32.mrb[0].mxu0
        %v4261 = vadd.f32 %v4137, %v4260
        %v4262 = vpop.f32.mrb[0].mxu0
        %v4263 = vadd.f32 %v4142, %v4262
        %v4264 = vpop.f32.mrb[0].mxu0
        %v4265 = vadd.f32 %v4142, %v4264
        %4266 = vmatprep.mubr.bf16.mxu0 0
        %4267 = vmatmul.mubr.bf16.gmra.mrb[0].mxu0 %v4169
        %v4268 = vpop.f32.mrb[0].mxu0
        %v4269 = vadd.f32 %v4147, %v4268
        %v4270 = vpop.f32.mrb[0].mxu0
        %v4271 = vadd.f32 %v4147, %v4270
        %v4272 = vpop.f32.mrb[0].mxu0
        %v4273 = vadd.f32 %v4152, %v4272
        %v4274 = vpop.f32.mrb[0].mxu0
        %v4275 = vadd.f32 %v4152, %v4274
        %4276 = vdwg.mxu0
        %4277 = vmatprep.subr.bf16.mxu0 %v4103
        %4278 = vmatpush1.bf16.msra.mxu0 %v4102
        %4279 = vmatprep.subr.bf16.mxu0 %v4119
        %4280 = vmatpush1.bf16.msra.mxu0 %v4118
        %4281 = vmatprep.subr.bf16.mxu0 0
        %4282 = vmatpush1.bf16.msra.mxu0 0
        %4283 = vmatprep.subr.bf16.mxu0 0
        %4284 = vmatpush1.bf16.msra.mxu0 0
        %4285 = vmatprep.subr.bf16.mxu0 0
        %4286 = vmatpush1.bf16.msra.mxu0 0
        %4287 = vmatprep.subr.bf16.mxu0 0
        %4288 = vmatpush1.bf16.msra.mxu0 0
        %4289 = vmatprep.subr.bf16.mxu0 0
        %4290 = vmatpush1.bf16.msra.mxu0 0
        %4291 = vmatprep.subr.bf16.mxu0 0
        %4292 = vmatpush1.bf16.msra.mxu0 0
        %4293 = vmatprep.subr.bf16.mxu0 0
        %4294 = vmatpush1.bf16.msra.mxu0 0
        %4295 = vmatprep.subr.bf16.mxu0 0
        %4296 = vmatpush1.bf16.msra.mxu0 0
        %4297 = vmatprep.subr.bf16.mxu0 0
        %4298 = vmatpush1.bf16.msra.mxu0 0
        %4299 = vmatprep.subr.bf16.mxu0 0
        %4300 = vmatpush1.bf16.msra.mxu0 0
        %4301 = vmatprep.subr.bf16.mxu0 0
        %4302 = vmatpush1.bf16.msra.mxu0 0
        %4303 = vmatprep.subr.bf16.mxu0 0
        %4304 = vmatpush1.bf16.msra.mxu0 0
        %4305 = vmatprep.subr.bf16.mxu0 0
        %4306 = vmatpush1.bf16.msra.mxu0 0
        %4307 = vmatprep.subr.bf16.mxu0 0
        %4308 = vmatpush1.bf16.msra.mxu0 0
        %4309 = vmatprep.mubr.bf16.mxu0 0
        %4310 = vmatmul.mubr.bf16.gmra.mrb[0].mxu0 %v4166
        %v4311 = vpop.f32.mrb[0].mxu0
        %v4312 = vadd.f32 %v4137, %v4311
        %v4313 = vpop.f32.mrb[0].mxu0
        %v4314 = vadd.f32 %v4137, %v4313
        %v4315 = vpop.f32.mrb[0].mxu0
        %v4316 = vadd.f32 %v4142, %v4315
        %v4317 = vpop.f32.mrb[0].mxu0
        %v4318 = vadd.f32 %v4142, %v4317
        %4319 = vmatprep.mubr.bf16.mxu0 0
        %4320 = vmatmul.mubr.bf16.gmra.mrb[0].mxu0 %v4169
        %v4321 = vpop.f32.mrb[0].mxu0
        %v4322 = vadd.f32 %v4147, %v4321
        %v4323 = vpop.f32.mrb[0].mxu0
        %v4324 = vadd.f32 %v4147, %v4323
        %v4325 = vpop.f32.mrb[0].mxu0
        %v4326 = vadd.f32 %v4152, %v4325
        %v4327 = vpop.f32.mrb[0].mxu0
        %v4328 = vadd.f32 %v4152, %v4327
        %4329 = vdwg.mxu0
        %4330 = vmatprep.subr.bf16.mxu0 %v4105
        %4331 = vmatpush1.bf16.msra.mxu0 %v4104
        %4332 = vmatprep.subr.bf16.mxu0 %v4121
        %4333 = vmatpush1.bf16.msra.mxu0 %v4120
        %4334 = vmatprep.subr.bf16.mxu0 0
        %4335 = vmatpush1.bf16.msra.mxu0 0
        %4336 = vmatprep.subr.bf16.mxu0 0
        %4337 = vmatpush1.bf16.msra.mxu0 0
        %4338 = vmatprep.subr.bf16.mxu0 0
        %4339 = vmatpush1.bf16.msra.mxu0 0
        %4340 = vmatprep.subr.bf16.mxu0 0
        %4341 = vmatpush1.bf16.msra.mxu0 0
        %4342 = vmatprep.subr.bf16.mxu0 0
        %4343 = vmatpush1.bf16.msra.mxu0 0
        %4344 = vmatprep.subr.bf16.mxu0 0
        %4345 = vmatpush1.bf16.msra.mxu0 0
        %4346 = vmatprep.subr.bf16.mxu0 0
        %4347 = vmatpush1.bf16.msra.mxu0 0
        %4348 = vmatprep.subr.bf16.mxu0 0
        %4349 = vmatpush1.bf16.msra.mxu0 0
        %4350 = vmatprep.subr.bf16.mxu0 0
        %4351 = vmatpush1.bf16.msra.mxu0 0
        %4352 = vmatprep.subr.bf16.mxu0 0
        %4353 = vmatpush1.bf16.msra.mxu0 0
        %4354 = vmatprep.subr.bf16.mxu0 0
        %4355 = vmatpush1.bf16.msra.mxu0 0
        %4356 = vmatprep.subr.bf16.mxu0 0
        %4357 = vmatpush1.bf16.msra.mxu0 0
        %4358 = vmatprep.subr.bf16.mxu0 0
        %4359 = vmatpush1.bf16.msra.mxu0 0
        %4360 = vmatprep.subr.bf16.mxu0 0
        %4361 = vmatpush1.bf16.msra.mxu0 0
        %4362 = vmatprep.mubr.bf16.mxu0 0
        %4363 = vmatmul.mubr.bf16.gmra.mrb[0].mxu0 %v4166
        %v4364 = vpop.f32.mrb[0].mxu0
        %v4365 = vadd.f32 %v4137, %v4364
        %v4366 = vpop.f32.mrb[0].mxu0
        %v4367 = vadd.f32 %v4137, %v4366
        %v4368 = vpop.f32.mrb[0].mxu0
        %v4369 = vadd.f32 %v4142, %v4368
        %v4370 = vpop.f32.mrb[0].mxu0
        %v4371 = vadd.f32 %v4142, %v4370
        %4372 = vmatprep.mubr.bf16.mxu0 0
        %4373 = vmatmul.mubr.bf16.gmra.mrb[0].mxu0 %v4169
        %v4374 = vpop.f32.mrb[0].mxu0
        %v4375 = vadd.f32 %v4147, %v4374
        %v4376 = vpop.f32.mrb[0].mxu0
        %v4377 = vadd.f32 %v4147, %v4376
        %v4378 = vpop.f32.mrb[0].mxu0
        %v4379 = vadd.f32 %v4152, %v4378
        %v4380 = vpop.f32.mrb[0].mxu0
        %v4381 = vadd.f32 %v4152, %v4380
        %4382 = vdwg.mxu0
        %4383 = vmatprep.subr.bf16.mxu0 %v4107
        %4384 = vmatpush1.bf16.msra.mxu0 %v4106
        %4385 = vmatprep.subr.bf16.mxu0 %v4123
        %4386 = vmatpush1.bf16.msra.mxu0 %v4122
        %4387 = vmatprep.subr.bf16.mxu0 0
        %4388 = vmatpush1.bf16.msra.mxu0 0
        %4389 = vmatprep.subr.bf16.mxu0 0
        %4390 = vmatpush1.bf16.msra.mxu0 0
        %4391 = vmatprep.subr.bf16.mxu0 0
        %4392 = vmatpush1.bf16.msra.mxu0 0
        %4393 = vmatprep.subr.bf16.mxu0 0
        %4394 = vmatpush1.bf16.msra.mxu0 0
        %4395 = vmatprep.subr.bf16.mxu0 0
        %4396 = vmatpush1.bf16.msra.mxu0 0
        %4397 = vmatprep.subr.bf16.mxu0 0
        %4398 = vmatpush1.bf16.msra.mxu0 0
        %4399 = vmatprep.subr.bf16.mxu0 0
        %4400 = vmatpush1.bf16.msra.mxu0 0
        %4401 = vmatprep.subr.bf16.mxu0 0
        %4402 = vmatpush1.bf16.msra.mxu0 0
        %4403 = vmatprep.subr.bf16.mxu0 0
        %4404 = vmatpush1.bf16.msra.mxu0 0
        %4405 = vmatprep.subr.bf16.mxu0 0
        %4406 = vmatpush1.bf16.msra.mxu0 0
        %4407 = vmatprep.subr.bf16.mxu0 0
        %4408 = vmatpush1.bf16.msra.mxu0 0
        %4409 = vmatprep.subr.bf16.mxu0 0
        %4410 = vmatpush1.bf16.msra.mxu0 0
        %4411 = vmatprep.subr.bf16.mxu0 0
        %4412 = vmatpush1.bf16.msra.mxu0 0
        %4413 = vmatprep.subr.bf16.mxu0 0
        %4414 = vmatpush1.bf16.msra.mxu0 0
        %4415 = vmatprep.mubr.bf16.mxu0 0
        %4416 = vmatmul.mubr.bf16.gmra.mrb[0].mxu0 %v4166
        %v4417 = vpop.f32.mrb[0].mxu0
        %v4418 = vadd.f32 %v4137, %v4417
        %v4419 = vpop.f32.mrb[0].mxu0
        %v4420 = vadd.f32 %v4137, %v4419
        %v4421 = vpop.f32.mrb[0].mxu0
        %v4422 = vadd.f32 %v4142, %v4421
        %v4423 = vpop.f32.mrb[0].mxu0
        %v4424 = vadd.f32 %v4142, %v4423
        %4425 = vmatprep.mubr.bf16.mxu0 0
        %4426 = vmatmul.mubr.bf16.gmra.mrb[0].mxu0 %v4169
        %v4427 = vpop.f32.mrb[0].mxu0
        %v4428 = vadd.f32 %v4147, %v4427
        %v4429 = vpop.f32.mrb[0].mxu0
        %v4430 = vadd.f32 %v4147, %v4429
        %v4431 = vpop.f32.mrb[0].mxu0
        %v4432 = vadd.f32 %v4152, %v4431
        %v4433 = vpop.f32.mrb[0].mxu0
        %v4434 = vadd.f32 %v4152, %v4433
        %4435 = vdwg.mxu0
        %4436 = vmatprep.subr.bf16.mxu0 %v4109
        %4437 = vmatpush1.bf16.msra.mxu0 %v4108
        %4438 = vmatprep.subr.bf16.mxu0 %v4125
        %4439 = vmatpush1.bf16.msra.mxu0 %v4124
        %4440 = vmatprep.subr.bf16.mxu0 0
        %4441 = vmatpush1.bf16.msra.mxu0 0
        %4442 = vmatprep.subr.bf16.mxu0 0
        %4443 = vmatpush1.bf16.msra.mxu0 0
        %4444 = vmatprep.subr.bf16.mxu0 0
        %4445 = vmatpush1.bf16.msra.mxu0 0
        %4446 = vmatprep.subr.bf16.mxu0 0
        %4447 = vmatpush1.bf16.msra.mxu0 0
        %4448 = vmatprep.subr.bf16.mxu0 0
        %4449 = vmatpush1.bf16.msra.mxu0 0
        %4450 = vmatprep.subr.bf16.mxu0 0
        %4451 = vmatpush1.bf16.msra.mxu0 0
        %4452 = vmatprep.subr.bf16.mxu0 0
        %4453 = vmatpush1.bf16.msra.mxu0 0
        %4454 = vmatprep.subr.bf16.mxu0 0
        %4455 = vmatpush1.bf16.msra.mxu0 0
        %4456 = vmatprep.subr.bf16.mxu0 0
        %4457 = vmatpush1.bf16.msra.mxu0 0
        %4458 = vmatprep.subr.bf16.mxu0 0
        %4459 = vmatpush1.bf16.msra.mxu0 0
        %4460 = vmatprep.subr.bf16.mxu0 0
        %4461 = vmatpush1.bf16.msra.mxu0 0
        %4462 = vmatprep.subr.bf16.mxu0 0
        %4463 = vmatpush1.bf16.msra.mxu0 0
        %4464 = vmatprep.subr.bf16.mxu0 0
        %4465 = vmatpush1.bf16.msra.mxu0 0
        %4466 = vmatprep.subr.bf16.mxu0 0
        %4467 = vmatpush1.bf16.msra.mxu0 0
        %4468 = vmatprep.mubr.bf16.mxu0 0
        %4469 = vmatmul.mubr.bf16.gmra.mrb[0].mxu0 %v4166
        %v4470 = vpop.f32.mrb[0].mxu0
        %v4471 = vadd.f32 %v4137, %v4470
        %v4472 = vpop.f32.mrb[0].mxu0
        %v4473 = vadd.f32 %v4137, %v4472
        %v4474 = vpop.f32.mrb[0].mxu0
        %v4475 = vadd.f32 %v4142, %v4474
        %v4476 = vpop.f32.mrb[0].mxu0
        %v4477 = vadd.f32 %v4142, %v4476
        %4478 = vmatprep.mubr.bf16.mxu0 0
        %4479 = vmatmul.mubr.bf16.gmra.mrb[0].mxu0 %v4169
        %v4480 = vpop.f32.mrb[0].mxu0
        %v4481 = vadd.f32 %v4147, %v4480
        %v4482 = vpop.f32.mrb[0].mxu0
        %v4483 = vadd.f32 %v4147, %v4482
        %v4484 = vpop.f32.mrb[0].mxu0
        %v4485 = vadd.f32 %v4152, %v4484
        %v4486 = vpop.f32.mrb[0].mxu0
        %v4487 = vadd.f32 %v4152, %v4486
        %4488 = vdwg.mxu0
        %4489 = vmatprep.subr.bf16.mxu0 %v4111
        %4490 = vmatpush1.bf16.msra.mxu0 %v4110
        %4491 = vmatprep.subr.bf16.mxu0 %v4127
        %4492 = vmatpush1.bf16.msra.mxu0 %v4126
        %4493 = vmatprep.subr.bf16.mxu0 0
        %4494 = vmatpush1.bf16.msra.mxu0 0
        %4495 = vmatprep.subr.bf16.mxu0 0
        %4496 = vmatpush1.bf16.msra.mxu0 0
        %4497 = vmatprep.subr.bf16.mxu0 0
        %4498 = vmatpush1.bf16.msra.mxu0 0
        %4499 = vmatprep.subr.bf16.mxu0 0
        %4500 = vmatpush1.bf16.msra.mxu0 0
        %4501 = vmatprep.subr.bf16.mxu0 0
        %4502 = vmatpush1.bf16.msra.mxu0 0
        %4503 = vmatprep.subr.bf16.mxu0 0
        %4504 = vmatpush1.bf16.msra.mxu0 0
        %4505 = vmatprep.subr.bf16.mxu0 0
        %4506 = vmatpush1.bf16.msra.mxu0 0
        %4507 = vmatprep.subr.bf16.mxu0 0
        %4508 = vmatpush1.bf16.msra.mxu0 0
        %4509 = vmatprep.subr.bf16.mxu0 0
        %4510 = vmatpush1.bf16.msra.mxu0 0
        %4511 = vmatprep.subr.bf16.mxu0 0
        %4512 = vmatpush1.bf16.msra.mxu0 0
        %4513 = vmatprep.subr.bf16.mxu0 0
        %4514 = vmatpush1.bf16.msra.mxu0 0
        %4515 = vmatprep.subr.bf16.mxu0 0
        %4516 = vmatpush1.bf16.msra.mxu0 0
        %4517 = vmatprep.subr.bf16.mxu0 0
        %4518 = vmatpush1.bf16.msra.mxu0 0
        %4519 = vmatprep.subr.bf16.mxu0 0
        %4520 = vmatpush1.bf16.msra.mxu0 0
        %4521 = vmatprep.mubr.bf16.mxu0 0
        %4522 = vmatmul.mubr.bf16.gmra.mrb[0].mxu0 %v4166
        %v4523 = vpop.f32.mrb[0].mxu0
        %v4524 = vadd.f32 %v4137, %v4523
        %v4525 = vpop.f32.mrb[0].mxu0
        %v4526 = vadd.f32 %v4137, %v4525
        %v4527 = vpop.f32.mrb[0].mxu0
        %v4528 = vadd.f32 %v4142, %v4527
        %v4529 = vpop.f32.mrb[0].mxu0
        %v4530 = vadd.f32 %v4142, %v4529
        %4531 = vmatprep.mubr.bf16.mxu0 0
        %4532 = vmatmul.mubr.bf16.gmra.mrb[0].mxu0 %v4169
        %v4533 = vpop.f32.mrb[0].mxu0
        %v4534 = vadd.f32 %v4147, %v4533
        %v4535 = vpop.f32.mrb[0].mxu0
        %v4536 = vadd.f32 %v4147, %v4535
        %v4537 = vpop.f32.mrb[0].mxu0
        %v4538 = vadd.f32 %v4152, %v4537
        %v4539 = vpop.f32.mrb[0].mxu0
        %v4540 = vadd.f32 %v4152, %v4539
        %4541 = vdwg.mxu0
        %4542 = vmatprep.subr.bf16.mxu0 %v4113
        %4543 = vmatpush1.bf16.msra.mxu0 %v4112
        %4544 = vmatprep.subr.bf16.mxu0 %v4129
        %4545 = vmatpush1.bf16.msra.mxu0 %v4128
        %4546 = vmatprep.subr.bf16.mxu0 0
        %4547 = vmatpush1.bf16.msra.mxu0 0
        %4548 = vmatprep.subr.bf16.mxu0 0
        %4549 = vmatpush1.bf16.msra.mxu0 0
        %4550 = vmatprep.subr.bf16.mxu0 0
        %4551 = vmatpush1.bf16.msra.mxu0 0
        %4552 = vmatprep.subr.bf16.mxu0 0
        %4553 = vmatpush1.bf16.msra.mxu0 0
        %4554 = vmatprep.subr.bf16.mxu0 0
        %4555 = vmatpush1.bf16.msra.mxu0 0
        %4556 = vmatprep.subr.bf16.mxu0 0
        %4557 = vmatpush1.bf16.msra.mxu0 0
        %4558 = vmatprep.subr.bf16.mxu0 0
        %4559 = vmatpush1.bf16.msra.mxu0 0
        %4560 = vmatprep.subr.bf16.mxu0 0
        %4561 = vmatpush1.bf16.msra.mxu0 0
        %4562 = vmatprep.subr.bf16.mxu0 0
        %4563 = vmatpush1.bf16.msra.mxu0 0
        %4564 = vmatprep.subr.bf16.mxu0 0
        %4565 = vmatpush1.bf16.msra.mxu0 0
        %4566 = vmatprep.subr.bf16.mxu0 0
        %4567 = vmatpush1.bf16.msra.mxu0 0
        %4568 = vmatprep.subr.bf16.mxu0 0
        %4569 = vmatpush1.bf16.msra.mxu0 0
        %4570 = vmatprep.subr.bf16.mxu0 0
        %4571 = vmatpush1.bf16.msra.mxu0 0
        %4572 = vmatprep.subr.bf16.mxu0 0
        %4573 = vmatpush1.bf16.msra.mxu0 0
        %4574 = vmatprep.mubr.bf16.mxu0 0
        %4575 = vmatmul.mubr.bf16.gmra.mrb[0].mxu0 %v4166
        %v4576 = vpop.f32.mrb[0].mxu0
        %v4577 = vadd.f32 %v4137, %v4576
        %v4578 = vpop.f32.mrb[0].mxu0
        %v4579 = vadd.f32 %v4137, %v4578
        %v4580 = vpop.f32.mrb[0].mxu0
        %v4581 = vadd.f32 %v4142, %v4580
        %v4582 = vpop.f32.mrb[0].mxu0
        %v4583 = vadd.f32 %v4142, %v4582
        %4584 = vmatprep.mubr.bf16.mxu0 0
        %4585 = vmatmul.mubr.bf16.gmra.mrb[0].mxu0 %v4169
        %v4586 = vpop.f32.mrb[0].mxu0
        %v4587 = vadd.f32 %v4147, %v4586
        %v4588 = vpop.f32.mrb[0].mxu0
        %v4589 = vadd.f32 %v4147, %v4588
        %v4590 = vpop.f32.mrb[0].mxu0
        %v4591 = vadd.f32 %v4152, %v4590
        %v4592 = vpop.f32.mrb[0].mxu0
        %v4593 = vadd.f32 %v4152, %v4592
        %4594 = vdwg.mxu0
        %v4595 = vmul.f32 %v4206, %v4206
        %v4596 = vmul.f32 %v4208, %v4208
        %v4597 = vmul.f32 %v4259, %v4259
        %v4598 = vmul.f32 %v4261, %v4261
        %v4599 = vmul.f32 %v4312, %v4312
        %v4600 = vmul.f32 %v4314, %v4314
        %v4601 = vmul.f32 %v4365, %v4365
        %v4602 = vmul.f32 %v4367, %v4367
        %v4603 = vmul.f32 %v4418, %v4418
        %v4604 = vmul.f32 %v4420, %v4420
        %v4605 = vmul.f32 %v4471, %v4471
        %v4606 = vmul.f32 %v4473, %v4473
        %v4607 = vmul.f32 %v4524, %v4524
        %v4608 = vmul.f32 %v4526, %v4526
        %v4609 = vmul.f32 %v4577, %v4577
        %v4610 = vmul.f32 %v4579, %v4579
        %v4611 = vmul.f32 %v4210, %v4210
        %v4612 = vmul.f32 %v4212, %v4212
        %v4613 = vmul.f32 %v4263, %v4263
        %v4614 = vmul.f32 %v4265, %v4265
        %v4615 = vmul.f32 %v4316, %v4316
        %v4616 = vmul.f32 %v4318, %v4318
        %v4617 = vmul.f32 %v4369, %v4369
        %v4618 = vmul.f32 %v4371, %v4371
        %v4619 = vmul.f32 %v4422, %v4422
        %v4620 = vmul.f32 %v4424, %v4424
        %v4621 = vmul.f32 %v4475, %v4475
        %v4622 = vmul.f32 %v4477, %v4477
        %v4623 = vmul.f32 %v4528, %v4528
        %v4624 = vmul.f32 %v4530, %v4530
        %v4625 = vmul.f32 %v4581, %v4581
        %v4626 = vmul.f32 %v4583, %v4583
        %v4627 = vmul.f32 %v4216, %v4216
        %v4628 = vmul.f32 %v4218, %v4218
        %v4629 = vmul.f32 %v4269, %v4269
        %v4630 = vmul.f32 %v4271, %v4271
        %v4631 = vmul.f32 %v4322, %v4322
        %v4632 = vmul.f32 %v4324, %v4324
        %v4633 = vmul.f32 %v4375, %v4375
        %v4634 = vmul.f32 %v4377, %v4377
        %v4635 = vmul.f32 %v4428, %v4428
        %v4636 = vmul.f32 %v4430, %v4430
        %v4637 = vmul.f32 %v4481, %v4481
        %v4638 = vmul.f32 %v4483, %v4483
        %v4639 = vmul.f32 %v4534, %v4534
        %v4640 = vmul.f32 %v4536, %v4536
        %v4641 = vmul.f32 %v4587, %v4587
        %v4642 = vmul.f32 %v4589, %v4589
        %v4643 = vmul.f32 %v4220, %v4220
        %v4644 = vmul.f32 %v4222, %v4222
        %v4645 = vmul.f32 %v4273, %v4273
        %v4646 = vmul.f32 %v4275, %v4275
        %v4647 = vmul.f32 %v4326, %v4326
        %v4648 = vmul.f32 %v4328, %v4328
        %v4649 = vmul.f32 %v4379, %v4379
        %v4650 = vmul.f32 %v4381, %v4381
        %v4651 = vmul.f32 %v4432, %v4432
        %v4652 = vmul.f32 %v4434, %v4434
        %v4653 = vmul.f32 %v4485, %v4485
        %v4654 = vmul.f32 %v4487, %v4487
        %v4655 = vmul.f32 %v4538, %v4538
        %v4656 = vmul.f32 %v4540, %v4540
        %v4657 = vmul.f32 %v4591, %v4591
        %v4658 = vmul.f32 %v4593, %v4593
        %v4659 = vadd.f32 %v4595, %v4611
        %v4660 = vadd.f32 %v4659, %v4627
        %v4661 = vadd.f32 %v4660, %v4643
        %v4662 = vrot.slane %v4661, 4
        %v4663 = vadd.f32 %v4661, %v4662
        %v4664 = vrot.slane %v4663, 2
        %v4665 = vadd.f32 %v4663, %v4664
        %v4666 = vrot.slane %v4665, 1
        %v4667 = vadd.f32 %v4665, %v4666
        %v4668 = vadd.f32 %v4596, %v4612
        %v4669 = vadd.f32 %v4668, %v4628
        %v4670 = vadd.f32 %v4669, %v4644
        %v4671 = vrot.slane %v4670, 4
        %v4672 = vadd.f32 %v4670, %v4671
        %v4673 = vrot.slane %v4672, 2
        %v4674 = vadd.f32 %v4672, %v4673
        %v4675 = vrot.slane %v4674, 1
        %v4676 = vadd.f32 %v4674, %v4675
        %v4677 = vadd.f32 %v4597, %v4613
        %v4678 = vadd.f32 %v4677, %v4629
        %v4679 = vadd.f32 %v4678, %v4645
        %v4680 = vrot.slane %v4679, 4
        %v4681 = vadd.f32 %v4679, %v4680
        %v4682 = vrot.slane %v4681, 2
        %v4683 = vadd.f32 %v4681, %v4682
        %v4684 = vrot.slane %v4683, 1
        %v4685 = vadd.f32 %v4683, %v4684
        %v4686 = vadd.f32 %v4598, %v4614
        %v4687 = vadd.f32 %v4686, %v4630
        %v4688 = vadd.f32 %v4687, %v4646
        %v4689 = vrot.slane %v4688, 4
        %v4690 = vadd.f32 %v4688, %v4689
        %v4691 = vrot.slane %v4690, 2
        %v4692 = vadd.f32 %v4690, %v4691
        %v4693 = vrot.slane %v4692, 1
        %v4694 = vadd.f32 %v4692, %v4693
        %v4695 = vadd.f32 %v4599, %v4615
        %v4696 = vadd.f32 %v4695, %v4631
        %v4697 = vadd.f32 %v4696, %v4647
        %v4698 = vrot.slane %v4697, 4
        %v4699 = vadd.f32 %v4697, %v4698
        %v4700 = vrot.slane %v4699, 2
        %v4701 = vadd.f32 %v4699, %v4700
        %v4702 = vrot.slane %v4701, 1
        %v4703 = vadd.f32 %v4701, %v4702
        %v4704 = vadd.f32 %v4600, %v4616
        %v4705 = vadd.f32 %v4704, %v4632
        %v4706 = vadd.f32 %v4705, %v4648
        %v4707 = vrot.slane %v4706, 4
        %v4708 = vadd.f32 %v4706, %v4707
        %v4709 = vrot.slane %v4708, 2
        %v4710 = vadd.f32 %v4708, %v4709
        %v4711 = vrot.slane %v4710, 1
        %v4712 = vadd.f32 %v4710, %v4711
        %v4713 = vadd.f32 %v4601, %v4617
        %v4714 = vadd.f32 %v4713, %v4633
        %v4715 = vadd.f32 %v4714, %v4649
        %v4716 = vrot.slane %v4715, 4
        %v4717 = vadd.f32 %v4715, %v4716
        %v4718 = vrot.slane %v4717, 2
        %v4719 = vadd.f32 %v4717, %v4718
        %v4720 = vrot.slane %v4719, 1
        %v4721 = vadd.f32 %v4719, %v4720
        %v4722 = vadd.f32 %v4602, %v4618
        %v4723 = vadd.f32 %v4722, %v4634
        %v4724 = vadd.f32 %v4723, %v4650
        %v4725 = vrot.slane %v4724, 4
        %v4726 = vadd.f32 %v4724, %v4725
        %v4727 = vrot.slane %v4726, 2
        %v4728 = vadd.f32 %v4726, %v4727
        %v4729 = vrot.slane %v4728, 1
        %v4730 = vadd.f32 %v4728, %v4729
        %v4731 = vadd.f32 %v4603, %v4619
        %v4732 = vadd.f32 %v4731, %v4635
        %v4733 = vadd.f32 %v4732, %v4651
        %v4734 = vrot.slane %v4733, 4
        %v4735 = vadd.f32 %v4733, %v4734
        %v4736 = vrot.slane %v4735, 2
        %v4737 = vadd.f32 %v4735, %v4736
        %v4738 = vrot.slane %v4737, 1
        %v4739 = vadd.f32 %v4737, %v4738
        %v4740 = vadd.f32 %v4604, %v4620
        %v4741 = vadd.f32 %v4740, %v4636
        %v4742 = vadd.f32 %v4741, %v4652
        %v4743 = vrot.slane %v4742, 4
        %v4744 = vadd.f32 %v4742, %v4743
        %v4745 = vrot.slane %v4744, 2
        %v4746 = vadd.f32 %v4744, %v4745
        %v4747 = vrot.slane %v4746, 1
        %v4748 = vadd.f32 %v4746, %v4747
        %v4749 = vadd.f32 %v4605, %v4621
        %v4750 = vadd.f32 %v4749, %v4637
        %v4751 = vadd.f32 %v4750, %v4653
        %v4752 = vrot.slane %v4751, 4
        %v4753 = vadd.f32 %v4751, %v4752
        %v4754 = vrot.slane %v4753, 2
        %v4755 = vadd.f32 %v4753, %v4754
        %v4756 = vrot.slane %v4755, 1
        %v4757 = vadd.f32 %v4755, %v4756
        %v4758 = vadd.f32 %v4606, %v4622
        %v4759 = vadd.f32 %v4758, %v4638
        %v4760 = vadd.f32 %v4759, %v4654
        %v4761 = vrot.slane %v4760, 4
        %v4762 = vadd.f32 %v4760, %v4761
        %v4763 = vrot.slane %v4762, 2
        %v4764 = vadd.f32 %v4762, %v4763
        %v4765 = vrot.slane %v4764, 1
        %v4766 = vadd.f32 %v4764, %v4765
        %v4767 = vadd.f32 %v4607, %v4623
        %v4768 = vadd.f32 %v4767, %v4639
        %v4769 = vadd.f32 %v4768, %v4655
        %v4770 = vrot.slane %v4769, 4
        %v4771 = vadd.f32 %v4769, %v4770
        %v4772 = vrot.slane %v4771, 2
        %v4773 = vadd.f32 %v4771, %v4772
        %v4774 = vrot.slane %v4773, 1
        %v4775 = vadd.f32 %v4773, %v4774
        %v4776 = vadd.f32 %v4608, %v4624
        %v4777 = vadd.f32 %v4776, %v4640
        %v4778 = vadd.f32 %v4777, %v4656
        %v4779 = vrot.slane %v4778, 4
        %v4780 = vadd.f32 %v4778, %v4779
        %v4781 = vrot.slane %v4780, 2
        %v4782 = vadd.f32 %v4780, %v4781
        %v4783 = vrot.slane %v4782, 1
        %v4784 = vadd.f32 %v4782, %v4783
        %v4785 = vadd.f32 %v4609, %v4625
        %v4786 = vadd.f32 %v4785, %v4641
        %v4787 = vadd.f32 %v4786, %v4657
        %v4788 = vrot.slane %v4787, 4
        %v4789 = vadd.f32 %v4787, %v4788
        %v4790 = vrot.slane %v4789, 2
        %v4791 = vadd.f32 %v4789, %v4790
        %v4792 = vrot.slane %v4791, 1
        %v4793 = vadd.f32 %v4791, %v4792
        %v4794 = vadd.f32 %v4610, %v4626
        %v4795 = vadd.f32 %v4794, %v4642
        %v4796 = vadd.f32 %v4795, %v4658
        %v4797 = vrot.slane %v4796, 4
        %v4798 = vadd.f32 %v4796, %v4797
        %v4799 = vrot.slane %v4798, 2
        %v4800 = vadd.f32 %v4798, %v4799
        %v4801 = vrot.slane %v4800, 1
        %v4802 = vadd.f32 %v4800, %v4801
        %v4803 = vadd.f32 %v4667, 1e-12
        %v4804 = vadd.f32 %v4676, 1e-12
        %v4805 = vadd.f32 %v4685, 1e-12
        %v4806 = vadd.f32 %v4694, 1e-12
        %v4807 = vadd.f32 %v4703, 1e-12
        %v4808 = vadd.f32 %v4712, 1e-12
        %v4809 = vadd.f32 %v4721, 1e-12
        %v4810 = vadd.f32 %v4730, 1e-12
        %v4811 = vadd.f32 %v4739, 1e-12
        %v4812 = vadd.f32 %v4748, 1e-12
        %v4813 = vadd.f32 %v4757, 1e-12
        %v4814 = vadd.f32 %v4766, 1e-12
        %v4815 = vadd.f32 %v4775, 1e-12
        %v4816 = vadd.f32 %v4784, 1e-12
        %v4817 = vadd.f32 %v4793, 1e-12
        %v4818 = vadd.f32 %v4802, 1e-12
        %v4819 = vrsqrt.pop %v4803
        %v4820 = vrsqrt.pop %v4804
        %v4821 = vrsqrt.pop %v4805
        %v4822 = vrsqrt.pop %v4806
        %v4823 = vrsqrt.pop %v4807
        %v4824 = vrsqrt.pop %v4808
        %v4825 = vrsqrt.pop %v4809
        %v4826 = vrsqrt.pop %v4810
        %v4827 = vrsqrt.pop %v4811
        %v4828 = vrsqrt.pop %v4812
        %v4829 = vrsqrt.pop %v4813
        %v4830 = vrsqrt.pop %v4814
        %v4831 = vrsqrt.pop %v4815
        %v4832 = vrsqrt.pop %v4816
        %v4833 = vrsqrt.pop %v4817
        %v4834 = vrsqrt.pop %v4818
        %v4835 = vmul.f32 %v4206, %v4819
        %v4836 = vmul.f32 %v4208, %v4820
        %v4837 = vmul.f32 %v4259, %v4821
        %v4838 = vmul.f32 %v4261, %v4822
        %v4839 = vmul.f32 %v4312, %v4823
        %v4840 = vmul.f32 %v4314, %v4824
        %v4841 = vmul.f32 %v4365, %v4825
        %v4842 = vmul.f32 %v4367, %v4826
        %v4843 = vmul.f32 %v4418, %v4827
        %v4844 = vmul.f32 %v4420, %v4828
        %v4845 = vmul.f32 %v4471, %v4829
        %v4846 = vmul.f32 %v4473, %v4830
        %v4847 = vmul.f32 %v4524, %v4831
        %v4848 = vmul.f32 %v4526, %v4832
        %v4849 = vmul.f32 %v4577, %v4833
        %v4850 = vmul.f32 %v4579, %v4834
        %v4851 = vmul.f32 %v4210, %v4819
        %v4852 = vmul.f32 %v4212, %v4820
        %v4853 = vmul.f32 %v4263, %v4821
        %v4854 = vmul.f32 %v4265, %v4822
        %v4855 = vmul.f32 %v4316, %v4823
        %v4856 = vmul.f32 %v4318, %v4824
        %v4857 = vmul.f32 %v4369, %v4825
        %v4858 = vmul.f32 %v4371, %v4826
        %v4859 = vmul.f32 %v4422, %v4827
        %v4860 = vmul.f32 %v4424, %v4828
        %v4861 = vmul.f32 %v4475, %v4829
        %v4862 = vmul.f32 %v4477, %v4830
        %v4863 = vmul.f32 %v4528, %v4831
        %v4864 = vmul.f32 %v4530, %v4832
        %v4865 = vmul.f32 %v4581, %v4833
        %v4866 = vmul.f32 %v4583, %v4834
        %v4867 = vmul.f32 %v4216, %v4819
        %v4868 = vmul.f32 %v4218, %v4820
        %v4869 = vmul.f32 %v4269, %v4821
        %v4870 = vmul.f32 %v4271, %v4822
        %v4871 = vmul.f32 %v4322, %v4823
        %v4872 = vmul.f32 %v4324, %v4824
        %v4873 = vmul.f32 %v4375, %v4825
        %v4874 = vmul.f32 %v4377, %v4826
        %v4875 = vmul.f32 %v4428, %v4827
        %v4876 = vmul.f32 %v4430, %v4828
        %v4877 = vmul.f32 %v4481, %v4829
        %v4878 = vmul.f32 %v4483, %v4830
        %v4879 = vmul.f32 %v4534, %v4831
        %v4880 = vmul.f32 %v4536, %v4832
        %v4881 = vmul.f32 %v4587, %v4833
        %v4882 = vmul.f32 %v4589, %v4834
        %v4883 = vmul.f32 %v4220, %v4819
        %v4884 = vmul.f32 %v4222, %v4820
        %v4885 = vmul.f32 %v4273, %v4821
        %v4886 = vmul.f32 %v4275, %v4822
        %v4887 = vmul.f32 %v4326, %v4823
        %v4888 = vmul.f32 %v4328, %v4824
        %v4889 = vmul.f32 %v4379, %v4825
        %v4890 = vmul.f32 %v4381, %v4826
        %v4891 = vmul.f32 %v4432, %v4827
        %v4892 = vmul.f32 %v4434, %v4828
        %v4893 = vmul.f32 %v4485, %v4829
        %v4894 = vmul.f32 %v4487, %v4830
        %v4895 = vmul.f32 %v4538, %v4831
        %v4896 = vmul.f32 %v4540, %v4832
        %v4897 = vmul.f32 %v4591, %v4833
        %v4898 = vmul.f32 %v4593, %v4834
        %4899 = vst [vmem:[%s340] sm:$0xff] %v4835
        %4900 = vst [vmem:[%s340 + $0x8] sm:$0xff] %v4836
        %4901 = vst [vmem:[%s340 + $0x10] sm:$0xff] %v4837
        %4902 = vst [vmem:[%s340 + $0x18] sm:$0xff] %v4838
        %4903 = vst [vmem:[%s340 + $0x20] sm:$0xff] %v4839
        %4904 = vst [vmem:[%s340 + $0x28] sm:$0xff] %v4840
        %4905 = vst [vmem:[%s340 + $0x30] sm:$0xff] %v4841
        %4906 = vst [vmem:[%s340 + $0x38] sm:$0xff] %v4842
        %4907 = vst [vmem:[%s340 + $0x40] sm:$0xff] %v4843
        %4908 = vst [vmem:[%s340 + $0x48] sm:$0xff] %v4844
        %4909 = vst [vmem:[%s340 + $0x50] sm:$0xff] %v4845
        %4910 = vst [vmem:[%s340 + $0x58] sm:$0xff] %v4846
        %4911 = vst [vmem:[%s340 + $0x60] sm:$0xff] %v4847
        %4912 = vst [vmem:[%s340 + $0x68] sm:$0xff] %v4848
        %4913 = vst [vmem:[%s340 + $0x70] sm:$0xff] %v4849
        %4914 = vst [vmem:[%s340 + $0x78] sm:$0xff] %v4850
        %4915 = vst [vmem:[%s340 + $0x80] sm:$0xff] %v4851
        %4916 = vst [vmem:[%s340 + $0x88] sm:$0xff] %v4852
        %4917 = vst [vmem:[%s340 + $0x90] sm:$0xff] %v4853
        %4918 = vst [vmem:[%s340 + $0x98] sm:$0xff] %v4854
        %4919 = vst [vmem:[%s340 + $0xa0] sm:$0xff] %v4855
        %4920 = vst [vmem:[%s340 + $0xa8] sm:$0xff] %v4856
        %4921 = vst [vmem:[%s340 + $0xb0] sm:$0xff] %v4857
        %4922 = vst [vmem:[%s340 + $0xb8] sm:$0xff] %v4858
        %4923 = vst [vmem:[%s340 + $0xc0] sm:$0xff] %v4859
        %4924 = vst [vmem:[%s340 + $0xc8] sm:$0xff] %v4860
        %4925 = vst [vmem:[%s340 + $0xd0] sm:$0xff] %v4861
        %4926 = vst [vmem:[%s340 + $0xd8] sm:$0xff] %v4862
        %4927 = vst [vmem:[%s340 + $0xe0] sm:$0xff] %v4863
        %4928 = vst [vmem:[%s340 + $0xe8] sm:$0xff] %v4864
        %4929 = vst [vmem:[%s340 + $0xf0] sm:$0xff] %v4865
        %4930 = vst [vmem:[%s340 + $0xf8] sm:$0xff] %v4866
        %4931 = vst [vmem:[%s340 + $0x100] sm:$0xff] %v4867
        %4932 = vst [vmem:[%s340 + $0x108] sm:$0xff] %v4868
        %4933 = vst [vmem:[%s340 + $0x110] sm:$0xff] %v4869
        %4934 = vst [vmem:[%s340 + $0x118] sm:$0xff] %v4870
        %4935 = vst [vmem:[%s340 + $0x120] sm:$0xff] %v4871
        %4936 = vst [vmem:[%s340 + $0x128] sm:$0xff] %v4872
        %4937 = vst [vmem:[%s340 + $0x130] sm:$0xff] %v4873
        %4938 = vst [vmem:[%s340 + $0x138] sm:$0xff] %v4874
        %4939 = vst [vmem:[%s340 + $0x140] sm:$0xff] %v4875
        %4940 = vst [vmem:[%s340 + $0x148] sm:$0xff] %v4876
        %4941 = vst [vmem:[%s340 + $0x150] sm:$0xff] %v4877
        %4942 = vst [vmem:[%s340 + $0x158] sm:$0xff] %v4878
        %4943 = vst [vmem:[%s340 + $0x160] sm:$0xff] %v4879
        %4944 = vst [vmem:[%s340 + $0x168] sm:$0xff] %v4880
        %4945 = vst [vmem:[%s340 + $0x170] sm:$0xff] %v4881
        %4946 = vst [vmem:[%s340 + $0x178] sm:$0xff] %v4882
        %4947 = vst [vmem:[%s340 + $0x180] sm:$0xff] %v4883
        %4948 = vst [vmem:[%s340 + $0x188] sm:$0xff] %v4884
        %4949 = vst [vmem:[%s340 + $0x190] sm:$0xff] %v4885
        %4950 = vst [vmem:[%s340 + $0x198] sm:$0xff] %v4886
        %4951 = vst [vmem:[%s340 + $0x1a0] sm:$0xff] %v4887
        %4952 = vst [vmem:[%s340 + $0x1a8] sm:$0xff] %v4888
        %4953 = vst [vmem:[%s340 + $0x1b0] sm:$0xff] %v4889
        %4954 = vst [vmem:[%s340 + $0x1b8] sm:$0xff] %v4890
        %4955 = vst [vmem:[%s340 + $0x1c0] sm:$0xff] %v4891
        %4956 = vst [vmem:[%s340 + $0x1c8] sm:$0xff] %v4892
        %4957 = vst [vmem:[%s340 + $0x1d0] sm:$0xff] %v4893
        %4958 = vst [vmem:[%s340 + $0x1d8] sm:$0xff] %v4894
        %4959 = vst [vmem:[%s340 + $0x1e0] sm:$0xff] %v4895
        %4960 = vst [vmem:[%s340 + $0x1e8] sm:$0xff] %v4896
        %4961 = vst [vmem:[%s340 + $0x1f0] sm:$0xff] %v4897
        %4962 = vst [vmem:[%s340 + $0x1f8] sm:$0xff] %v4898
        %s4963 = sand.u32 %s199, 1
        %s4964 = sand.u32 %s199, 1
        %s4965 = smul.addr %s4964, 512
        %s4966 = scalar_lea.vmem [#allocation8], %s4965
        // Predicated region
        $region61: #{carla_ret_run_train.1} parent=47 // pred_check
          %p4967 = pneg %p209
        $region62: #{carla_ret_run_train.1} parent=47 // pred_check_branch
          %4969 = sbr.rel (%p4967) target = $region64
        $region63: #{carla_ret_run_train.1} parent=47 // pred_region
          %s4970 = smul.u32 16, %s25
          %s4971 = smul.addr %s24, 128
          %s4972 = sadd.s32 %s4970, %s4971
          %s4973 = smul.addr %s4972, 8
          %s4974 = scalar_lea.vmem %s7, %s4973
          // Predicated region
          $region65: #{carla_ret_run_train.1} parent=63 // pred_check
            _
          $region66: #{carla_ret_run_train.1} parent=63 // pred_check_branch
            %4976 = sbr.rel (0) target = $region68
          $region67: #{carla_ret_run_train.1} parent=63 // pred_region
            // Predicated region
            $region69: #{carla_ret_run_train.1} parent=67 // pred_check
              _
            $region70: #{carla_ret_run_train.1} parent=67 // pred_check_branch
              %4978 = sbr.rel (0) target = $region72
            $region71: #{carla_ret_run_train.1} parent=67 // pred_region
              loop: start=0, step=1, limit=1
              $region73: #{carla_ret_run_train.1} parent=71 // loop_pre_header
                _
              $region74: #{carla_ret_run_train.1} parent=71 // loop_header
                %s4980 = sphi 0, %s4984
                %p4981 = scmp.ge.s32.totalorder %s4980, 1
                %s4985 = sphi %s4966, %s4966
                %s4986 = sphi %s4974, %s4974
              $region75: #{carla_ret_run_train.1} parent=71 // loop_header_branch
                %4983 = sbr.rel (%p4981) target = $region79
              $region76: #{carla_ret_run_train.1} parent=71 // loop_body
                %v4987 = vld [vmem:[%s4985] sm:$0xff]
                %4988 = vst [vmem:[%s4986] sm:$0xff] %v4987
                %v4989 = vld [vmem:[%s4985 + $0x8] sm:$0xff]
                %4990 = vst [vmem:[%s4986 + $0x8] sm:$0xff] %v4989
                %v4991 = vld [vmem:[%s4985 + $0x10] sm:$0xff]
                %4992 = vst [vmem:[%s4986 + $0x10] sm:$0xff] %v4991
                %v4993 = vld [vmem:[%s4985 + $0x18] sm:$0xff]
                %4994 = vst [vmem:[%s4986 + $0x18] sm:$0xff] %v4993
                %v4995 = vld [vmem:[%s4985 + $0x20] sm:$0xff]
                %4996 = vst [vmem:[%s4986 + $0x20] sm:$0xff] %v4995
                %v4997 = vld [vmem:[%s4985 + $0x28] sm:$0xff]
                %4998 = vst [vmem:[%s4986 + $0x28] sm:$0xff] %v4997
                %v4999 = vld [vmem:[%s4985 + $0x30] sm:$0xff]
                %5000 = vst [vmem:[%s4986 + $0x30] sm:$0xff] %v4999
                %v5001 = vld [vmem:[%s4985 + $0x38] sm:$0xff]
                %5002 = vst [vmem:[%s4986 + $0x38] sm:$0xff] %v5001
                %v5003 = vld [vmem:[%s4985 + $0x40] sm:$0xff]
                %5004 = vst [vmem:[%s4986 + $0x40] sm:$0xff] %v5003
                %v5005 = vld [vmem:[%s4985 + $0x48] sm:$0xff]
                %5006 = vst [vmem:[%s4986 + $0x48] sm:$0xff] %v5005
                %v5007 = vld [vmem:[%s4985 + $0x50] sm:$0xff]
                %5008 = vst [vmem:[%s4986 + $0x50] sm:$0xff] %v5007
                %v5009 = vld [vmem:[%s4985 + $0x58] sm:$0xff]
                %5010 = vst [vmem:[%s4986 + $0x58] sm:$0xff] %v5009
                %v5011 = vld [vmem:[%s4985 + $0x60] sm:$0xff]
                %5012 = vst [vmem:[%s4986 + $0x60] sm:$0xff] %v5011
                %v5013 = vld [vmem:[%s4985 + $0x68] sm:$0xff]
                %5014 = vst [vmem:[%s4986 + $0x68] sm:$0xff] %v5013
                %v5015 = vld [vmem:[%s4985 + $0x70] sm:$0xff]
                %5016 = vst [vmem:[%s4986 + $0x70] sm:$0xff] %v5015
                %v5017 = vld [vmem:[%s4985 + $0x78] sm:$0xff]
                %5018 = vst [vmem:[%s4986 + $0x78] sm:$0xff] %v5017
                %v5019 = vld [vmem:[%s4985 + $0x80] sm:$0xff]
                %5020 = vst [vmem:[%s4986 + $0x100] sm:$0xff] %v5019
                %v5021 = vld [vmem:[%s4985 + $0x88] sm:$0xff]
                %5022 = vst [vmem:[%s4986 + $0x108] sm:$0xff] %v5021
                %v5023 = vld [vmem:[%s4985 + $0x90] sm:$0xff]
                %5024 = vst [vmem:[%s4986 + $0x110] sm:$0xff] %v5023
                %v5025 = vld [vmem:[%s4985 + $0x98] sm:$0xff]
                %5026 = vst [vmem:[%s4986 + $0x118] sm:$0xff] %v5025
                %v5027 = vld [vmem:[%s4985 + $0xa0] sm:$0xff]
                %5028 = vst [vmem:[%s4986 + $0x120] sm:$0xff] %v5027
                %v5029 = vld [vmem:[%s4985 + $0xa8] sm:$0xff]
                %5030 = vst [vmem:[%s4986 + $0x128] sm:$0xff] %v5029
                %v5031 = vld [vmem:[%s4985 + $0xb0] sm:$0xff]
                %5032 = vst [vmem:[%s4986 + $0x130] sm:$0xff] %v5031
                %v5033 = vld [vmem:[%s4985 + $0xb8] sm:$0xff]
                %5034 = vst [vmem:[%s4986 + $0x138] sm:$0xff] %v5033
                %v5035 = vld [vmem:[%s4985 + $0xc0] sm:$0xff]
                %5036 = vst [vmem:[%s4986 + $0x140] sm:$0xff] %v5035
                %v5037 = vld [vmem:[%s4985 + $0xc8] sm:$0xff]
                %5038 = vst [vmem:[%s4986 + $0x148] sm:$0xff] %v5037
                %v5039 = vld [vmem:[%s4985 + $0xd0] sm:$0xff]
                %5040 = vst [vmem:[%s4986 + $0x150] sm:$0xff] %v5039
                %v5041 = vld [vmem:[%s4985 + $0xd8] sm:$0xff]
                %5042 = vst [vmem:[%s4986 + $0x158] sm:$0xff] %v5041
                %v5043 = vld [vmem:[%s4985 + $0xe0] sm:$0xff]
                %5044 = vst [vmem:[%s4986 + $0x160] sm:$0xff] %v5043
                %v5045 = vld [vmem:[%s4985 + $0xe8] sm:$0xff]
                %5046 = vst [vmem:[%s4986 + $0x168] sm:$0xff] %v5045
                %v5047 = vld [vmem:[%s4985 + $0xf0] sm:$0xff]
                %5048 = vst [vmem:[%s4986 + $0x170] sm:$0xff] %v5047
                %v5049 = vld [vmem:[%s4985 + $0xf8] sm:$0xff]
                %5050 = vst [vmem:[%s4986 + $0x178] sm:$0xff] %v5049
                %v5051 = vld [vmem:[%s4985 + $0x100] sm:$0xff]
                %5052 = vst [vmem:[%s4986 + $0x200] sm:$0xff] %v5051
                %v5053 = vld [vmem:[%s4985 + $0x108] sm:$0xff]
                %5054 = vst [vmem:[%s4986 + $0x208] sm:$0xff] %v5053
                %v5055 = vld [vmem:[%s4985 + $0x110] sm:$0xff]
                %5056 = vst [vmem:[%s4986 + $0x210] sm:$0xff] %v5055
                %v5057 = vld [vmem:[%s4985 + $0x118] sm:$0xff]
                %5058 = vst [vmem:[%s4986 + $0x218] sm:$0xff] %v5057
                %v5059 = vld [vmem:[%s4985 + $0x120] sm:$0xff]
                %5060 = vst [vmem:[%s4986 + $0x220] sm:$0xff] %v5059
                %v5061 = vld [vmem:[%s4985 + $0x128] sm:$0xff]
                %5062 = vst [vmem:[%s4986 + $0x228] sm:$0xff] %v5061
                %v5063 = vld [vmem:[%s4985 + $0x130] sm:$0xff]
                %5064 = vst [vmem:[%s4986 + $0x230] sm:$0xff] %v5063
                %v5065 = vld [vmem:[%s4985 + $0x138] sm:$0xff]
                %5066 = vst [vmem:[%s4986 + $0x238] sm:$0xff] %v5065
                %v5067 = vld [vmem:[%s4985 + $0x140] sm:$0xff]
                %5068 = vst [vmem:[%s4986 + $0x240] sm:$0xff] %v5067
                %v5069 = vld [vmem:[%s4985 + $0x148] sm:$0xff]
                %5070 = vst [vmem:[%s4986 + $0x248] sm:$0xff] %v5069
                %v5071 = vld [vmem:[%s4985 + $0x150] sm:$0xff]
                %5072 = vst [vmem:[%s4986 + $0x250] sm:$0xff] %v5071
                %v5073 = vld [vmem:[%s4985 + $0x158] sm:$0xff]
                %5074 = vst [vmem:[%s4986 + $0x258] sm:$0xff] %v5073
                %v5075 = vld [vmem:[%s4985 + $0x160] sm:$0xff]
                %5076 = vst [vmem:[%s4986 + $0x260] sm:$0xff] %v5075
                %v5077 = vld [vmem:[%s4985 + $0x168] sm:$0xff]
                %5078 = vst [vmem:[%s4986 + $0x268] sm:$0xff] %v5077
                %v5079 = vld [vmem:[%s4985 + $0x170] sm:$0xff]
                %5080 = vst [vmem:[%s4986 + $0x270] sm:$0xff] %v5079
                %v5081 = vld [vmem:[%s4985 + $0x178] sm:$0xff]
                %5082 = vst [vmem:[%s4986 + $0x278] sm:$0xff] %v5081
                %v5083 = vld [vmem:[%s4985 + $0x180] sm:$0xff]
                %5084 = vst [vmem:[%s4986 + $0x300] sm:$0xff] %v5083
                %v5085 = vld [vmem:[%s4985 + $0x188] sm:$0xff]
                %5086 = vst [vmem:[%s4986 + $0x308] sm:$0xff] %v5085
                %v5087 = vld [vmem:[%s4985 + $0x190] sm:$0xff]
                %5088 = vst [vmem:[%s4986 + $0x310] sm:$0xff] %v5087
                %v5089 = vld [vmem:[%s4985 + $0x198] sm:$0xff]
                %5090 = vst [vmem:[%s4986 + $0x318] sm:$0xff] %v5089
                %v5091 = vld [vmem:[%s4985 + $0x1a0] sm:$0xff]
                %5092 = vst [vmem:[%s4986 + $0x320] sm:$0xff] %v5091
                %v5093 = vld [vmem:[%s4985 + $0x1a8] sm:$0xff]
                %5094 = vst [vmem:[%s4986 + $0x328] sm:$0xff] %v5093
                %v5095 = vld [vmem:[%s4985 + $0x1b0] sm:$0xff]
                %5096 = vst [vmem:[%s4986 + $0x330] sm:$0xff] %v5095
                %v5097 = vld [vmem:[%s4985 + $0x1b8] sm:$0xff]
                %5098 = vst [vmem:[%s4986 + $0x338] sm:$0xff] %v5097
                %v5099 = vld [vmem:[%s4985 + $0x1c0] sm:$0xff]
                %5100 = vst [vmem:[%s4986 + $0x340] sm:$0xff] %v5099
                %v5101 = vld [vmem:[%s4985 + $0x1c8] sm:$0xff]
                %5102 = vst [vmem:[%s4986 + $0x348] sm:$0xff] %v5101
                %v5103 = vld [vmem:[%s4985 + $0x1d0] sm:$0xff]
                %5104 = vst [vmem:[%s4986 + $0x350] sm:$0xff] %v5103
                %v5105 = vld [vmem:[%s4985 + $0x1d8] sm:$0xff]
                %5106 = vst [vmem:[%s4986 + $0x358] sm:$0xff] %v5105
                %v5107 = vld [vmem:[%s4985 + $0x1e0] sm:$0xff]
                %5108 = vst [vmem:[%s4986 + $0x360] sm:$0xff] %v5107
                %v5109 = vld [vmem:[%s4985 + $0x1e8] sm:$0xff]
                %5110 = vst [vmem:[%s4986 + $0x368] sm:$0xff] %v5109
                %v5111 = vld [vmem:[%s4985 + $0x1f0] sm:$0xff]
                %5112 = vst [vmem:[%s4986 + $0x370] sm:$0xff] %v5111
                %v5113 = vld [vmem:[%s4985 + $0x1f8] sm:$0xff]
                %5114 = vst [vmem:[%s4986 + $0x378] sm:$0xff] %v5113
              $region77: #{carla_ret_run_train.1} parent=71 // loop_footer
                %s4984 = sadd.s32 1, %s4980
              $region78: #{carla_ret_run_train.1} parent=71 // loop_footer_branch
                %4979 = sbr.rel target = $region74
              $region79: #{carla_ret_run_train.1} parent=71 // loop_exit
                _
            $region72: #{carla_ret_run_train.1} parent=67 // pred_fallthru
              _
            // Predicated region
            $region80: #{carla_ret_run_train.1} parent=67 // pred_check
              _
            $region81: #{carla_ret_run_train.1} parent=67 // pred_check_branch
              %5116 = sbr.rel target = $region83
            $region82: #{carla_ret_run_train.1} parent=67 // pred_region
              _
            $region83: #{carla_ret_run_train.1} parent=67 // pred_fallthru
              _
          $region68: #{carla_ret_run_train.1} parent=63 // pred_fallthru
            _
          %5117 = vnop
        $region64: #{carla_ret_run_train.1} parent=47 // pred_fallthru
          _
      $region48: #{carla_ret_run_train.1} parent=5 // pred_fallthru
        _
      %p5118 = scmp.le.s32.totalorder 2, %s15
      // Predicated region
      $region84: #{carla_ret_run_train.1} parent=5 // pred_check
        %p5119 = pneg %p5118
      $region85: #{carla_ret_run_train.1} parent=5 // pred_check_branch
        %5121 = sbr.rel (%p5119) target = $region87
      $region86: #{carla_ret_run_train.1} parent=5 // pred_region
        %s5122 = ssub.s32 %s15, 2
        // Predicated region
        $region88: #{carla_ret_run_train.1} parent=86 // pred_check
          %p5123 = pneg %p215
        $region89: #{carla_ret_run_train.1} parent=86 // pred_check_branch
          %5125 = sbr.rel (%p5123) target = $region91
        $region90: #{carla_ret_run_train.1} parent=86 // pred_region
          %s5126 = sand.u32 %s200, 1
          %s5127 = sand.u32 %s200, 1
          %s5128 = smul.addr %s5127, 512
          %s5129 = scalar_lea.vmem [#allocation8], %s5128
        $region91: #{carla_ret_run_train.1} parent=86 // pred_fallthru
          _
      $region87: #{carla_ret_run_train.1} parent=5 // pred_fallthru
        _
    $region6: #{carla_ret_run_train.1} parent=1 // loop_footer
      %s19 = sadd.s32 1, %s15
    $region7: #{carla_ret_run_train.1} parent=1 // loop_footer_branch
      %14 = sbr.rel target = $region3
    $region8: #{carla_ret_run_train.1} parent=1 // loop_exit
      _
    %5130 = vsyncpa [#allocation4], 1
    %s5131 = scalar_lea.sflag [#allocation4], 1
    %5132 = vsyncpa %s5131, 1
    %5133 = vsyncpa [#allocation6], 1

</llo_original>
